<compile_context>
chip_gen: v7x
topology: tpu7x:2x2x1
jax: 0.10.0
libtpu: 0.0.40
codegen_flags: <defaults>
</compile_context>

<pallas_src>
import math
from functools import partial

import jax
import jax.numpy as jnp
from jax.experimental import pallas as pl
from jax.experimental.pallas import tpu as pltpu


LANE = 128  # lane-padded logits width (classifier output padded 2 -> 128)


# ----------------------------- in-kernel helpers -----------------------------

def _gelu(x):
    # TODO(synk): nn.GELU() defaults to exact erf-GELU; tanh approximation used
    # here (erf lowering is not guaranteed in Mosaic).  Max abs error ~1e-3.
    c = math.sqrt(2.0 / math.pi)
    return 0.5 * x * (1.0 + jnp.tanh(c * (x + 0.044715 * x * x * x)))


def _layernorm(x, gamma, beta, eps):
    mu = jnp.mean(x, axis=-1, keepdims=True)
    var = jnp.mean((x - mu) ** 2, axis=-1, keepdims=True)
    return (x - mu) * jax.lax.rsqrt(var + eps) * gamma + beta


def _bf16(x):
    return x.astype(jnp.bfloat16)


def _matmul(x, w):
    # bf16 MXU operands, f32 accumulation.
    return jnp.dot(_bf16(x), w, preferred_element_type=jnp.float32)


# ------------------------------ fused kernel ----------------------------------

def _fused_forward_kernel(
    # activations / mask
    emb_ref, mask_ref,
    # embedding LayerNorm
    emb_ln_g_ref, emb_ln_b_ref,
    # stacked per-layer encoder weights (leading axis = layer)
    wqkv_ref, bqkv_ref, wo_ref, bo_ref, attn_ln_g_ref, attn_ln_b_ref,
    w1_ref, b1_ref, w2_ref, b2_ref, ffn_ln_g_ref, ffn_ln_b_ref,
    # classification head
    fc1_w_ref, fc1_b_ref, ln1_g_ref, ln1_b_ref,
    fc2_w_ref, fc2_b_ref, ln2_g_ref, ln2_b_ref,
    clf_w_ref, clf_b_ref,
    # output (sublane/lane padded [ROWS, 128])
    o_ref,
    *, num_layers, B, S, nH,
):
    H = emb_ref.shape[-1]
    dh = H // nH
    scale = 1.0 / math.sqrt(dh)

    # BERT embedding LayerNorm (eps=1e-12).
    x = _layernorm(emb_ref[...], emb_ln_g_ref[...], emb_ln_b_ref[...], 1e-12)

    mask = mask_ref[...]  # [B, 1, S] additive mask ((1 - m) * -10000)

    for l in range(num_layers):
        # Fused QKV projection: one [B*S, H] @ [H, 3H] matmul.
        qkv = _matmul(x, wqkv_ref[l]) + bqkv_ref[l]
        # Single wide f32->bf16 cast, hoisted out of the per-head loop.
        qkv_bf = _bf16(qkv)

        # Multi-head attention, batched over the batch axis per head; the
        # per-head context stays a value and is lane-concatenated (no VMEM
        # scratch roundtrip, no masked 16-lane stores).
        ctx_parts = []
        for h in range(nH):
            c0 = h * dh
            q_h = qkv_bf[:, c0:c0 + dh].reshape(B, S, dh)
            k_h = qkv_bf[:, H + c0:H + c0 + dh].reshape(B, S, dh)
            v_h = qkv_bf[:, 2 * H + c0:2 * H + c0 + dh].reshape(B, S, dh)
            scores = jnp.einsum("bqd,bkd->bqk", q_h, k_h,
                                preferred_element_type=jnp.float32) * scale
            scores = scores + mask
            scores = scores - jnp.max(scores, axis=-1, keepdims=True)
            p = jnp.exp(scores)
            p = p * pl.reciprocal(jnp.sum(p, axis=-1, keepdims=True),
                                  approx=True)
            ctx_h = jnp.einsum("bqk,bkd->bqd", _bf16(p), v_h,
                               preferred_element_type=jnp.float32)
            ctx_parts.append(ctx_h.reshape(B * S, dh))
        ctx = jnp.concatenate(ctx_parts, axis=-1)  # [B*S, H]

        # Attention output projection + residual + LayerNorm (eps=1e-12).
        attn_out = _matmul(ctx, wo_ref[l]) + bo_ref[l]
        x = _layernorm(attn_out + x, attn_ln_g_ref[l], attn_ln_b_ref[l], 1e-12)

        # FFN (GELU) + residual + LayerNorm.
        hdn = _gelu(_matmul(x, w1_ref[l]) + b1_ref[l])
        ff = _matmul(hdn, w2_ref[l]) + b2_ref[l]
        x = _layernorm(ff + x, ffn_ln_g_ref[l], ffn_ln_b_ref[l], 1e-12)

    # [CLS] token = row b*S of the flattened [B*S, H] activations, built as a
    # value and zero-padded to a full sublane tile (ROWS rows) so the head
    # matmuls and the final store use unmasked full tiles.
    rows = o_ref.shape[0]
    cls = jnp.concatenate([x[b * S:b * S + 1, :] for b in range(B)], axis=0)
    if rows > B:
        cls = jnp.concatenate(
            [cls, jnp.zeros((rows - B, H), jnp.float32)], axis=0)

    # Classification head (dropout p=0.3 is identity at inference).
    h1 = _gelu(_matmul(cls, fc1_w_ref[...]) + fc1_b_ref[...])
    h1 = _layernorm(h1, ln1_g_ref[...], ln1_b_ref[...], 1e-5)   # nn.LayerNorm default eps
    h2 = _gelu(_matmul(h1, fc2_w_ref[...]) + fc2_b_ref[...])
    h2 = _layernorm(h2, ln2_g_ref[...], ln2_b_ref[...], 1e-5)
    # Lane-dense, sublane-dense logits store ([ROWS, 128]); wrapper slices [:B, :2].
    o_ref[...] = _matmul(h2, clf_w_ref[...]) + clf_b_ref[...]


# ------------------------------ model (glue) ---------------------------------

@partial(jax.jit, static_argnames=("nH",))
def dnabert_promoter_classifier_forward(params, input_ids, attention_mask, *, nH):
    B, S = input_ids.shape
    H = params["word_emb"].shape[1]
    L = params["wqkv"].shape[0]
    rows = ((B + 7) // 8) * 8  # pad logits to a full 8-sublane tile

    # BERT embeddings: gather stays in XLA glue (data-dependent lookup).
    emb = (jnp.take(params["word_emb"], input_ids, axis=0)
           + params["pos_emb"][None, :S, :]
           + params["tok_emb"][0][None, None, :])
    emb = emb.reshape(B * S, H).astype(jnp.float32)

    # HF BERT extended attention mask, additive, stored as [B, 1, S].
    mask_ext = ((1.0 - attention_mask.astype(jnp.float32)) * -10000.0)[:, None, :]

    kernel = partial(_fused_forward_kernel, num_layers=L, B=B, S=S, nH=nH)
    # TODO(synk): for batch inference on v7x, add a "parallel" batch-tile grid
    # axis (dimension_semantics) so both TensorCores are used; gridless here.
    logits_padded = pl.pallas_call(
        kernel,
        out_shape=jax.ShapeDtypeStruct((rows, LANE), jnp.float32),
    )(emb, mask_ext,
      params["emb_ln_g"], params["emb_ln_b"],
      params["wqkv"], params["bqkv"], params["wo"], params["bo"],
      params["attn_ln_g"], params["attn_ln_b"],
      params["w1"], params["b1"], params["w2"], params["b2"],
      params["ffn_ln_g"], params["ffn_ln_b"],
      params["fc1_w"], params["fc1_b"], params["ln1_g"], params["ln1_b"],
      params["fc2_w"], params["fc2_b"], params["ln2_g"], params["ln2_b"],
      params["clf_w"], params["clf_b"])
    return logits_padded[:B, :2]


# ------------------------------- init ----------------------------------------

def init_params(key, *, vocab, max_pos, H, nH, I, L):
    keys = iter(jax.random.split(key, 64))

    def w(shape, scale=0.02, dtype=jnp.bfloat16):
        # Matmul weights stored bf16 (MXU-native); embeddings/LN/biases f32.
        return (scale * jax.random.normal(next(keys), shape)).astype(dtype)

    def zeros(*shape):
        return jnp.zeros(shape, jnp.float32)

    def ones(*shape):
        return jnp.ones(shape, jnp.float32)

    def stack(make):
        return jnp.stack([make() for _ in range(L)], axis=0)

    return dict(
        word_emb=w((vocab, H), dtype=jnp.float32),
        pos_emb=w((max_pos, H), dtype=jnp.float32),
        tok_emb=w((2, H), dtype=jnp.float32),
        emb_ln_g=ones(1, H), emb_ln_b=zeros(1, H),
        # encoder weights, stacked over layers; Q/K/V fused to [H, 3H]
        wqkv=stack(lambda: w((H, 3 * H))),
        bqkv=jnp.zeros((L, 1, 3 * H), jnp.float32),
        wo=stack(lambda: w((H, H))),
        bo=jnp.zeros((L, 1, H), jnp.float32),
        attn_ln_g=jnp.ones((L, 1, H), jnp.float32),
        attn_ln_b=jnp.zeros((L, 1, H), jnp.float32),
        w1=stack(lambda: w((H, I))),
        b1=jnp.zeros((L, 1, I), jnp.float32),
        w2=stack(lambda: w((I, H))),
        b2=jnp.zeros((L, 1, H), jnp.float32),
        ffn_ln_g=jnp.ones((L, 1, H), jnp.float32),
        ffn_ln_b=jnp.zeros((L, 1, H), jnp.float32),
        # classification head (dims fixed by the PyTorch module: H->512->256->2);
        # classifier weight zero-padded to 128 output lanes for a dense store.
        fc1_w=w((H, 512)), fc1_b=zeros(1, 512),
        ln1_g=ones(1, 512), ln1_b=zeros(1, 512),
        fc2_w=w((512, 256)), fc2_b=zeros(1, 256),
        ln2_g=ones(1, 256), ln2_b=zeros(1, 256),
        clf_w=jnp.pad(w((256, 2)), ((0, 0), (0, LANE - 2))),
        clf_b=zeros(1, LANE),
    )


# --------------------------------- main ---------------------------------------

if __name__ == "__main__":
    B, S, H, nH, I, L, V = 2, 8, 32, 2, 64, 2, 32

    key = jax.random.PRNGKey(0)
    k_params, k_ids = jax.random.split(key)

    params = init_params(k_params, vocab=V, max_pos=S, H=H, nH=nH, I=I, L=L)

    input_ids = jax.random.randint(k_ids, (B, S), 0, V, dtype=jnp.int32)
    attention_mask = jnp.ones((B, S), jnp.float32).at[1, 6:].set(0.0)

    logits = dnabert_promoter_classifier_forward(
        params, input_ids, attention_mask, nH=nH)
    jax.block_until_ready(logits)

    assert logits.shape == (B, 2) and logits.dtype == jnp.float32
    assert bool(jnp.all(jnp.isfinite(logits)))
    print("KERNEL_OK")
</pallas_src>

<mosaic_0001>
module attributes {stable_mosaic.version = 11 : i64} {
  func.func @_fused_forward_kernel(%arg0: memref<16x32xf32, #tpu.memory_space<vmem>>, %arg1: memref<2x1x8xf32, #tpu.memory_space<vmem>>, %arg2: memref<1x32xf32, #tpu.memory_space<vmem>>, %arg3: memref<1x32xf32, #tpu.memory_space<vmem>>, %arg4: memref<2x32x96xbf16, #tpu.memory_space<vmem>>, %arg5: memref<2x1x96xf32, #tpu.memory_space<vmem>>, %arg6: memref<2x32x32xbf16, #tpu.memory_space<vmem>>, %arg7: memref<2x1x32xf32, #tpu.memory_space<vmem>>, %arg8: memref<2x1x32xf32, #tpu.memory_space<vmem>>, %arg9: memref<2x1x32xf32, #tpu.memory_space<vmem>>, %arg10: memref<2x32x64xbf16, #tpu.memory_space<vmem>>, %arg11: memref<2x1x64xf32, #tpu.memory_space<vmem>>, %arg12: memref<2x64x32xbf16, #tpu.memory_space<vmem>>, %arg13: memref<2x1x32xf32, #tpu.memory_space<vmem>>, %arg14: memref<2x1x32xf32, #tpu.memory_space<vmem>>, %arg15: memref<2x1x32xf32, #tpu.memory_space<vmem>>, %arg16: memref<32x512xbf16, #tpu.memory_space<vmem>>, %arg17: memref<1x512xf32, #tpu.memory_space<vmem>>, %arg18: memref<1x512xf32, #tpu.memory_space<vmem>>, %arg19: memref<1x512xf32, #tpu.memory_space<vmem>>, %arg20: memref<512x256xbf16, #tpu.memory_space<vmem>>, %arg21: memref<1x256xf32, #tpu.memory_space<vmem>>, %arg22: memref<1x256xf32, #tpu.memory_space<vmem>>, %arg23: memref<1x256xf32, #tpu.memory_space<vmem>>, %arg24: memref<256x128xbf16, #tpu.memory_space<vmem>>, %arg25: memref<1x128xf32, #tpu.memory_space<vmem>>, %arg26: memref<8x128xf32, #tpu.memory_space<vmem>>) attributes {dimension_semantics = [], scalar_prefetch = 0 : i64, scratch_operands = 0 : i64, tpu.core_type = #tpu.core_type<tc>} {
    %c0 = arith.constant 0 : index
    %c0_0 = arith.constant 0 : index
    %0 = vector.load %arg0[%c0, %c0_0] : memref<16x32xf32, #tpu.memory_space<vmem>>, vector<16x32xf32>
    %c0_1 = arith.constant 0 : index
    %c0_2 = arith.constant 0 : index
    %1 = vector.load %arg2[%c0_1, %c0_2] : memref<1x32xf32, #tpu.memory_space<vmem>>, vector<1x32xf32>
    %c0_3 = arith.constant 0 : index
    %c0_4 = arith.constant 0 : index
    %2 = vector.load %arg3[%c0_3, %c0_4] : memref<1x32xf32, #tpu.memory_space<vmem>>, vector<1x32xf32>
    %cst = arith.constant dense<0.000000e+00> : vector<16xf32>
    %3 = vector.multi_reduction <add>, %0, %cst [1] : vector<16x32xf32> to vector<16xf32>
    %4 = vector.shape_cast %3 : vector<16xf32> to vector<16x1xf32>
    %cst_5 = arith.constant 3.200000e+01 : f32
    %5 = vector.broadcast %cst_5 : f32 to vector<16x1xf32>
    %6 = arith.divf %4, %5 : vector<16x1xf32>
    %7 = vector.broadcast %6 : vector<16x1xf32> to vector<16x32xf32>
    %8 = arith.subf %0, %7 : vector<16x32xf32>
    %9 = arith.mulf %8, %8 : vector<16x32xf32>
    %cst_6 = arith.constant dense<0.000000e+00> : vector<16xf32>
    %10 = vector.multi_reduction <add>, %9, %cst_6 [1] : vector<16x32xf32> to vector<16xf32>
    %11 = vector.shape_cast %10 : vector<16xf32> to vector<16x1xf32>
    %cst_7 = arith.constant 3.200000e+01 : f32
    %12 = vector.broadcast %cst_7 : f32 to vector<16x1xf32>
    %13 = arith.divf %11, %12 : vector<16x1xf32>
    %14 = vector.broadcast %6 : vector<16x1xf32> to vector<16x32xf32>
    %15 = arith.subf %0, %14 : vector<16x32xf32>
    %cst_8 = arith.constant 9.99999996E-13 : f32
    %16 = vector.broadcast %cst_8 : f32 to vector<16x1xf32>
    %17 = arith.addf %13, %16 : vector<16x1xf32>
    %18 = math.rsqrt %17 : vector<16x1xf32>
    %19 = vector.broadcast %18 : vector<16x1xf32> to vector<16x32xf32>
    %20 = arith.mulf %15, %19 : vector<16x32xf32>
    %21 = vector.broadcast %1 : vector<1x32xf32> to vector<16x32xf32>
    %22 = arith.mulf %20, %21 : vector<16x32xf32>
    %23 = vector.broadcast %2 : vector<1x32xf32> to vector<16x32xf32>
    %24 = arith.addf %22, %23 : vector<16x32xf32>
    %c0_9 = arith.constant 0 : index
    %c0_10 = arith.constant 0 : index
    %c0_11 = arith.constant 0 : index
    %25 = vector.load %arg1[%c0_9, %c0_10, %c0_11] : memref<2x1x8xf32, #tpu.memory_space<vmem>>, vector<2x1x8xf32>
    %c0_12 = arith.constant 0 : index
    %c0_13 = arith.constant 0 : index
    %c0_14 = arith.constant 0 : index
    %26 = vector.load %arg4[%c0_12, %c0_13, %c0_14] : memref<2x32x96xbf16, #tpu.memory_space<vmem>>, vector<1x32x96xbf16>
    %27 = vector.shape_cast %26 : vector<1x32x96xbf16> to vector<32x96xbf16>
    %28 = arith.truncf %24 : vector<16x32xf32> to vector<16x32xbf16>
    %cst_15 = arith.constant dense<0.000000e+00> : vector<16x96xf32>
    %29 = tpu.matmul %28, %27, %cst_15 {dimension_numbers = #tpu.dot_dimension_numbers<[1], [0], [0], [1], [0, 0, 1, 1], [], []>} : vector<16x32xbf16>, vector<32x96xbf16>, vector<16x96xf32> -> vector<16x96xf32>
    %c0_16 = arith.constant 0 : index
    %c0_17 = arith.constant 0 : index
    %c0_18 = arith.constant 0 : index
    %30 = vector.load %arg5[%c0_16, %c0_17, %c0_18] : memref<2x1x96xf32, #tpu.memory_space<vmem>>, vector<1x1x96xf32>
    %31 = vector.shape_cast %30 : vector<1x1x96xf32> to vector<1x96xf32>
    %32 = vector.broadcast %31 : vector<1x96xf32> to vector<16x96xf32>
    %33 = arith.addf %29, %32 : vector<16x96xf32>
    %34 = arith.truncf %33 : vector<16x96xf32> to vector<16x96xbf16>
    %35 = vector.extract_strided_slice %34 {offsets = [0, 0], sizes = [16, 16], strides = [1, 1]} : vector<16x96xbf16> to vector<16x16xbf16>
    %36 = vector.shape_cast %35 : vector<16x16xbf16> to vector<2x8x16xbf16>
    %37 = vector.extract_strided_slice %34 {offsets = [0, 32], sizes = [16, 16], strides = [1, 1]} : vector<16x96xbf16> to vector<16x16xbf16>
    %38 = vector.shape_cast %37 : vector<16x16xbf16> to vector<2x8x16xbf16>
    %39 = vector.extract_strided_slice %34 {offsets = [0, 64], sizes = [16, 16], strides = [1, 1]} : vector<16x96xbf16> to vector<16x16xbf16>
    %40 = vector.shape_cast %39 : vector<16x16xbf16> to vector<2x8x16xbf16>
    "tpu.trace_start"() <{level = 10 : i32, message = "bqd,bkd->bqk"}> : () -> ()
    %cst_19 = arith.constant dense<0.000000e+00> : vector<2x8x8xf32>
    %41 = tpu.matmul %36, %38, %cst_19 {dimension_numbers = #tpu.dot_dimension_numbers<[2], [2], [1], [1], [0, 0, 0, 1, 1, 1], [0], [0]>} : vector<2x8x16xbf16>, vector<2x8x16xbf16>, vector<2x8x8xf32> -> vector<2x8x8xf32>
    "tpu.trace_stop"() : () -> ()
    %cst_20 = arith.constant 2.500000e-01 : f32
    %42 = vector.broadcast %cst_20 : f32 to vector<2x8x8xf32>
    %43 = arith.mulf %41, %42 : vector<2x8x8xf32>
    %44 = vector.broadcast %25 : vector<2x1x8xf32> to vector<2x8x8xf32>
    %45 = arith.addf %43, %44 : vector<2x8x8xf32>
    %cst_21 = arith.constant dense<0xFF800000> : vector<2x8xf32>
    %46 = vector.multi_reduction <maximumf>, %45, %cst_21 [2] : vector<2x8x8xf32> to vector<2x8xf32>
    %47 = vector.shape_cast %46 : vector<2x8xf32> to vector<2x8x1xf32>
    %48 = vector.broadcast %47 : vector<2x8x1xf32> to vector<2x8x8xf32>
    %49 = arith.subf %45, %48 : vector<2x8x8xf32>
    %50 = math.exp %49 : vector<2x8x8xf32>
    %cst_22 = arith.constant dense<0.000000e+00> : vector<2x8xf32>
    %51 = vector.multi_reduction <add>, %50, %cst_22 [2] : vector<2x8x8xf32> to vector<2x8xf32>
    %52 = vector.shape_cast %51 : vector<2x8xf32> to vector<2x8x1xf32>
    %53 = tpu.reciprocal %52 {approx = true} : vector<2x8x1xf32> -> vector<2x8x1xf32>
    %54 = vector.broadcast %53 : vector<2x8x1xf32> to vector<2x8x8xf32>
    %55 = arith.mulf %50, %54 : vector<2x8x8xf32>
    %56 = arith.truncf %55 : vector<2x8x8xf32> to vector<2x8x8xbf16>
    "tpu.trace_start"() <{level = 10 : i32, message = "bqk,bkd->bqd"}> : () -> ()
    %cst_23 = arith.constant dense<0.000000e+00> : vector<2x8x16xf32>
    %57 = tpu.matmul %56, %40, %cst_23 {dimension_numbers = #tpu.dot_dimension_numbers<[2], [1], [1], [2], [0, 0, 0, 1, 1, 2], [0], [0]>} : vector<2x8x8xbf16>, vector<2x8x16xbf16>, vector<2x8x16xf32> -> vector<2x8x16xf32>
    "tpu.trace_stop"() : () -> ()
    %58 = vector.shape_cast %57 : vector<2x8x16xf32> to vector<16x16xf32>
    %59 = vector.extract_strided_slice %34 {offsets = [0, 16], sizes = [16, 16], strides = [1, 1]} : vector<16x96xbf16> to vector<16x16xbf16>
    %60 = vector.shape_cast %59 : vector<16x16xbf16> to vector<2x8x16xbf16>
    %61 = vector.extract_strided_slice %34 {offsets = [0, 48], sizes = [16, 16], strides = [1, 1]} : vector<16x96xbf16> to vector<16x16xbf16>
    %62 = vector.shape_cast %61 : vector<16x16xbf16> to vector<2x8x16xbf16>
    %63 = vector.extract_strided_slice %34 {offsets = [0, 80], sizes = [16, 16], strides = [1, 1]} : vector<16x96xbf16> to vector<16x16xbf16>
    %64 = vector.shape_cast %63 : vector<16x16xbf16> to vector<2x8x16xbf16>
    "tpu.trace_start"() <{level = 10 : i32, message = "bqd,bkd->bqk"}> : () -> ()
    %cst_24 = arith.constant dense<0.000000e+00> : vector<2x8x8xf32>
    %65 = tpu.matmul %60, %62, %cst_24 {dimension_numbers = #tpu.dot_dimension_numbers<[2], [2], [1], [1], [0, 0, 0, 1, 1, 1], [0], [0]>} : vector<2x8x16xbf16>, vector<2x8x16xbf16>, vector<2x8x8xf32> -> vector<2x8x8xf32>
    "tpu.trace_stop"() : () -> ()
    %cst_25 = arith.constant 2.500000e-01 : f32
    %66 = vector.broadcast %cst_25 : f32 to vector<2x8x8xf32>
    %67 = arith.mulf %65, %66 : vector<2x8x8xf32>
    %68 = vector.broadcast %25 : vector<2x1x8xf32> to vector<2x8x8xf32>
    %69 = arith.addf %67, %68 : vector<2x8x8xf32>
    %cst_26 = arith.constant dense<0xFF800000> : vector<2x8xf32>
    %70 = vector.multi_reduction <maximumf>, %69, %cst_26 [2] : vector<2x8x8xf32> to vector<2x8xf32>
    %71 = vector.shape_cast %70 : vector<2x8xf32> to vector<2x8x1xf32>
    %72 = vector.broadcast %71 : vector<2x8x1xf32> to vector<2x8x8xf32>
    %73 = arith.subf %69, %72 : vector<2x8x8xf32>
    %74 = math.exp %73 : vector<2x8x8xf32>
    %cst_27 = arith.constant dense<0.000000e+00> : vector<2x8xf32>
    %75 = vector.multi_reduction <add>, %74, %cst_27 [2] : vector<2x8x8xf32> to vector<2x8xf32>
    %76 = vector.shape_cast %75 : vector<2x8xf32> to vector<2x8x1xf32>
    %77 = tpu.reciprocal %76 {approx = true} : vector<2x8x1xf32> -> vector<2x8x1xf32>
    %78 = vector.broadcast %77 : vector<2x8x1xf32> to vector<2x8x8xf32>
    %79 = arith.mulf %74, %78 : vector<2x8x8xf32>
    %80 = arith.truncf %79 : vector<2x8x8xf32> to vector<2x8x8xbf16>
    "tpu.trace_start"() <{level = 10 : i32, message = "bqk,bkd->bqd"}> : () -> ()
    %cst_28 = arith.constant dense<0.000000e+00> : vector<2x8x16xf32>
    %81 = tpu.matmul %80, %64, %cst_28 {dimension_numbers = #tpu.dot_dimension_numbers<[2], [1], [1], [2], [0, 0, 0, 1, 1, 2], [0], [0]>} : vector<2x8x8xbf16>, vector<2x8x16xbf16>, vector<2x8x16xf32> -> vector<2x8x16xf32>
    "tpu.trace_stop"() : () -> ()
    %82 = vector.shape_cast %81 : vector<2x8x16xf32> to vector<16x16xf32>
    %83 = tpu.concatenate %58, %82 in 1 : vector<16x16xf32>, vector<16x16xf32> -> vector<16x32xf32>
    %c0_29 = arith.constant 0 : index
    %c0_30 = arith.constant 0 : index
    %c0_31 = arith.constant 0 : index
    %84 = vector.load %arg6[%c0_29, %c0_30, %c0_31] : memref<2x32x32xbf16, #tpu.memory_space<vmem>>, vector<1x32x32xbf16>
    %85 = vector.shape_cast %84 : vector<1x32x32xbf16> to vector<32x32xbf16>
    %86 = arith.truncf %83 : vector<16x32xf32> to vector<16x32xbf16>
    %cst_32 = arith.constant dense<0.000000e+00> : vector<16x32xf32>
    %87 = tpu.matmul %86, %85, %cst_32 {dimension_numbers = #tpu.dot_dimension_numbers<[1], [0], [0], [1], [0, 0, 1, 1], [], []>} : vector<16x32xbf16>, vector<32x32xbf16>, vector<16x32xf32> -> vector<16x32xf32>
    %c0_33 = arith.constant 0 : index
    %c0_34 = arith.constant 0 : index
    %c0_35 = arith.constant 0 : index
    %88 = vector.load %arg7[%c0_33, %c0_34, %c0_35] : memref<2x1x32xf32, #tpu.memory_space<vmem>>, vector<1x1x32xf32>
    %89 = vector.shape_cast %88 : vector<1x1x32xf32> to vector<1x32xf32>
    %90 = vector.broadcast %89 : vector<1x32xf32> to vector<16x32xf32>
    %91 = arith.addf %87, %90 : vector<16x32xf32>
    %92 = arith.addf %91, %24 : vector<16x32xf32>
    %c0_36 = arith.constant 0 : index
    %c0_37 = arith.constant 0 : index
    %c0_38 = arith.constant 0 : index
    %93 = vector.load %arg8[%c0_36, %c0_37, %c0_38] : memref<2x1x32xf32, #tpu.memory_space<vmem>>, vector<1x1x32xf32>
    %94 = vector.shape_cast %93 : vector<1x1x32xf32> to vector<1x32xf32>
    %c0_39 = arith.constant 0 : index
    %c0_40 = arith.constant 0 : index
    %c0_41 = arith.constant 0 : index
    %95 = vector.load %arg9[%c0_39, %c0_40, %c0_41] : memref<2x1x32xf32, #tpu.memory_space<vmem>>, vector<1x1x32xf32>
    %96 = vector.shape_cast %95 : vector<1x1x32xf32> to vector<1x32xf32>
    %cst_42 = arith.constant dense<0.000000e+00> : vector<16xf32>
    %97 = vector.multi_reduction <add>, %92, %cst_42 [1] : vector<16x32xf32> to vector<16xf32>
    %98 = vector.shape_cast %97 : vector<16xf32> to vector<16x1xf32>
    %cst_43 = arith.constant 3.200000e+01 : f32
    %99 = vector.broadcast %cst_43 : f32 to vector<16x1xf32>
    %100 = arith.divf %98, %99 : vector<16x1xf32>
    %101 = vector.broadcast %100 : vector<16x1xf32> to vector<16x32xf32>
    %102 = arith.subf %92, %101 : vector<16x32xf32>
    %103 = arith.mulf %102, %102 : vector<16x32xf32>
    %cst_44 = arith.constant dense<0.000000e+00> : vector<16xf32>
    %104 = vector.multi_reduction <add>, %103, %cst_44 [1] : vector<16x32xf32> to vector<16xf32>
    %105 = vector.shape_cast %104 : vector<16xf32> to vector<16x1xf32>
    %cst_45 = arith.constant 3.200000e+01 : f32
    %106 = vector.broadcast %cst_45 : f32 to vector<16x1xf32>
    %107 = arith.divf %105, %106 : vector<16x1xf32>
    %108 = vector.broadcast %100 : vector<16x1xf32> to vector<16x32xf32>
    %109 = arith.subf %92, %108 : vector<16x32xf32>
    %cst_46 = arith.constant 9.99999996E-13 : f32
    %110 = vector.broadcast %cst_46 : f32 to vector<16x1xf32>
    %111 = arith.addf %107, %110 : vector<16x1xf32>
    %112 = math.rsqrt %111 : vector<16x1xf32>
    %113 = vector.broadcast %112 : vector<16x1xf32> to vector<16x32xf32>
    %114 = arith.mulf %109, %113 : vector<16x32xf32>
    %115 = vector.broadcast %94 : vector<1x32xf32> to vector<16x32xf32>
    %116 = arith.mulf %114, %115 : vector<16x32xf32>
    %117 = vector.broadcast %96 : vector<1x32xf32> to vector<16x32xf32>
    %118 = arith.addf %116, %117 : vector<16x32xf32>
    %c0_47 = arith.constant 0 : index
    %c0_48 = arith.constant 0 : index
    %c0_49 = arith.constant 0 : index
    %119 = vector.load %arg10[%c0_47, %c0_48, %c0_49] : memref<2x32x64xbf16, #tpu.memory_space<vmem>>, vector<1x32x64xbf16>
    %120 = vector.shape_cast %119 : vector<1x32x64xbf16> to vector<32x64xbf16>
    %121 = arith.truncf %118 : vector<16x32xf32> to vector<16x32xbf16>
    %cst_50 = arith.constant dense<0.000000e+00> : vector<16x64xf32>
    %122 = tpu.matmul %121, %120, %cst_50 {dimension_numbers = #tpu.dot_dimension_numbers<[1], [0], [0], [1], [0, 0, 1, 1], [], []>} : vector<16x32xbf16>, vector<32x64xbf16>, vector<16x64xf32> -> vector<16x64xf32>
    %c0_51 = arith.constant 0 : index
    %c0_52 = arith.constant 0 : index
    %c0_53 = arith.constant 0 : index
    %123 = vector.load %arg11[%c0_51, %c0_52, %c0_53] : memref<2x1x64xf32, #tpu.memory_space<vmem>>, vector<1x1x64xf32>
    %124 = vector.shape_cast %123 : vector<1x1x64xf32> to vector<1x64xf32>
    %125 = vector.broadcast %124 : vector<1x64xf32> to vector<16x64xf32>
    %126 = arith.addf %122, %125 : vector<16x64xf32>
    %cst_54 = arith.constant 5.000000e-01 : f32
    %127 = vector.broadcast %cst_54 : f32 to vector<16x64xf32>
    %128 = arith.mulf %127, %126 : vector<16x64xf32>
    %cst_55 = arith.constant 4.471500e-02 : f32
    %129 = vector.broadcast %cst_55 : f32 to vector<16x64xf32>
    %130 = arith.mulf %129, %126 : vector<16x64xf32>
    %131 = arith.mulf %130, %126 : vector<16x64xf32>
    %132 = arith.mulf %131, %126 : vector<16x64xf32>
    %133 = arith.addf %126, %132 : vector<16x64xf32>
    %cst_56 = arith.constant 0.797884583 : f32
    %134 = vector.broadcast %cst_56 : f32 to vector<16x64xf32>
    %135 = arith.mulf %134, %133 : vector<16x64xf32>
    %136 = math.tanh %135 : vector<16x64xf32>
    %cst_57 = arith.constant 1.000000e+00 : f32
    %137 = vector.broadcast %cst_57 : f32 to vector<16x64xf32>
    %138 = arith.addf %137, %136 : vector<16x64xf32>
    %139 = arith.mulf %128, %138 : vector<16x64xf32>
    %c0_58 = arith.constant 0 : index
    %c0_59 = arith.constant 0 : index
    %c0_60 = arith.constant 0 : index
    %140 = vector.load %arg12[%c0_58, %c0_59, %c0_60] : memref<2x64x32xbf16, #tpu.memory_space<vmem>>, vector<1x64x32xbf16>
    %141 = vector.shape_cast %140 : vector<1x64x32xbf16> to vector<64x32xbf16>
    %142 = arith.truncf %139 : vector<16x64xf32> to vector<16x64xbf16>
    %cst_61 = arith.constant dense<0.000000e+00> : vector<16x32xf32>
    %143 = tpu.matmul %142, %141, %cst_61 {dimension_numbers = #tpu.dot_dimension_numbers<[1], [0], [0], [1], [0, 0, 1, 1], [], []>} : vector<16x64xbf16>, vector<64x32xbf16>, vector<16x32xf32> -> vector<16x32xf32>
    %c0_62 = arith.constant 0 : index
    %c0_63 = arith.constant 0 : index
    %c0_64 = arith.constant 0 : index
    %144 = vector.load %arg13[%c0_62, %c0_63, %c0_64] : memref<2x1x32xf32, #tpu.memory_space<vmem>>, vector<1x1x32xf32>
    %145 = vector.shape_cast %144 : vector<1x1x32xf32> to vector<1x32xf32>
    %146 = vector.broadcast %145 : vector<1x32xf32> to vector<16x32xf32>
    %147 = arith.addf %143, %146 : vector<16x32xf32>
    %148 = arith.addf %147, %118 : vector<16x32xf32>
    %c0_65 = arith.constant 0 : index
    %c0_66 = arith.constant 0 : index
    %c0_67 = arith.constant 0 : index
    %149 = vector.load %arg14[%c0_65, %c0_66, %c0_67] : memref<2x1x32xf32, #tpu.memory_space<vmem>>, vector<1x1x32xf32>
    %150 = vector.shape_cast %149 : vector<1x1x32xf32> to vector<1x32xf32>
    %c0_68 = arith.constant 0 : index
    %c0_69 = arith.constant 0 : index
    %c0_70 = arith.constant 0 : index
    %151 = vector.load %arg15[%c0_68, %c0_69, %c0_70] : memref<2x1x32xf32, #tpu.memory_space<vmem>>, vector<1x1x32xf32>
    %152 = vector.shape_cast %151 : vector<1x1x32xf32> to vector<1x32xf32>
    %cst_71 = arith.constant dense<0.000000e+00> : vector<16xf32>
    %153 = vector.multi_reduction <add>, %148, %cst_71 [1] : vector<16x32xf32> to vector<16xf32>
    %154 = vector.shape_cast %153 : vector<16xf32> to vector<16x1xf32>
    %cst_72 = arith.constant 3.200000e+01 : f32
    %155 = vector.broadcast %cst_72 : f32 to vector<16x1xf32>
    %156 = arith.divf %154, %155 : vector<16x1xf32>
    %157 = vector.broadcast %156 : vector<16x1xf32> to vector<16x32xf32>
    %158 = arith.subf %148, %157 : vector<16x32xf32>
    %159 = arith.mulf %158, %158 : vector<16x32xf32>
    %cst_73 = arith.constant dense<0.000000e+00> : vector<16xf32>
    %160 = vector.multi_reduction <add>, %159, %cst_73 [1] : vector<16x32xf32> to vector<16xf32>
    %161 = vector.shape_cast %160 : vector<16xf32> to vector<16x1xf32>
    %cst_74 = arith.constant 3.200000e+01 : f32
    %162 = vector.broadcast %cst_74 : f32 to vector<16x1xf32>
    %163 = arith.divf %161, %162 : vector<16x1xf32>
    %164 = vector.broadcast %156 : vector<16x1xf32> to vector<16x32xf32>
    %165 = arith.subf %148, %164 : vector<16x32xf32>
    %cst_75 = arith.constant 9.99999996E-13 : f32
    %166 = vector.broadcast %cst_75 : f32 to vector<16x1xf32>
    %167 = arith.addf %163, %166 : vector<16x1xf32>
    %168 = math.rsqrt %167 : vector<16x1xf32>
    %169 = vector.broadcast %168 : vector<16x1xf32> to vector<16x32xf32>
    %170 = arith.mulf %165, %169 : vector<16x32xf32>
    %171 = vector.broadcast %150 : vector<1x32xf32> to vector<16x32xf32>
    %172 = arith.mulf %170, %171 : vector<16x32xf32>
    %173 = vector.broadcast %152 : vector<1x32xf32> to vector<16x32xf32>
    %174 = arith.addf %172, %173 : vector<16x32xf32>
    %c1 = arith.constant 1 : index
    %c0_76 = arith.constant 0 : index
    %c0_77 = arith.constant 0 : index
    %175 = vector.load %arg4[%c1, %c0_76, %c0_77] : memref<2x32x96xbf16, #tpu.memory_space<vmem>>, vector<1x32x96xbf16>
    %176 = vector.shape_cast %175 : vector<1x32x96xbf16> to vector<32x96xbf16>
    %177 = arith.truncf %174 : vector<16x32xf32> to vector<16x32xbf16>
    %cst_78 = arith.constant dense<0.000000e+00> : vector<16x96xf32>
    %178 = tpu.matmul %177, %176, %cst_78 {dimension_numbers = #tpu.dot_dimension_numbers<[1], [0], [0], [1], [0, 0, 1, 1], [], []>} : vector<16x32xbf16>, vector<32x96xbf16>, vector<16x96xf32> -> vector<16x96xf32>
    %c1_79 = arith.constant 1 : index
    %c0_80 = arith.constant 0 : index
    %c0_81 = arith.constant 0 : index
    %179 = vector.load %arg5[%c1_79, %c0_80, %c0_81] : memref<2x1x96xf32, #tpu.memory_space<vmem>>, vector<1x1x96xf32>
    %180 = vector.shape_cast %179 : vector<1x1x96xf32> to vector<1x96xf32>
    %181 = vector.broadcast %180 : vector<1x96xf32> to vector<16x96xf32>
    %182 = arith.addf %178, %181 : vector<16x96xf32>
    %183 = arith.truncf %182 : vector<16x96xf32> to vector<16x96xbf16>
    %184 = vector.extract_strided_slice %183 {offsets = [0, 0], sizes = [16, 16], strides = [1, 1]} : vector<16x96xbf16> to vector<16x16xbf16>
    %185 = vector.shape_cast %184 : vector<16x16xbf16> to vector<2x8x16xbf16>
    %186 = vector.extract_strided_slice %183 {offsets = [0, 32], sizes = [16, 16], strides = [1, 1]} : vector<16x96xbf16> to vector<16x16xbf16>
    %187 = vector.shape_cast %186 : vector<16x16xbf16> to vector<2x8x16xbf16>
    %188 = vector.extract_strided_slice %183 {offsets = [0, 64], sizes = [16, 16], strides = [1, 1]} : vector<16x96xbf16> to vector<16x16xbf16>
    %189 = vector.shape_cast %188 : vector<16x16xbf16> to vector<2x8x16xbf16>
    "tpu.trace_start"() <{level = 10 : i32, message = "bqd,bkd->bqk"}> : () -> ()
    %cst_82 = arith.constant dense<0.000000e+00> : vector<2x8x8xf32>
    %190 = tpu.matmul %185, %187, %cst_82 {dimension_numbers = #tpu.dot_dimension_numbers<[2], [2], [1], [1], [0, 0, 0, 1, 1, 1], [0], [0]>} : vector<2x8x16xbf16>, vector<2x8x16xbf16>, vector<2x8x8xf32> -> vector<2x8x8xf32>
    "tpu.trace_stop"() : () -> ()
    %cst_83 = arith.constant 2.500000e-01 : f32
    %191 = vector.broadcast %cst_83 : f32 to vector<2x8x8xf32>
    %192 = arith.mulf %190, %191 : vector<2x8x8xf32>
    %193 = vector.broadcast %25 : vector<2x1x8xf32> to vector<2x8x8xf32>
    %194 = arith.addf %192, %193 : vector<2x8x8xf32>
    %cst_84 = arith.constant dense<0xFF800000> : vector<2x8xf32>
    %195 = vector.multi_reduction <maximumf>, %194, %cst_84 [2] : vector<2x8x8xf32> to vector<2x8xf32>
    %196 = vector.shape_cast %195 : vector<2x8xf32> to vector<2x8x1xf32>
    %197 = vector.broadcast %196 : vector<2x8x1xf32> to vector<2x8x8xf32>
    %198 = arith.subf %194, %197 : vector<2x8x8xf32>
    %199 = math.exp %198 : vector<2x8x8xf32>
    %cst_85 = arith.constant dense<0.000000e+00> : vector<2x8xf32>
    %200 = vector.multi_reduction <add>, %199, %cst_85 [2] : vector<2x8x8xf32> to vector<2x8xf32>
    %201 = vector.shape_cast %200 : vector<2x8xf32> to vector<2x8x1xf32>
    %202 = tpu.reciprocal %201 {approx = true} : vector<2x8x1xf32> -> vector<2x8x1xf32>
    %203 = vector.broadcast %202 : vector<2x8x1xf32> to vector<2x8x8xf32>
    %204 = arith.mulf %199, %203 : vector<2x8x8xf32>
    %205 = arith.truncf %204 : vector<2x8x8xf32> to vector<2x8x8xbf16>
    "tpu.trace_start"() <{level = 10 : i32, message = "bqk,bkd->bqd"}> : () -> ()
    %cst_86 = arith.constant dense<0.000000e+00> : vector<2x8x16xf32>
    %206 = tpu.matmul %205, %189, %cst_86 {dimension_numbers = #tpu.dot_dimension_numbers<[2], [1], [1], [2], [0, 0, 0, 1, 1, 2], [0], [0]>} : vector<2x8x8xbf16>, vector<2x8x16xbf16>, vector<2x8x16xf32> -> vector<2x8x16xf32>
    "tpu.trace_stop"() : () -> ()
    %207 = vector.shape_cast %206 : vector<2x8x16xf32> to vector<16x16xf32>
    %208 = vector.extract_strided_slice %183 {offsets = [0, 16], sizes = [16, 16], strides = [1, 1]} : vector<16x96xbf16> to vector<16x16xbf16>
    %209 = vector.shape_cast %208 : vector<16x16xbf16> to vector<2x8x16xbf16>
    %210 = vector.extract_strided_slice %183 {offsets = [0, 48], sizes = [16, 16], strides = [1, 1]} : vector<16x96xbf16> to vector<16x16xbf16>
    %211 = vector.shape_cast %210 : vector<16x16xbf16> to vector<2x8x16xbf16>
    %212 = vector.extract_strided_slice %183 {offsets = [0, 80], sizes = [16, 16], strides = [1, 1]} : vector<16x96xbf16> to vector<16x16xbf16>
    %213 = vector.shape_cast %212 : vector<16x16xbf16> to vector<2x8x16xbf16>
    "tpu.trace_start"() <{level = 10 : i32, message = "bqd,bkd->bqk"}> : () -> ()
    %cst_87 = arith.constant dense<0.000000e+00> : vector<2x8x8xf32>
    %214 = tpu.matmul %209, %211, %cst_87 {dimension_numbers = #tpu.dot_dimension_numbers<[2], [2], [1], [1], [0, 0, 0, 1, 1, 1], [0], [0]>} : vector<2x8x16xbf16>, vector<2x8x16xbf16>, vector<2x8x8xf32> -> vector<2x8x8xf32>
    "tpu.trace_stop"() : () -> ()
    %cst_88 = arith.constant 2.500000e-01 : f32
    %215 = vector.broadcast %cst_88 : f32 to vector<2x8x8xf32>
    %216 = arith.mulf %214, %215 : vector<2x8x8xf32>
    %217 = vector.broadcast %25 : vector<2x1x8xf32> to vector<2x8x8xf32>
    %218 = arith.addf %216, %217 : vector<2x8x8xf32>
    %cst_89 = arith.constant dense<0xFF800000> : vector<2x8xf32>
    %219 = vector.multi_reduction <maximumf>, %218, %cst_89 [2] : vector<2x8x8xf32> to vector<2x8xf32>
    %220 = vector.shape_cast %219 : vector<2x8xf32> to vector<2x8x1xf32>
    %221 = vector.broadcast %220 : vector<2x8x1xf32> to vector<2x8x8xf32>
    %222 = arith.subf %218, %221 : vector<2x8x8xf32>
    %223 = math.exp %222 : vector<2x8x8xf32>
    %cst_90 = arith.constant dense<0.000000e+00> : vector<2x8xf32>
    %224 = vector.multi_reduction <add>, %223, %cst_90 [2] : vector<2x8x8xf32> to vector<2x8xf32>
    %225 = vector.shape_cast %224 : vector<2x8xf32> to vector<2x8x1xf32>
    %226 = tpu.reciprocal %225 {approx = true} : vector<2x8x1xf32> -> vector<2x8x1xf32>
    %227 = vector.broadcast %226 : vector<2x8x1xf32> to vector<2x8x8xf32>
    %228 = arith.mulf %223, %227 : vector<2x8x8xf32>
    %229 = arith.truncf %228 : vector<2x8x8xf32> to vector<2x8x8xbf16>
    "tpu.trace_start"() <{level = 10 : i32, message = "bqk,bkd->bqd"}> : () -> ()
    %cst_91 = arith.constant dense<0.000000e+00> : vector<2x8x16xf32>
    %230 = tpu.matmul %229, %213, %cst_91 {dimension_numbers = #tpu.dot_dimension_numbers<[2], [1], [1], [2], [0, 0, 0, 1, 1, 2], [0], [0]>} : vector<2x8x8xbf16>, vector<2x8x16xbf16>, vector<2x8x16xf32> -> vector<2x8x16xf32>
    "tpu.trace_stop"() : () -> ()
    %231 = vector.shape_cast %230 : vector<2x8x16xf32> to vector<16x16xf32>
    %232 = tpu.concatenate %207, %231 in 1 : vector<16x16xf32>, vector<16x16xf32> -> vector<16x32xf32>
    %c1_92 = arith.constant 1 : index
    %c0_93 = arith.constant 0 : index
    %c0_94 = arith.constant 0 : index
    %233 = vector.load %arg6[%c1_92, %c0_93, %c0_94] : memref<2x32x32xbf16, #tpu.memory_space<vmem>>, vector<1x32x32xbf16>
    %234 = vector.shape_cast %233 : vector<1x32x32xbf16> to vector<32x32xbf16>
    %235 = arith.truncf %232 : vector<16x32xf32> to vector<16x32xbf16>
    %cst_95 = arith.constant dense<0.000000e+00> : vector<16x32xf32>
    %236 = tpu.matmul %235, %234, %cst_95 {dimension_numbers = #tpu.dot_dimension_numbers<[1], [0], [0], [1], [0, 0, 1, 1], [], []>} : vector<16x32xbf16>, vector<32x32xbf16>, vector<16x32xf32> -> vector<16x32xf32>
    %c1_96 = arith.constant 1 : index
    %c0_97 = arith.constant 0 : index
    %c0_98 = arith.constant 0 : index
    %237 = vector.load %arg7[%c1_96, %c0_97, %c0_98] : memref<2x1x32xf32, #tpu.memory_space<vmem>>, vector<1x1x32xf32>
    %238 = vector.shape_cast %237 : vector<1x1x32xf32> to vector<1x32xf32>
    %239 = vector.broadcast %238 : vector<1x32xf32> to vector<16x32xf32>
    %240 = arith.addf %236, %239 : vector<16x32xf32>
    %241 = arith.addf %240, %174 : vector<16x32xf32>
    %c1_99 = arith.constant 1 : index
    %c0_100 = arith.constant 0 : index
    %c0_101 = arith.constant 0 : index
    %242 = vector.load %arg8[%c1_99, %c0_100, %c0_101] : memref<2x1x32xf32, #tpu.memory_space<vmem>>, vector<1x1x32xf32>
    %243 = vector.shape_cast %242 : vector<1x1x32xf32> to vector<1x32xf32>
    %c1_102 = arith.constant 1 : index
    %c0_103 = arith.constant 0 : index
    %c0_104 = arith.constant 0 : index
    %244 = vector.load %arg9[%c1_102, %c0_103, %c0_104] : memref<2x1x32xf32, #tpu.memory_space<vmem>>, vector<1x1x32xf32>
    %245 = vector.shape_cast %244 : vector<1x1x32xf32> to vector<1x32xf32>
    %cst_105 = arith.constant dense<0.000000e+00> : vector<16xf32>
    %246 = vector.multi_reduction <add>, %241, %cst_105 [1] : vector<16x32xf32> to vector<16xf32>
    %247 = vector.shape_cast %246 : vector<16xf32> to vector<16x1xf32>
    %cst_106 = arith.constant 3.200000e+01 : f32
    %248 = vector.broadcast %cst_106 : f32 to vector<16x1xf32>
    %249 = arith.divf %247, %248 : vector<16x1xf32>
    %250 = vector.broadcast %249 : vector<16x1xf32> to vector<16x32xf32>
    %251 = arith.subf %241, %250 : vector<16x32xf32>
    %252 = arith.mulf %251, %251 : vector<16x32xf32>
    %cst_107 = arith.constant dense<0.000000e+00> : vector<16xf32>
    %253 = vector.multi_reduction <add>, %252, %cst_107 [1] : vector<16x32xf32> to vector<16xf32>
    %254 = vector.shape_cast %253 : vector<16xf32> to vector<16x1xf32>
    %cst_108 = arith.constant 3.200000e+01 : f32
    %255 = vector.broadcast %cst_108 : f32 to vector<16x1xf32>
    %256 = arith.divf %254, %255 : vector<16x1xf32>
    %257 = vector.broadcast %249 : vector<16x1xf32> to vector<16x32xf32>
    %258 = arith.subf %241, %257 : vector<16x32xf32>
    %cst_109 = arith.constant 9.99999996E-13 : f32
    %259 = vector.broadcast %cst_109 : f32 to vector<16x1xf32>
    %260 = arith.addf %256, %259 : vector<16x1xf32>
    %261 = math.rsqrt %260 : vector<16x1xf32>
    %262 = vector.broadcast %261 : vector<16x1xf32> to vector<16x32xf32>
    %263 = arith.mulf %258, %262 : vector<16x32xf32>
    %264 = vector.broadcast %243 : vector<1x32xf32> to vector<16x32xf32>
    %265 = arith.mulf %263, %264 : vector<16x32xf32>
    %266 = vector.broadcast %245 : vector<1x32xf32> to vector<16x32xf32>
    %267 = arith.addf %265, %266 : vector<16x32xf32>
    %c1_110 = arith.constant 1 : index
    %c0_111 = arith.constant 0 : index
    %c0_112 = arith.constant 0 : index
    %268 = vector.load %arg10[%c1_110, %c0_111, %c0_112] : memref<2x32x64xbf16, #tpu.memory_space<vmem>>, vector<1x32x64xbf16>
    %269 = vector.shape_cast %268 : vector<1x32x64xbf16> to vector<32x64xbf16>
    %270 = arith.truncf %267 : vector<16x32xf32> to vector<16x32xbf16>
    %cst_113 = arith.constant dense<0.000000e+00> : vector<16x64xf32>
    %271 = tpu.matmul %270, %269, %cst_113 {dimension_numbers = #tpu.dot_dimension_numbers<[1], [0], [0], [1], [0, 0, 1, 1], [], []>} : vector<16x32xbf16>, vector<32x64xbf16>, vector<16x64xf32> -> vector<16x64xf32>
    %c1_114 = arith.constant 1 : index
    %c0_115 = arith.constant 0 : index
    %c0_116 = arith.constant 0 : index
    %272 = vector.load %arg11[%c1_114, %c0_115, %c0_116] : memref<2x1x64xf32, #tpu.memory_space<vmem>>, vector<1x1x64xf32>
    %273 = vector.shape_cast %272 : vector<1x1x64xf32> to vector<1x64xf32>
    %274 = vector.broadcast %273 : vector<1x64xf32> to vector<16x64xf32>
    %275 = arith.addf %271, %274 : vector<16x64xf32>
    %cst_117 = arith.constant 5.000000e-01 : f32
    %276 = vector.broadcast %cst_117 : f32 to vector<16x64xf32>
    %277 = arith.mulf %276, %275 : vector<16x64xf32>
    %cst_118 = arith.constant 4.471500e-02 : f32
    %278 = vector.broadcast %cst_118 : f32 to vector<16x64xf32>
    %279 = arith.mulf %278, %275 : vector<16x64xf32>
    %280 = arith.mulf %279, %275 : vector<16x64xf32>
    %281 = arith.mulf %280, %275 : vector<16x64xf32>
    %282 = arith.addf %275, %281 : vector<16x64xf32>
    %cst_119 = arith.constant 0.797884583 : f32
    %283 = vector.broadcast %cst_119 : f32 to vector<16x64xf32>
    %284 = arith.mulf %283, %282 : vector<16x64xf32>
    %285 = math.tanh %284 : vector<16x64xf32>
    %cst_120 = arith.constant 1.000000e+00 : f32
    %286 = vector.broadcast %cst_120 : f32 to vector<16x64xf32>
    %287 = arith.addf %286, %285 : vector<16x64xf32>
    %288 = arith.mulf %277, %287 : vector<16x64xf32>
    %c1_121 = arith.constant 1 : index
    %c0_122 = arith.constant 0 : index
    %c0_123 = arith.constant 0 : index
    %289 = vector.load %arg12[%c1_121, %c0_122, %c0_123] : memref<2x64x32xbf16, #tpu.memory_space<vmem>>, vector<1x64x32xbf16>
    %290 = vector.shape_cast %289 : vector<1x64x32xbf16> to vector<64x32xbf16>
    %291 = arith.truncf %288 : vector<16x64xf32> to vector<16x64xbf16>
    %cst_124 = arith.constant dense<0.000000e+00> : vector<16x32xf32>
    %292 = tpu.matmul %291, %290, %cst_124 {dimension_numbers = #tpu.dot_dimension_numbers<[1], [0], [0], [1], [0, 0, 1, 1], [], []>} : vector<16x64xbf16>, vector<64x32xbf16>, vector<16x32xf32> -> vector<16x32xf32>
    %c1_125 = arith.constant 1 : index
    %c0_126 = arith.constant 0 : index
    %c0_127 = arith.constant 0 : index
    %293 = vector.load %arg13[%c1_125, %c0_126, %c0_127] : memref<2x1x32xf32, #tpu.memory_space<vmem>>, vector<1x1x32xf32>
    %294 = vector.shape_cast %293 : vector<1x1x32xf32> to vector<1x32xf32>
    %295 = vector.broadcast %294 : vector<1x32xf32> to vector<16x32xf32>
    %296 = arith.addf %292, %295 : vector<16x32xf32>
    %297 = arith.addf %296, %267 : vector<16x32xf32>
    %c1_128 = arith.constant 1 : index
    %c0_129 = arith.constant 0 : index
    %c0_130 = arith.constant 0 : index
    %298 = vector.load %arg14[%c1_128, %c0_129, %c0_130] : memref<2x1x32xf32, #tpu.memory_space<vmem>>, vector<1x1x32xf32>
    %299 = vector.shape_cast %298 : vector<1x1x32xf32> to vector<1x32xf32>
    %c1_131 = arith.constant 1 : index
    %c0_132 = arith.constant 0 : index
    %c0_133 = arith.constant 0 : index
    %300 = vector.load %arg15[%c1_131, %c0_132, %c0_133] : memref<2x1x32xf32, #tpu.memory_space<vmem>>, vector<1x1x32xf32>
    %301 = vector.shape_cast %300 : vector<1x1x32xf32> to vector<1x32xf32>
    %cst_134 = arith.constant dense<0.000000e+00> : vector<16xf32>
    %302 = vector.multi_reduction <add>, %297, %cst_134 [1] : vector<16x32xf32> to vector<16xf32>
    %303 = vector.shape_cast %302 : vector<16xf32> to vector<16x1xf32>
    %cst_135 = arith.constant 3.200000e+01 : f32
    %304 = vector.broadcast %cst_135 : f32 to vector<16x1xf32>
    %305 = arith.divf %303, %304 : vector<16x1xf32>
    %306 = vector.broadcast %305 : vector<16x1xf32> to vector<16x32xf32>
    %307 = arith.subf %297, %306 : vector<16x32xf32>
    %308 = arith.mulf %307, %307 : vector<16x32xf32>
    %cst_136 = arith.constant dense<0.000000e+00> : vector<16xf32>
    %309 = vector.multi_reduction <add>, %308, %cst_136 [1] : vector<16x32xf32> to vector<16xf32>
    %310 = vector.shape_cast %309 : vector<16xf32> to vector<16x1xf32>
    %cst_137 = arith.constant 3.200000e+01 : f32
    %311 = vector.broadcast %cst_137 : f32 to vector<16x1xf32>
    %312 = arith.divf %310, %311 : vector<16x1xf32>
    %313 = vector.broadcast %305 : vector<16x1xf32> to vector<16x32xf32>
    %314 = arith.subf %297, %313 : vector<16x32xf32>
    %cst_138 = arith.constant 9.99999996E-13 : f32
    %315 = vector.broadcast %cst_138 : f32 to vector<16x1xf32>
    %316 = arith.addf %312, %315 : vector<16x1xf32>
    %317 = math.rsqrt %316 : vector<16x1xf32>
    %318 = vector.broadcast %317 : vector<16x1xf32> to vector<16x32xf32>
    %319 = arith.mulf %314, %318 : vector<16x32xf32>
    %320 = vector.broadcast %299 : vector<1x32xf32> to vector<16x32xf32>
    %321 = arith.mulf %319, %320 : vector<16x32xf32>
    %322 = vector.broadcast %301 : vector<1x32xf32> to vector<16x32xf32>
    %323 = arith.addf %321, %322 : vector<16x32xf32>
    %324 = vector.extract_strided_slice %323 {offsets = [0, 0], sizes = [1, 32], strides = [1, 1]} : vector<16x32xf32> to vector<1x32xf32>
    %325 = vector.extract_strided_slice %323 {offsets = [8, 0], sizes = [1, 32], strides = [1, 1]} : vector<16x32xf32> to vector<1x32xf32>
    %326 = tpu.concatenate %324, %325 in 0 : vector<1x32xf32>, vector<1x32xf32> -> vector<2x32xf32>
    %cst_139 = arith.constant 0.000000e+00 : f32
    %327 = vector.broadcast %cst_139 : f32 to vector<6x32xf32>
    %328 = tpu.concatenate %326, %327 in 0 : vector<2x32xf32>, vector<6x32xf32> -> vector<8x32xf32>
    %c0_140 = arith.constant 0 : index
    %c0_141 = arith.constant 0 : index
    %329 = vector.load %arg16[%c0_140, %c0_141] : memref<32x512xbf16, #tpu.memory_space<vmem>>, vector<32x512xbf16>
    %330 = arith.truncf %328 : vector<8x32xf32> to vector<8x32xbf16>
    %cst_142 = arith.constant dense<0.000000e+00> : vector<8x512xf32>
    %331 = tpu.matmul %330, %329, %cst_142 {dimension_numbers = #tpu.dot_dimension_numbers<[1], [0], [0], [1], [0, 0, 1, 1], [], []>} : vector<8x32xbf16>, vector<32x512xbf16>, vector<8x512xf32> -> vector<8x512xf32>
    %c0_143 = arith.constant 0 : index
    %c0_144 = arith.constant 0 : index
    %332 = vector.load %arg17[%c0_143, %c0_144] : memref<1x512xf32, #tpu.memory_space<vmem>>, vector<1x512xf32>
    %333 = vector.broadcast %332 : vector<1x512xf32> to vector<8x512xf32>
    %334 = arith.addf %331, %333 : vector<8x512xf32>
    %cst_145 = arith.constant 5.000000e-01 : f32
    %335 = vector.broadcast %cst_145 : f32 to vector<8x512xf32>
    %336 = arith.mulf %335, %334 : vector<8x512xf32>
    %cst_146 = arith.constant 4.471500e-02 : f32
    %337 = vector.broadcast %cst_146 : f32 to vector<8x512xf32>
    %338 = arith.mulf %337, %334 : vector<8x512xf32>
    %339 = arith.mulf %338, %334 : vector<8x512xf32>
    %340 = arith.mulf %339, %334 : vector<8x512xf32>
    %341 = arith.addf %334, %340 : vector<8x512xf32>
    %cst_147 = arith.constant 0.797884583 : f32
    %342 = vector.broadcast %cst_147 : f32 to vector<8x512xf32>
    %343 = arith.mulf %342, %341 : vector<8x512xf32>
    %344 = math.tanh %343 : vector<8x512xf32>
    %cst_148 = arith.constant 1.000000e+00 : f32
    %345 = vector.broadcast %cst_148 : f32 to vector<8x512xf32>
    %346 = arith.addf %345, %344 : vector<8x512xf32>
    %347 = arith.mulf %336, %346 : vector<8x512xf32>
    %c0_149 = arith.constant 0 : index
    %c0_150 = arith.constant 0 : index
    %348 = vector.load %arg18[%c0_149, %c0_150] : memref<1x512xf32, #tpu.memory_space<vmem>>, vector<1x512xf32>
    %c0_151 = arith.constant 0 : index
    %c0_152 = arith.constant 0 : index
    %349 = vector.load %arg19[%c0_151, %c0_152] : memref<1x512xf32, #tpu.memory_space<vmem>>, vector<1x512xf32>
    %cst_153 = arith.constant dense<0.000000e+00> : vector<8xf32>
    %350 = vector.multi_reduction <add>, %347, %cst_153 [1] : vector<8x512xf32> to vector<8xf32>
    %351 = vector.shape_cast %350 : vector<8xf32> to vector<8x1xf32>
    %cst_154 = arith.constant 5.120000e+02 : f32
    %352 = vector.broadcast %cst_154 : f32 to vector<8x1xf32>
    %353 = arith.divf %351, %352 : vector<8x1xf32>
    %354 = vector.broadcast %353 : vector<8x1xf32> to vector<8x512xf32>
    %355 = arith.subf %347, %354 : vector<8x512xf32>
    %356 = arith.mulf %355, %355 : vector<8x512xf32>
    %cst_155 = arith.constant dense<0.000000e+00> : vector<8xf32>
    %357 = vector.multi_reduction <add>, %356, %cst_155 [1] : vector<8x512xf32> to vector<8xf32>
    %358 = vector.shape_cast %357 : vector<8xf32> to vector<8x1xf32>
    %cst_156 = arith.constant 5.120000e+02 : f32
    %359 = vector.broadcast %cst_156 : f32 to vector<8x1xf32>
    %360 = arith.divf %358, %359 : vector<8x1xf32>
    %361 = vector.broadcast %353 : vector<8x1xf32> to vector<8x512xf32>
    %362 = arith.subf %347, %361 : vector<8x512xf32>
    %cst_157 = arith.constant 9.99999974E-6 : f32
    %363 = vector.broadcast %cst_157 : f32 to vector<8x1xf32>
    %364 = arith.addf %360, %363 : vector<8x1xf32>
    %365 = math.rsqrt %364 : vector<8x1xf32>
    %366 = vector.broadcast %365 : vector<8x1xf32> to vector<8x512xf32>
    %367 = arith.mulf %362, %366 : vector<8x512xf32>
    %368 = vector.broadcast %348 : vector<1x512xf32> to vector<8x512xf32>
    %369 = arith.mulf %367, %368 : vector<8x512xf32>
    %370 = vector.broadcast %349 : vector<1x512xf32> to vector<8x512xf32>
    %371 = arith.addf %369, %370 : vector<8x512xf32>
    %c0_158 = arith.constant 0 : index
    %c0_159 = arith.constant 0 : index
    %372 = vector.load %arg20[%c0_158, %c0_159] : memref<512x256xbf16, #tpu.memory_space<vmem>>, vector<512x256xbf16>
    %373 = arith.truncf %371 : vector<8x512xf32> to vector<8x512xbf16>
    %cst_160 = arith.constant dense<0.000000e+00> : vector<8x256xf32>
    %374 = tpu.matmul %373, %372, %cst_160 {dimension_numbers = #tpu.dot_dimension_numbers<[1], [0], [0], [1], [0, 0, 1, 1], [], []>} : vector<8x512xbf16>, vector<512x256xbf16>, vector<8x256xf32> -> vector<8x256xf32>
    %c0_161 = arith.constant 0 : index
    %c0_162 = arith.constant 0 : index
    %375 = vector.load %arg21[%c0_161, %c0_162] : memref<1x256xf32, #tpu.memory_space<vmem>>, vector<1x256xf32>
    %376 = vector.broadcast %375 : vector<1x256xf32> to vector<8x256xf32>
    %377 = arith.addf %374, %376 : vector<8x256xf32>
    %cst_163 = arith.constant 5.000000e-01 : f32
    %378 = vector.broadcast %cst_163 : f32 to vector<8x256xf32>
    %379 = arith.mulf %378, %377 : vector<8x256xf32>
    %cst_164 = arith.constant 4.471500e-02 : f32
    %380 = vector.broadcast %cst_164 : f32 to vector<8x256xf32>
    %381 = arith.mulf %380, %377 : vector<8x256xf32>
    %382 = arith.mulf %381, %377 : vector<8x256xf32>
    %383 = arith.mulf %382, %377 : vector<8x256xf32>
    %384 = arith.addf %377, %383 : vector<8x256xf32>
    %cst_165 = arith.constant 0.797884583 : f32
    %385 = vector.broadcast %cst_165 : f32 to vector<8x256xf32>
    %386 = arith.mulf %385, %384 : vector<8x256xf32>
    %387 = math.tanh %386 : vector<8x256xf32>
    %cst_166 = arith.constant 1.000000e+00 : f32
    %388 = vector.broadcast %cst_166 : f32 to vector<8x256xf32>
    %389 = arith.addf %388, %387 : vector<8x256xf32>
    %390 = arith.mulf %379, %389 : vector<8x256xf32>
    %c0_167 = arith.constant 0 : index
    %c0_168 = arith.constant 0 : index
    %391 = vector.load %arg22[%c0_167, %c0_168] : memref<1x256xf32, #tpu.memory_space<vmem>>, vector<1x256xf32>
    %c0_169 = arith.constant 0 : index
    %c0_170 = arith.constant 0 : index
    %392 = vector.load %arg23[%c0_169, %c0_170] : memref<1x256xf32, #tpu.memory_space<vmem>>, vector<1x256xf32>
    %cst_171 = arith.constant dense<0.000000e+00> : vector<8xf32>
    %393 = vector.multi_reduction <add>, %390, %cst_171 [1] : vector<8x256xf32> to vector<8xf32>
    %394 = vector.shape_cast %393 : vector<8xf32> to vector<8x1xf32>
    %cst_172 = arith.constant 2.560000e+02 : f32
    %395 = vector.broadcast %cst_172 : f32 to vector<8x1xf32>
    %396 = arith.divf %394, %395 : vector<8x1xf32>
    %397 = vector.broadcast %396 : vector<8x1xf32> to vector<8x256xf32>
    %398 = arith.subf %390, %397 : vector<8x256xf32>
    %399 = arith.mulf %398, %398 : vector<8x256xf32>
    %cst_173 = arith.constant dense<0.000000e+00> : vector<8xf32>
    %400 = vector.multi_reduction <add>, %399, %cst_173 [1] : vector<8x256xf32> to vector<8xf32>
    %401 = vector.shape_cast %400 : vector<8xf32> to vector<8x1xf32>
    %cst_174 = arith.constant 2.560000e+02 : f32
    %402 = vector.broadcast %cst_174 : f32 to vector<8x1xf32>
    %403 = arith.divf %401, %402 : vector<8x1xf32>
    %404 = vector.broadcast %396 : vector<8x1xf32> to vector<8x256xf32>
    %405 = arith.subf %390, %404 : vector<8x256xf32>
    %cst_175 = arith.constant 9.99999974E-6 : f32
    %406 = vector.broadcast %cst_175 : f32 to vector<8x1xf32>
    %407 = arith.addf %403, %406 : vector<8x1xf32>
    %408 = math.rsqrt %407 : vector<8x1xf32>
    %409 = vector.broadcast %408 : vector<8x1xf32> to vector<8x256xf32>
    %410 = arith.mulf %405, %409 : vector<8x256xf32>
    %411 = vector.broadcast %391 : vector<1x256xf32> to vector<8x256xf32>
    %412 = arith.mulf %410, %411 : vector<8x256xf32>
    %413 = vector.broadcast %392 : vector<1x256xf32> to vector<8x256xf32>
    %414 = arith.addf %412, %413 : vector<8x256xf32>
    %c0_176 = arith.constant 0 : index
    %c0_177 = arith.constant 0 : index
    %415 = vector.load %arg24[%c0_176, %c0_177] : memref<256x128xbf16, #tpu.memory_space<vmem>>, vector<256x128xbf16>
    %416 = arith.truncf %414 : vector<8x256xf32> to vector<8x256xbf16>
    %cst_178 = arith.constant dense<0.000000e+00> : vector<8x128xf32>
    %417 = tpu.matmul %416, %415, %cst_178 {dimension_numbers = #tpu.dot_dimension_numbers<[1], [0], [0], [1], [0, 0, 1, 1], [], []>} : vector<8x256xbf16>, vector<256x128xbf16>, vector<8x128xf32> -> vector<8x128xf32>
    %c0_179 = arith.constant 0 : index
    %c0_180 = arith.constant 0 : index
    %418 = vector.load %arg25[%c0_179, %c0_180] : memref<1x128xf32, #tpu.memory_space<vmem>>, vector<1x128xf32>
    %419 = vector.broadcast %418 : vector<1x128xf32> to vector<8x128xf32>
    %420 = arith.addf %417, %419 : vector<8x128xf32>
    %c0_181 = arith.constant 0 : index
    %c0_182 = arith.constant 0 : index
    %421 = vector.load %arg26[%c0_181, %c0_182] : memref<8x128xf32, #tpu.memory_space<vmem>>, vector<8x128xf32>
    tpu.vector_store %arg26[%c0_181, %c0_182], %420 {strides = array<i32>} : memref<8x128xf32, #tpu.memory_space<vmem>>, vector<8x128xf32>,
    return
  }
}

</mosaic_0001>

<llo_original>
// kernel: dnabert_promoter_classifier_forward.1
$region0: #{dnabert_promoter_classifier_forward.1}
  #allocation0 [shape = 'u32[]', space=smem, size = 0x4, offset = 0x4, fixed_abs, tag = 'smem constant byte address 0x4 - core index']
  #allocation1 [shape = 'u32[144,128]{1,0:T(1,128)}', space=vmem, size = 0x12000, scoped, tag = 'internal scratch']
  %s0 = inlined_call_operand.vmem [shape: f32[16,32], index: 0, kind: input, shape index: {}]
  %s1 = inlined_call_operand.vmem [shape: f32[2,1,8], index: 1, kind: input, shape index: {}]
  %s2 = inlined_call_operand.hbm [shape: f32[1,32], index: 2, kind: input, shape index: {}]
  %s3 = inlined_call_operand.hbm [shape: f32[1,32], index: 3, kind: input, shape index: {}]
  %s4 = inlined_call_operand.vmem [shape: bf16[2,32,96], index: 4, kind: input, shape index: {}]
  %s5 = inlined_call_operand.vmem [shape: f32[2,1,96], index: 5, kind: input, shape index: {}]
  %s6 = inlined_call_operand.vmem [shape: bf16[2,32,32], index: 6, kind: input, shape index: {}]
  %s7 = inlined_call_operand.hbm [shape: f32[2,1,32], index: 7, kind: input, shape index: {}]
  %s8 = inlined_call_operand.hbm [shape: f32[2,1,32], index: 8, kind: input, shape index: {}]
  %s9 = inlined_call_operand.hbm [shape: f32[2,1,32], index: 9, kind: input, shape index: {}]
  %s10 = inlined_call_operand.vmem [shape: bf16[2,32,64], index: 10, kind: input, shape index: {}]
  %s11 = inlined_call_operand.hbm [shape: f32[2,1,64], index: 11, kind: input, shape index: {}]
  %s12 = inlined_call_operand.vmem [shape: bf16[2,64,32], index: 12, kind: input, shape index: {}]
  %s13 = inlined_call_operand.hbm [shape: f32[2,1,32], index: 13, kind: input, shape index: {}]
  %s14 = inlined_call_operand.vmem [shape: f32[2,1,32], index: 14, kind: input, shape index: {}]
  %s15 = inlined_call_operand.vmem [shape: f32[2,1,32], index: 15, kind: input, shape index: {}]
  %s16 = inlined_call_operand.vmem [shape: bf16[32,512], index: 16, kind: input, shape index: {}]
  %s17 = inlined_call_operand.vmem [shape: f32[1,512], index: 17, kind: input, shape index: {}]
  %s18 = inlined_call_operand.vmem [shape: f32[1,512], index: 18, kind: input, shape index: {}]
  %s19 = inlined_call_operand.vmem [shape: f32[1,512], index: 19, kind: input, shape index: {}]
  %s20 = inlined_call_operand.hbm [shape: bf16[512,256], index: 20, kind: input, shape index: {}]
  %s21 = inlined_call_operand.vmem [shape: f32[1,256], index: 21, kind: input, shape index: {}]
  %s22 = inlined_call_operand.vmem [shape: f32[1,256], index: 22, kind: input, shape index: {}]
  %s23 = inlined_call_operand.vmem [shape: f32[1,256], index: 23, kind: input, shape index: {}]
  %s24 = inlined_call_operand.vmem [shape: bf16[256,128], index: 24, kind: input, shape index: {}]
  %s25 = inlined_call_operand.hbm [shape: f32[1,128], index: 25, kind: input, shape index: {}]
  %s26 = inlined_call_operand.vmem [shape: f32[8,128], index: 26, kind: output, shape index: {}]
  %s27 = sld [smem:[#allocation0]]
  $region150: #{dnabert_promoter_classifier_forward.1} parent=0
    _
  %s29 = ssub.s32 1, %s27
  %s30 = scalar_select 0, %s29, %s27
  $region1: #{dnabert_promoter_classifier_forward.1} parent=0
    #allocation2 [shape = 'u8[512]{0}', space=vmem, size = 0x400, scoped, tag = 'input window, operand 2, single buffered']
    #allocation3 [shape = 's32[1]{0}', space=sflag, size = 0x4, scoped, tag = 'scoped memory for dnabert_promoter_classifier_forward.1']
    #allocation4 [shape = 'u8[512]{0}', space=vmem, size = 0x400, scoped, tag = 'input window, operand 3, single buffered']
    #allocation5 [shape = 's32[1]{0}', space=sflag, size = 0x4, scoped, tag = 'scoped memory for dnabert_promoter_classifier_forward.1']
    #allocation6 [shape = 'u8[1024]{0}', space=vmem, size = 0x400, scoped, tag = 'input window, operand 7, single buffered']
    #allocation7 [shape = 'u8[1024]{0}', space=vmem, size = 0x400, scoped, tag = 'input window, operand 8, single buffered']
    #allocation8 [shape = 's32[1]{0}', space=sflag, size = 0x4, scoped, tag = 'scoped memory for dnabert_promoter_classifier_forward.1']
    #allocation9 [shape = 'u8[1024]{0}', space=vmem, size = 0x400, scoped, tag = 'input window, operand 9, single buffered']
    #allocation10 [shape = 'u8[1024]{0}', space=vmem, size = 0x400, scoped, tag = 'input window, operand 11, single buffered']
    #allocation11 [shape = 's32[1]{0}', space=sflag, size = 0x4, scoped, tag = 'scoped memory for dnabert_promoter_classifier_forward.1']
    #allocation12 [shape = 'u8[1024]{0}', space=vmem, size = 0x400, scoped, tag = 'input window, operand 13, single buffered']
    #allocation13 [shape = 'u8[262144]{0}', space=vmem, size = 0x40000, scoped, tag = 'input window, operand 20, single buffered']
    #allocation14 [shape = 's32[1]{0}', space=sflag, size = 0x4, scoped, tag = 'scoped memory for dnabert_promoter_classifier_forward.1']
    #allocation15 [shape = 'u8[512]{0}', space=vmem, size = 0x400, scoped, tag = 'input window, operand 25, single buffered']
    %31 = vsyncpa [#allocation3], 0
    %32 = vsyncpa [#allocation5], 0
    %33 = vsyncpa [#allocation8], 0
    %34 = vsyncpa [#allocation11], 0
    %35 = vsyncpa [#allocation14], 0
    // Predicated region
    $region2: #{dnabert_promoter_classifier_forward.1} parent=1 // pred_check
      _
    $region3: #{dnabert_promoter_classifier_forward.1} parent=1 // pred_check_branch
      %37 = sbr.rel (0) target = $region5
    $region4: #{dnabert_promoter_classifier_forward.1} parent=1 // pred_region
      _
    $region5: #{dnabert_promoter_classifier_forward.1} parent=1 // pred_fallthru
      _
    // Predicated region
    $region6: #{dnabert_promoter_classifier_forward.1} parent=1 // pred_check
      _
    $region7: #{dnabert_promoter_classifier_forward.1} parent=1 // pred_check_branch
      %39 = sbr.rel (0) target = $region9
    $region8: #{dnabert_promoter_classifier_forward.1} parent=1 // pred_region
      _
    $region9: #{dnabert_promoter_classifier_forward.1} parent=1 // pred_fallthru
      _
    // Predicated region
    $region10: #{dnabert_promoter_classifier_forward.1} parent=1 // pred_check
      _
    $region11: #{dnabert_promoter_classifier_forward.1} parent=1 // pred_check_branch
      %41 = sbr.rel (0) target = $region13
    $region12: #{dnabert_promoter_classifier_forward.1} parent=1 // pred_region
      %s43 = ssub.s32 16, 16
      %44 = vsyncadd [#allocation3], %s43
      %s46 = sshll.u32 [#allocation2], 4
      %s47 = int_to_ptr.vmem [resolvable:$true] %s46
      %49 = dma.hbm_to_vmem [thread:$0]  %s2, 16, %s47, [#allocation3]
    $region13: #{dnabert_promoter_classifier_forward.1} parent=1 // pred_fallthru
      _
    // Predicated region
    $region14: #{dnabert_promoter_classifier_forward.1} parent=1 // pred_check
      _
    $region15: #{dnabert_promoter_classifier_forward.1} parent=1 // pred_check_branch
      %51 = sbr.rel (0) target = $region17
    $region16: #{dnabert_promoter_classifier_forward.1} parent=1 // pred_region
      %s53 = ssub.s32 16, 16
      %54 = vsyncadd [#allocation5], %s53
      %s56 = sshll.u32 [#allocation4], 4
      %s57 = int_to_ptr.vmem [resolvable:$true] %s56
      %59 = dma.hbm_to_vmem [thread:$0]  %s3, 16, %s57, [#allocation5]
    $region17: #{dnabert_promoter_classifier_forward.1} parent=1 // pred_fallthru
      _
    // Predicated region
    $region18: #{dnabert_promoter_classifier_forward.1} parent=1 // pred_check
      _
    $region19: #{dnabert_promoter_classifier_forward.1} parent=1 // pred_check_branch
      %61 = sbr.rel (0) target = $region21
    $region20: #{dnabert_promoter_classifier_forward.1} parent=1 // pred_region
      _
    $region21: #{dnabert_promoter_classifier_forward.1} parent=1 // pred_fallthru
      _
    // Predicated region
    $region22: #{dnabert_promoter_classifier_forward.1} parent=1 // pred_check
      _
    $region23: #{dnabert_promoter_classifier_forward.1} parent=1 // pred_check_branch
      %63 = sbr.rel (0) target = $region25
    $region24: #{dnabert_promoter_classifier_forward.1} parent=1 // pred_region
      _
    $region25: #{dnabert_promoter_classifier_forward.1} parent=1 // pred_fallthru
      _
    // Predicated region
    $region26: #{dnabert_promoter_classifier_forward.1} parent=1 // pred_check
      _
    $region27: #{dnabert_promoter_classifier_forward.1} parent=1 // pred_check_branch
      %65 = sbr.rel (0) target = $region29
    $region28: #{dnabert_promoter_classifier_forward.1} parent=1 // pred_region
      _
    $region29: #{dnabert_promoter_classifier_forward.1} parent=1 // pred_fallthru
      _
    // Predicated region
    $region30: #{dnabert_promoter_classifier_forward.1} parent=1 // pred_check
      _
    $region31: #{dnabert_promoter_classifier_forward.1} parent=1 // pred_check_branch
      %67 = sbr.rel (0) target = $region33
    $region32: #{dnabert_promoter_classifier_forward.1} parent=1 // pred_region
      %s69 = ssub.s32 32, 32
      %70 = vsyncadd [#allocation5], %s69
      %s71 = sshll.u32 [#allocation6], 4
      %s72 = int_to_ptr.vmem [resolvable:$true] %s71
      %77 = dma.hbm_to_vmem [thread:$0]  %s7, 32, %s72, [#allocation5], 16, 16, 1
    $region33: #{dnabert_promoter_classifier_forward.1} parent=1 // pred_fallthru
      _
    // Predicated region
    $region34: #{dnabert_promoter_classifier_forward.1} parent=1 // pred_check
      _
    $region35: #{dnabert_promoter_classifier_forward.1} parent=1 // pred_check_branch
      %79 = sbr.rel (0) target = $region37
    $region36: #{dnabert_promoter_classifier_forward.1} parent=1 // pred_region
      %s81 = ssub.s32 32, 32
      %82 = vsyncadd [#allocation8], %s81
      %s83 = sshll.u32 [#allocation7], 4
      %s84 = int_to_ptr.vmem [resolvable:$true] %s83
      %89 = dma.hbm_to_vmem [thread:$0]  %s8, 32, %s84, [#allocation8], 16, 16, 1
    $region37: #{dnabert_promoter_classifier_forward.1} parent=1 // pred_fallthru
      _
    // Predicated region
    $region38: #{dnabert_promoter_classifier_forward.1} parent=1 // pred_check
      _
    $region39: #{dnabert_promoter_classifier_forward.1} parent=1 // pred_check_branch
      %91 = sbr.rel (0) target = $region41
    $region40: #{dnabert_promoter_classifier_forward.1} parent=1 // pred_region
      %s93 = ssub.s32 32, 32
      %94 = vsyncadd [#allocation8], %s93
      %s95 = sshll.u32 [#allocation9], 4
      %s96 = int_to_ptr.vmem [resolvable:$true] %s95
      %101 = dma.hbm_to_vmem [thread:$0]  %s9, 32, %s96, [#allocation8], 16, 16, 1
    $region41: #{dnabert_promoter_classifier_forward.1} parent=1 // pred_fallthru
      _
    // Predicated region
    $region42: #{dnabert_promoter_classifier_forward.1} parent=1 // pred_check
      _
    $region43: #{dnabert_promoter_classifier_forward.1} parent=1 // pred_check_branch
      %103 = sbr.rel (0) target = $region45
    $region44: #{dnabert_promoter_classifier_forward.1} parent=1 // pred_region
      _
    $region45: #{dnabert_promoter_classifier_forward.1} parent=1 // pred_fallthru
      _
    // Predicated region
    $region46: #{dnabert_promoter_classifier_forward.1} parent=1 // pred_check
      _
    $region47: #{dnabert_promoter_classifier_forward.1} parent=1 // pred_check_branch
      %105 = sbr.rel (0) target = $region49
    $region48: #{dnabert_promoter_classifier_forward.1} parent=1 // pred_region
      %s107 = ssub.s32 32, 32
      %108 = vsyncadd [#allocation11], %s107
      %s109 = sshll.u32 [#allocation10], 4
      %s110 = int_to_ptr.vmem [resolvable:$true] %s109
      %115 = dma.hbm_to_vmem [thread:$0]  %s11, 32, %s110, [#allocation11], 16, 16, 1
    $region49: #{dnabert_promoter_classifier_forward.1} parent=1 // pred_fallthru
      _
    // Predicated region
    $region50: #{dnabert_promoter_classifier_forward.1} parent=1 // pred_check
      _
    $region51: #{dnabert_promoter_classifier_forward.1} parent=1 // pred_check_branch
      %117 = sbr.rel (0) target = $region53
    $region52: #{dnabert_promoter_classifier_forward.1} parent=1 // pred_region
      _
    $region53: #{dnabert_promoter_classifier_forward.1} parent=1 // pred_fallthru
      _
    // Predicated region
    $region54: #{dnabert_promoter_classifier_forward.1} parent=1 // pred_check
      _
    $region55: #{dnabert_promoter_classifier_forward.1} parent=1 // pred_check_branch
      %119 = sbr.rel (0) target = $region57
    $region56: #{dnabert_promoter_classifier_forward.1} parent=1 // pred_region
      %s121 = ssub.s32 32, 32
      %122 = vsyncadd [#allocation11], %s121
      %s123 = sshll.u32 [#allocation12], 4
      %s124 = int_to_ptr.vmem [resolvable:$true] %s123
      %129 = dma.hbm_to_vmem [thread:$0]  %s13, 32, %s124, [#allocation11], 16, 16, 1
    $region57: #{dnabert_promoter_classifier_forward.1} parent=1 // pred_fallthru
      _
    // Predicated region
    $region58: #{dnabert_promoter_classifier_forward.1} parent=1 // pred_check
      _
    $region59: #{dnabert_promoter_classifier_forward.1} parent=1 // pred_check_branch
      %131 = sbr.rel (0) target = $region61
    $region60: #{dnabert_promoter_classifier_forward.1} parent=1 // pred_region
      _
    $region61: #{dnabert_promoter_classifier_forward.1} parent=1 // pred_fallthru
      _
    // Predicated region
    $region62: #{dnabert_promoter_classifier_forward.1} parent=1 // pred_check
      _
    $region63: #{dnabert_promoter_classifier_forward.1} parent=1 // pred_check_branch
      %133 = sbr.rel (0) target = $region65
    $region64: #{dnabert_promoter_classifier_forward.1} parent=1 // pred_region
      _
    $region65: #{dnabert_promoter_classifier_forward.1} parent=1 // pred_fallthru
      _
    // Predicated region
    $region66: #{dnabert_promoter_classifier_forward.1} parent=1 // pred_check
      _
    $region67: #{dnabert_promoter_classifier_forward.1} parent=1 // pred_check_branch
      %135 = sbr.rel (0) target = $region69
    $region68: #{dnabert_promoter_classifier_forward.1} parent=1 // pred_region
      _
    $region69: #{dnabert_promoter_classifier_forward.1} parent=1 // pred_fallthru
      _
    // Predicated region
    $region70: #{dnabert_promoter_classifier_forward.1} parent=1 // pred_check
      _
    $region71: #{dnabert_promoter_classifier_forward.1} parent=1 // pred_check_branch
      %137 = sbr.rel (0) target = $region73
    $region72: #{dnabert_promoter_classifier_forward.1} parent=1 // pred_region
      _
    $region73: #{dnabert_promoter_classifier_forward.1} parent=1 // pred_fallthru
      _
    // Predicated region
    $region74: #{dnabert_promoter_classifier_forward.1} parent=1 // pred_check
      _
    $region75: #{dnabert_promoter_classifier_forward.1} parent=1 // pred_check_branch
      %139 = sbr.rel (0) target = $region77
    $region76: #{dnabert_promoter_classifier_forward.1} parent=1 // pred_region
      _
    $region77: #{dnabert_promoter_classifier_forward.1} parent=1 // pred_fallthru
      _
    // Predicated region
    $region78: #{dnabert_promoter_classifier_forward.1} parent=1 // pred_check
      _
    $region79: #{dnabert_promoter_classifier_forward.1} parent=1 // pred_check_branch
      %141 = sbr.rel (0) target = $region81
    $region80: #{dnabert_promoter_classifier_forward.1} parent=1 // pred_region
      _
    $region81: #{dnabert_promoter_classifier_forward.1} parent=1 // pred_fallthru
      _
    // Predicated region
    $region82: #{dnabert_promoter_classifier_forward.1} parent=1 // pred_check
      _
    $region83: #{dnabert_promoter_classifier_forward.1} parent=1 // pred_check_branch
      %143 = sbr.rel (0) target = $region85
    $region84: #{dnabert_promoter_classifier_forward.1} parent=1 // pred_region
      %s145 = ssub.s32 8192, 8192
      %146 = vsyncadd [#allocation14], %s145
      %s147 = sshll.u32 [#allocation13], 4
      %s148 = int_to_ptr.vmem [resolvable:$true] %s147
      %153 = dma.hbm_to_vmem [thread:$0]  %s20, 8192, %s148, [#allocation14], 128, 128, 8
    $region85: #{dnabert_promoter_classifier_forward.1} parent=1 // pred_fallthru
      _
    // Predicated region
    $region86: #{dnabert_promoter_classifier_forward.1} parent=1 // pred_check
      _
    $region87: #{dnabert_promoter_classifier_forward.1} parent=1 // pred_check_branch
      %155 = sbr.rel (0) target = $region89
    $region88: #{dnabert_promoter_classifier_forward.1} parent=1 // pred_region
      _
    $region89: #{dnabert_promoter_classifier_forward.1} parent=1 // pred_fallthru
      _
    // Predicated region
    $region90: #{dnabert_promoter_classifier_forward.1} parent=1 // pred_check
      _
    $region91: #{dnabert_promoter_classifier_forward.1} parent=1 // pred_check_branch
      %157 = sbr.rel (0) target = $region93
    $region92: #{dnabert_promoter_classifier_forward.1} parent=1 // pred_region
      _
    $region93: #{dnabert_promoter_classifier_forward.1} parent=1 // pred_fallthru
      _
    // Predicated region
    $region94: #{dnabert_promoter_classifier_forward.1} parent=1 // pred_check
      _
    $region95: #{dnabert_promoter_classifier_forward.1} parent=1 // pred_check_branch
      %159 = sbr.rel (0) target = $region97
    $region96: #{dnabert_promoter_classifier_forward.1} parent=1 // pred_region
      _
    $region97: #{dnabert_promoter_classifier_forward.1} parent=1 // pred_fallthru
      _
    // Predicated region
    $region98: #{dnabert_promoter_classifier_forward.1} parent=1 // pred_check
      _
    $region99: #{dnabert_promoter_classifier_forward.1} parent=1 // pred_check_branch
      %161 = sbr.rel (0) target = $region101
    $region100: #{dnabert_promoter_classifier_forward.1} parent=1 // pred_region
      _
    $region101: #{dnabert_promoter_classifier_forward.1} parent=1 // pred_fallthru
      _
    // Predicated region
    $region102: #{dnabert_promoter_classifier_forward.1} parent=1 // pred_check
      _
    $region103: #{dnabert_promoter_classifier_forward.1} parent=1 // pred_check_branch
      %163 = sbr.rel (0) target = $region105
    $region104: #{dnabert_promoter_classifier_forward.1} parent=1 // pred_region
      %s165 = ssub.s32 16, 16
      %166 = vsyncadd [#allocation14], %s165
      %s168 = sshll.u32 [#allocation15], 4
      %s169 = int_to_ptr.vmem [resolvable:$true] %s168
      %171 = dma.hbm_to_vmem [thread:$0]  %s25, 16, %s169, [#allocation14]
    $region105: #{dnabert_promoter_classifier_forward.1} parent=1 // pred_fallthru
      _
    // Predicated region
    $region106: #{dnabert_promoter_classifier_forward.1} parent=1 // pred_check
      _
    $region107: #{dnabert_promoter_classifier_forward.1} parent=1 // pred_check_branch
      %173 = sbr.rel (0) target = $region109
    $region108: #{dnabert_promoter_classifier_forward.1} parent=1 // pred_region
      %174 = dma.done [#allocation3], 16
    $region109: #{dnabert_promoter_classifier_forward.1} parent=1 // pred_fallthru
      _
    // Predicated region
    $region110: #{dnabert_promoter_classifier_forward.1} parent=1 // pred_check
      _
    $region111: #{dnabert_promoter_classifier_forward.1} parent=1 // pred_check_branch
      %176 = sbr.rel (0) target = $region113
    $region112: #{dnabert_promoter_classifier_forward.1} parent=1 // pred_region
      %177 = dma.done [#allocation5], 16
    $region113: #{dnabert_promoter_classifier_forward.1} parent=1 // pred_fallthru
      _
    // Predicated region
    $region114: #{dnabert_promoter_classifier_forward.1} parent=1 // pred_check
      _
    $region115: #{dnabert_promoter_classifier_forward.1} parent=1 // pred_check_branch
      %179 = sbr.rel (0) target = $region117
    $region116: #{dnabert_promoter_classifier_forward.1} parent=1 // pred_region
      %180 = dma.done [#allocation5], 32
    $region117: #{dnabert_promoter_classifier_forward.1} parent=1 // pred_fallthru
      _
    // Predicated region
    $region118: #{dnabert_promoter_classifier_forward.1} parent=1 // pred_check
      _
    $region119: #{dnabert_promoter_classifier_forward.1} parent=1 // pred_check_branch
      %182 = sbr.rel (0) target = $region121
    $region120: #{dnabert_promoter_classifier_forward.1} parent=1 // pred_region
      %183 = dma.done [#allocation8], 32
    $region121: #{dnabert_promoter_classifier_forward.1} parent=1 // pred_fallthru
      _
    // Predicated region
    $region122: #{dnabert_promoter_classifier_forward.1} parent=1 // pred_check
      _
    $region123: #{dnabert_promoter_classifier_forward.1} parent=1 // pred_check_branch
      %185 = sbr.rel (0) target = $region125
    $region124: #{dnabert_promoter_classifier_forward.1} parent=1 // pred_region
      %186 = dma.done [#allocation8], 32
    $region125: #{dnabert_promoter_classifier_forward.1} parent=1 // pred_fallthru
      _
    // Predicated region
    $region126: #{dnabert_promoter_classifier_forward.1} parent=1 // pred_check
      _
    $region127: #{dnabert_promoter_classifier_forward.1} parent=1 // pred_check_branch
      %188 = sbr.rel (0) target = $region129
    $region128: #{dnabert_promoter_classifier_forward.1} parent=1 // pred_region
      %189 = dma.done [#allocation11], 32
    $region129: #{dnabert_promoter_classifier_forward.1} parent=1 // pred_fallthru
      _
    // Predicated region
    $region130: #{dnabert_promoter_classifier_forward.1} parent=1 // pred_check
      _
    $region131: #{dnabert_promoter_classifier_forward.1} parent=1 // pred_check_branch
      %191 = sbr.rel (0) target = $region133
    $region132: #{dnabert_promoter_classifier_forward.1} parent=1 // pred_region
      %192 = dma.done [#allocation11], 32
    $region133: #{dnabert_promoter_classifier_forward.1} parent=1 // pred_fallthru
      _
    // Predicated region
    $region134: #{dnabert_promoter_classifier_forward.1} parent=1 // pred_check
      _
    $region135: #{dnabert_promoter_classifier_forward.1} parent=1 // pred_check_branch
      %194 = sbr.rel (0) target = $region137
    $region136: #{dnabert_promoter_classifier_forward.1} parent=1 // pred_region
      %195 = dma.done [#allocation14], 8192
    $region137: #{dnabert_promoter_classifier_forward.1} parent=1 // pred_fallthru
      _
    // Predicated region
    $region138: #{dnabert_promoter_classifier_forward.1} parent=1 // pred_check
      _
    $region139: #{dnabert_promoter_classifier_forward.1} parent=1 // pred_check_branch
      %197 = sbr.rel (0) target = $region141
    $region140: #{dnabert_promoter_classifier_forward.1} parent=1 // pred_region
      %198 = dma.done [#allocation14], 16
    $region141: #{dnabert_promoter_classifier_forward.1} parent=1 // pred_fallthru
      _
    %v200 = vld [vmem:[%s0] sm:$0xff]
    %v201 = vld [vmem:[%s0 + $0x8] sm:$0xff]
    %v202 = vld [vmem:[#allocation2] sm:$0x1]
    %v203 = vld [vmem:[#allocation4] sm:$0x1]
    %vm204 = vcmask 261120
    %v205 = vsel %vm204, %v200, 0.0
    %206 = vadd.xlane.f32.xlu0 %v205
    %v207 = vpop.xlane.xlu0 %206
    %v208 = vsel %vm204, %v201, 0.0
    %209 = vadd.xlane.f32.xlu0 %v208
    %v210 = vpop.xlane.xlu0 %209
    %v211 = vrcp.pop 32.0
    %v212 = vmul.f32 %v207, %v211
    %v213 = vmul.f32 %v210, %v211
    %v214 = vsub.f32 %v200, %v212
    %v215 = vsub.f32 %v201, %v213
    %v216 = vmul.f32 %v214, %v214
    %v217 = vmul.f32 %v215, %v215
    %v218 = vsel %vm204, %v216, 0.0
    %219 = vadd.xlane.f32.xlu0 %v218
    %v220 = vpop.xlane.xlu0 %219
    %v221 = vsel %vm204, %v217, 0.0
    %222 = vadd.xlane.f32.xlu0 %v221
    %v223 = vpop.xlane.xlu0 %222
    %v224 = vmul.f32 %v220, %v211
    %v225 = vmul.f32 %v223, %v211
    %v226 = vadd.f32 %v224, 1e-12
    %v227 = vadd.f32 %v225, 1e-12
    %v228 = vrsqrt.pop %v226
    %v229 = vrsqrt.pop %v227
    %v230 = vmul.f32 %v214, %v228
    %v231 = vmul.f32 %v215, %v229
    %v233 = vlaneseq
    %v234 = vshrl.u32 %v233, 7
    %v235 = vsub.s32 0, %v234
    %v236 = vrot.slane %v202, %v235
    %v238 = vmul.f32 %v230, %v236
    %v239 = vmul.f32 %v231, %v236
    %v241 = vlaneseq
    %v242 = vshrl.u32 %v241, 7
    %v243 = vsub.s32 0, %v242
    %v244 = vrot.slane %v203, %v243
    %v246 = vadd.f32 %v238, %v244
    %v247 = vadd.f32 %v239, %v244
    %v248 = vld [vmem:[%s1] sm:$0x1]
    %v249 = vld [vmem:[%s1 + $0x1] sm:$0x1]
    %v250 = vld [vmem:[%s4] sm:$0xf]
    %v251 = vld [vmem:[%s4 + $0x4] sm:$0xf]
    %v252 = vld [vmem:[%s4 + $0x8] sm:$0xf]
    %v253 = vld [vmem:[%s4 + $0xc] sm:$0xf]
    %v254 = vpack.c.bf16 %v247, %v246
    %v255 = vld [vmem:[%s5] sm:$0x1]
    %v257 = vlaneseq
    %v258 = vshrl.u32 %v257, 7
    %v259 = vsub.s32 0, %v258
    %v260 = vrot.slane %v255, %v259
    %v266 = vunpack.c.l.b16 %v250
    %v267 = vunpack.c.l.b16 %v251
    %v268 = vunpack.c.l.b16 %v252
    %v269 = vunpack.c.l.b16 %v253
    %v270 = vpack.c.b16 %v267, %v266
    %v271 = vpack.c.b16 %v269, %v268
    %v275 = vsel %vm204, %v254, 0
    %277 = vmatprep.subr.bf16.mxu0 0
    %278 = vmatpush1.bf16.msra.mxu0 %v270
    %279 = vmatprep.subr.bf16.mxu0 0
    %280 = vmatpush1.bf16.msra.mxu0 %v271
    %281 = vmatprep.subr.bf16.mxu0 0
    %282 = vmatpush1.bf16.msra.mxu0 0
    %283 = vmatprep.subr.bf16.mxu0 0
    %284 = vmatpush1.bf16.msra.mxu0 0
    %285 = vmatprep.subr.bf16.mxu0 0
    %286 = vmatpush1.bf16.msra.mxu0 0
    %287 = vmatprep.subr.bf16.mxu0 0
    %288 = vmatpush1.bf16.msra.mxu0 0
    %289 = vmatprep.subr.bf16.mxu0 0
    %290 = vmatpush1.bf16.msra.mxu0 0
    %291 = vmatprep.subr.bf16.mxu0 0
    %292 = vmatpush1.bf16.msra.mxu0 0
    %293 = vmatprep.subr.bf16.mxu0 0
    %294 = vmatpush1.bf16.msra.mxu0 0
    %295 = vmatprep.subr.bf16.mxu0 0
    %296 = vmatpush1.bf16.msra.mxu0 0
    %297 = vmatprep.subr.bf16.mxu0 0
    %298 = vmatpush1.bf16.msra.mxu0 0
    %299 = vmatprep.subr.bf16.mxu0 0
    %300 = vmatpush1.bf16.msra.mxu0 0
    %301 = vmatprep.subr.bf16.mxu0 0
    %302 = vmatpush1.bf16.msra.mxu0 0
    %303 = vmatprep.subr.bf16.mxu0 0
    %304 = vmatpush1.bf16.msra.mxu0 0
    %305 = vmatprep.subr.bf16.mxu0 0
    %306 = vmatpush1.bf16.msra.mxu0 0
    %307 = vmatprep.subr.bf16.mxu0 0
    %308 = vmatpush1.bf16.msra.mxu0 0
    %309 = vmatprep.mubr.bf16.mxu0 0
    %310 = vmatmul.mubr.bf16.gmra.mrb[0].mxu0 %v275
    %v311 = vpop.f32.mrb[0].mxu0
    %v312 = vadd.f32 %v260, %v311
    %v313 = vpop.f32.mrb[0].mxu0
    %v314 = vpop.f32.mrb[0].mxu0
    %v315 = vadd.f32 %v260, %v314
    %v316 = vpop.f32.mrb[0].mxu0
    %317 = vdwg.mxu0
    %v318 = vpack.c.bf16 %v315, %v312
    %v320 = vunpack.c.l.b16 %v318
    %v321 = vunpack.c.h.b16 %v318
    %v322 = vpack.c.b16 %v320, %v320
    %v323 = vpack.c.b16 %v321, %v321
    %324 = vrot.lane.b32.xlu0 %v322, 96
    %v325 = vpop.permute.xlu0 %324
    %vm326 = vcmask 130048
    %v328 = vsel %vm326, %v322, 0
    %v331 = vsel %vm326, %v325, 0
    %333 = vmatprep.subr.bf16.mxu0 0
    %334 = vmatpush1.bf16.xpose.msra.mxu0 %v331
    %335 = vmatprep.subr.bf16.mxu0 0
    %336 = vmatpush1.bf16.xpose.msra.mxu0 0
    %337 = vmatprep.subr.bf16.mxu0 0
    %338 = vmatpush1.bf16.xpose.msra.mxu0 0
    %339 = vmatprep.subr.bf16.mxu0 0
    %340 = vmatpush1.bf16.xpose.msra.mxu0 0
    %341 = vmatprep.subr.bf16.mxu0 0
    %342 = vmatpush1.bf16.xpose.msra.mxu0 0
    %343 = vmatprep.subr.bf16.mxu0 0
    %344 = vmatpush1.bf16.xpose.msra.mxu0 0
    %345 = vmatprep.subr.bf16.mxu0 0
    %346 = vmatpush1.bf16.xpose.msra.mxu0 0
    %347 = vmatprep.subr.bf16.mxu0 0
    %348 = vmatpush1.bf16.xpose.msra.mxu0 0
    %349 = vmatprep.subr.bf16.mxu0 0
    %350 = vmatpush1.bf16.xpose.msra.mxu0 0
    %351 = vmatprep.subr.bf16.mxu0 0
    %352 = vmatpush1.bf16.xpose.msra.mxu0 0
    %353 = vmatprep.subr.bf16.mxu0 0
    %354 = vmatpush1.bf16.xpose.msra.mxu0 0
    %355 = vmatprep.subr.bf16.mxu0 0
    %356 = vmatpush1.bf16.xpose.msra.mxu0 0
    %357 = vmatprep.subr.bf16.mxu0 0
    %358 = vmatpush1.bf16.xpose.msra.mxu0 0
    %359 = vmatprep.subr.bf16.mxu0 0
    %360 = vmatpush1.bf16.xpose.msra.mxu0 0
    %361 = vmatprep.subr.bf16.mxu0 0
    %362 = vmatpush1.bf16.xpose.msra.mxu0 0
    %363 = vmatprep.subr.bf16.mxu0 0
    %364 = vmatpush1.bf16.xpose.msra.mxu0 0
    %365 = vmatprep.mubr.bf16.mxu0 0
    %366 = vmatmul.mubr.bf16.gmra.mrb[0].mxu0 %v328
    %v367 = vpop.f32.mrb[0].mxu0
    %v368 = vadd.f32 0.0, %v367
    %v369 = vpop.f32.mrb[0].mxu0
    %v370 = vpop.f32.mrb[0].mxu0
    %v371 = vpop.f32.mrb[0].mxu0
    %372 = vdwg.mxu0
    %373 = vrot.lane.b32.xlu0 %v323, 96
    %v374 = vpop.permute.xlu0 %373
    %v376 = vsel %vm326, %v323, 0
    %v379 = vsel %vm326, %v374, 0
    %381 = vmatprep.subr.bf16.mxu0 0
    %382 = vmatpush1.bf16.xpose.msra.mxu0 %v379
    %383 = vmatprep.subr.bf16.mxu0 0
    %384 = vmatpush1.bf16.xpose.msra.mxu0 0
    %385 = vmatprep.subr.bf16.mxu0 0
    %386 = vmatpush1.bf16.xpose.msra.mxu0 0
    %387 = vmatprep.subr.bf16.mxu0 0
    %388 = vmatpush1.bf16.xpose.msra.mxu0 0
    %389 = vmatprep.subr.bf16.mxu0 0
    %390 = vmatpush1.bf16.xpose.msra.mxu0 0
    %391 = vmatprep.subr.bf16.mxu0 0
    %392 = vmatpush1.bf16.xpose.msra.mxu0 0
    %393 = vmatprep.subr.bf16.mxu0 0
    %394 = vmatpush1.bf16.xpose.msra.mxu0 0
    %395 = vmatprep.subr.bf16.mxu0 0
    %396 = vmatpush1.bf16.xpose.msra.mxu0 0
    %397 = vmatprep.subr.bf16.mxu0 0
    %398 = vmatpush1.bf16.xpose.msra.mxu0 0
    %399 = vmatprep.subr.bf16.mxu0 0
    %400 = vmatpush1.bf16.xpose.msra.mxu0 0
    %401 = vmatprep.subr.bf16.mxu0 0
    %402 = vmatpush1.bf16.xpose.msra.mxu0 0
    %403 = vmatprep.subr.bf16.mxu0 0
    %404 = vmatpush1.bf16.xpose.msra.mxu0 0
    %405 = vmatprep.subr.bf16.mxu0 0
    %406 = vmatpush1.bf16.xpose.msra.mxu0 0
    %407 = vmatprep.subr.bf16.mxu0 0
    %408 = vmatpush1.bf16.xpose.msra.mxu0 0
    %409 = vmatprep.subr.bf16.mxu0 0
    %410 = vmatpush1.bf16.xpose.msra.mxu0 0
    %411 = vmatprep.subr.bf16.mxu0 0
    %412 = vmatpush1.bf16.xpose.msra.mxu0 0
    %413 = vmatprep.mubr.bf16.mxu0 0
    %414 = vmatmul.mubr.bf16.gmra.mrb[0].mxu0 %v376
    %v415 = vpop.f32.mrb[0].mxu0
    %v416 = vadd.f32 0.0, %v415
    %v417 = vpop.f32.mrb[0].mxu0
    %v418 = vpop.f32.mrb[0].mxu0
    %v419 = vpop.f32.mrb[0].mxu0
    %420 = vdwg.mxu0
    %v421 = vmul.f32 %v368, 0.25
    %v422 = vmul.f32 %v416, 0.25
    %v425 = vlaneseq
    %v426 = vshrl.u32 %v425, 7
    %v427 = vsub.s32 0, %v426
    %v428 = vrot.slane %v248, %v427
    %v429 = vlaneseq
    %v430 = vshrl.u32 %v429, 7
    %v431 = vsub.s32 0, %v430
    %v432 = vrot.slane %v249, %v431
    %v435 = vadd.f32 %v421, %v428
    %v436 = vadd.f32 %v422, %v432
    %vm437 = vcmask 64512
    %v438 = vsel %vm437, %v435, -inf
    %439 = vmax.xlane.f32.xlu0 %v438
    %v440 = vpop.xlane.xlu0 %439
    %v441 = vsel %vm437, %v436, -inf
    %442 = vmax.xlane.f32.xlu0 %v441
    %v443 = vpop.xlane.xlu0 %442
    %v444 = vsub.f32 %v435, %v440
    %v445 = vsub.f32 %v436, %v443
    %v446 = vmul.f32 %v444, 1.442695
    %v447 = vpow.pop %v446
    %v448 = vmul.f32 %v445, 1.442695
    %v449 = vpow.pop %v448
    %v450 = vsel %vm437, %v447, 0.0
    %451 = vadd.xlane.f32.xlu0 %v450
    %v452 = vpop.xlane.xlu0 %451
    %v453 = vsel %vm437, %v449, 0.0
    %454 = vadd.xlane.f32.xlu0 %v453
    %v455 = vpop.xlane.xlu0 %454
    %v456 = vrcp.pop %v452
    %v457 = vrcp.pop %v455
    %v458 = vmul.f32 %v447, %v456
    %v459 = vmul.f32 %v449, %v457
    %v460 = vpack.c.bf16 %v458, %v458
    %v461 = vpack.c.bf16 %v459, %v459
    %462 = vrot.lane.b32.xlu0 %v322, 64
    %v463 = vpop.permute.xlu0 %462
    %v465 = vsel %vm437, %v460, 0
    %vm467 = vcmask 1043456
    %v469 = vsel %vm467, %v463, 0
    %471 = vmatprep.subr.bf16.mxu0 0
    %472 = vmatpush1.bf16.msra.mxu0 %v469
    %473 = vmatprep.subr.bf16.mxu0 0
    %474 = vmatpush1.bf16.msra.mxu0 0
    %475 = vmatprep.subr.bf16.mxu0 0
    %476 = vmatpush1.bf16.msra.mxu0 0
    %477 = vmatprep.subr.bf16.mxu0 0
    %478 = vmatpush1.bf16.msra.mxu0 0
    %479 = vmatprep.subr.bf16.mxu0 0
    %480 = vmatpush1.bf16.msra.mxu0 0
    %481 = vmatprep.subr.bf16.mxu0 0
    %482 = vmatpush1.bf16.msra.mxu0 0
    %483 = vmatprep.subr.bf16.mxu0 0
    %484 = vmatpush1.bf16.msra.mxu0 0
    %485 = vmatprep.subr.bf16.mxu0 0
    %486 = vmatpush1.bf16.msra.mxu0 0
    %487 = vmatprep.subr.bf16.mxu0 0
    %488 = vmatpush1.bf16.msra.mxu0 0
    %489 = vmatprep.subr.bf16.mxu0 0
    %490 = vmatpush1.bf16.msra.mxu0 0
    %491 = vmatprep.subr.bf16.mxu0 0
    %492 = vmatpush1.bf16.msra.mxu0 0
    %493 = vmatprep.subr.bf16.mxu0 0
    %494 = vmatpush1.bf16.msra.mxu0 0
    %495 = vmatprep.subr.bf16.mxu0 0
    %496 = vmatpush1.bf16.msra.mxu0 0
    %497 = vmatprep.subr.bf16.mxu0 0
    %498 = vmatpush1.bf16.msra.mxu0 0
    %499 = vmatprep.subr.bf16.mxu0 0
    %500 = vmatpush1.bf16.msra.mxu0 0
    %501 = vmatprep.subr.bf16.mxu0 0
    %502 = vmatpush1.bf16.msra.mxu0 0
    %503 = vmatprep.mubr.bf16.mxu0 0
    %504 = vmatmul.mubr.bf16.gmra.mrb[0].mxu0 %v465
    %v505 = vpop.f32.mrb[0].mxu0
    %v506 = vadd.f32 0.0, %v505
    %v507 = vpop.f32.mrb[0].mxu0
    %v508 = vpop.f32.mrb[0].mxu0
    %v509 = vpop.f32.mrb[0].mxu0
    %510 = vdwg.mxu0
    %511 = vrot.lane.b32.xlu0 %v323, 64
    %v512 = vpop.permute.xlu0 %511
    %v514 = vsel %vm437, %v461, 0
    %v517 = vsel %vm467, %v512, 0
    %519 = vmatprep.subr.bf16.mxu0 0
    %520 = vmatpush1.bf16.msra.mxu0 %v517
    %521 = vmatprep.subr.bf16.mxu0 0
    %522 = vmatpush1.bf16.msra.mxu0 0
    %523 = vmatprep.subr.bf16.mxu0 0
    %524 = vmatpush1.bf16.msra.mxu0 0
    %525 = vmatprep.subr.bf16.mxu0 0
    %526 = vmatpush1.bf16.msra.mxu0 0
    %527 = vmatprep.subr.bf16.mxu0 0
    %528 = vmatpush1.bf16.msra.mxu0 0
    %529 = vmatprep.subr.bf16.mxu0 0
    %530 = vmatpush1.bf16.msra.mxu0 0
    %531 = vmatprep.subr.bf16.mxu0 0
    %532 = vmatpush1.bf16.msra.mxu0 0
    %533 = vmatprep.subr.bf16.mxu0 0
    %534 = vmatpush1.bf16.msra.mxu0 0
    %535 = vmatprep.subr.bf16.mxu0 0
    %536 = vmatpush1.bf16.msra.mxu0 0
    %537 = vmatprep.subr.bf16.mxu0 0
    %538 = vmatpush1.bf16.msra.mxu0 0
    %539 = vmatprep.subr.bf16.mxu0 0
    %540 = vmatpush1.bf16.msra.mxu0 0
    %541 = vmatprep.subr.bf16.mxu0 0
    %542 = vmatpush1.bf16.msra.mxu0 0
    %543 = vmatprep.subr.bf16.mxu0 0
    %544 = vmatpush1.bf16.msra.mxu0 0
    %545 = vmatprep.subr.bf16.mxu0 0
    %546 = vmatpush1.bf16.msra.mxu0 0
    %547 = vmatprep.subr.bf16.mxu0 0
    %548 = vmatpush1.bf16.msra.mxu0 0
    %549 = vmatprep.subr.bf16.mxu0 0
    %550 = vmatpush1.bf16.msra.mxu0 0
    %551 = vmatprep.mubr.bf16.mxu0 0
    %552 = vmatmul.mubr.bf16.gmra.mrb[0].mxu0 %v514
    %v553 = vpop.f32.mrb[0].mxu0
    %v554 = vadd.f32 0.0, %v553
    %v555 = vpop.f32.mrb[0].mxu0
    %v556 = vpop.f32.mrb[0].mxu0
    %v557 = vpop.f32.mrb[0].mxu0
    %558 = vdwg.mxu0
    %559 = vrot.lane.b32.xlu0 %v322, 112
    %v560 = vpop.permute.xlu0 %559
    %561 = vrot.lane.b32.xlu0 %v322, 80
    %v562 = vpop.permute.xlu0 %561
    %v564 = vsel %vm326, %v560, 0
    %v567 = vsel %vm326, %v562, 0
    %569 = vmatprep.subr.bf16.mxu0 0
    %570 = vmatpush1.bf16.xpose.msra.mxu0 %v567
    %571 = vmatprep.subr.bf16.mxu0 0
    %572 = vmatpush1.bf16.xpose.msra.mxu0 0
    %573 = vmatprep.subr.bf16.mxu0 0
    %574 = vmatpush1.bf16.xpose.msra.mxu0 0
    %575 = vmatprep.subr.bf16.mxu0 0
    %576 = vmatpush1.bf16.xpose.msra.mxu0 0
    %577 = vmatprep.subr.bf16.mxu0 0
    %578 = vmatpush1.bf16.xpose.msra.mxu0 0
    %579 = vmatprep.subr.bf16.mxu0 0
    %580 = vmatpush1.bf16.xpose.msra.mxu0 0
    %581 = vmatprep.subr.bf16.mxu0 0
    %582 = vmatpush1.bf16.xpose.msra.mxu0 0
    %583 = vmatprep.subr.bf16.mxu0 0
    %584 = vmatpush1.bf16.xpose.msra.mxu0 0
    %585 = vmatprep.subr.bf16.mxu0 0
    %586 = vmatpush1.bf16.xpose.msra.mxu0 0
    %587 = vmatprep.subr.bf16.mxu0 0
    %588 = vmatpush1.bf16.xpose.msra.mxu0 0
    %589 = vmatprep.subr.bf16.mxu0 0
    %590 = vmatpush1.bf16.xpose.msra.mxu0 0
    %591 = vmatprep.subr.bf16.mxu0 0
    %592 = vmatpush1.bf16.xpose.msra.mxu0 0
    %593 = vmatprep.subr.bf16.mxu0 0
    %594 = vmatpush1.bf16.xpose.msra.mxu0 0
    %595 = vmatprep.subr.bf16.mxu0 0
    %596 = vmatpush1.bf16.xpose.msra.mxu0 0
    %597 = vmatprep.subr.bf16.mxu0 0
    %598 = vmatpush1.bf16.xpose.msra.mxu0 0
    %599 = vmatprep.subr.bf16.mxu0 0
    %600 = vmatpush1.bf16.xpose.msra.mxu0 0
    %601 = vmatprep.mubr.bf16.mxu0 0
    %602 = vmatmul.mubr.bf16.gmra.mrb[0].mxu0 %v564
    %v603 = vpop.f32.mrb[0].mxu0
    %v604 = vadd.f32 0.0, %v603
    %v605 = vpop.f32.mrb[0].mxu0
    %v606 = vpop.f32.mrb[0].mxu0
    %v607 = vpop.f32.mrb[0].mxu0
    %608 = vdwg.mxu0
    %609 = vrot.lane.b32.xlu0 %v323, 112
    %v610 = vpop.permute.xlu0 %609
    %611 = vrot.lane.b32.xlu0 %v323, 80
    %v612 = vpop.permute.xlu0 %611
    %v614 = vsel %vm326, %v610, 0
    %v617 = vsel %vm326, %v612, 0
    %619 = vmatprep.subr.bf16.mxu0 0
    %620 = vmatpush1.bf16.xpose.msra.mxu0 %v617
    %621 = vmatprep.subr.bf16.mxu0 0
    %622 = vmatpush1.bf16.xpose.msra.mxu0 0
    %623 = vmatprep.subr.bf16.mxu0 0
    %624 = vmatpush1.bf16.xpose.msra.mxu0 0
    %625 = vmatprep.subr.bf16.mxu0 0
    %626 = vmatpush1.bf16.xpose.msra.mxu0 0
    %627 = vmatprep.subr.bf16.mxu0 0
    %628 = vmatpush1.bf16.xpose.msra.mxu0 0
    %629 = vmatprep.subr.bf16.mxu0 0
    %630 = vmatpush1.bf16.xpose.msra.mxu0 0
    %631 = vmatprep.subr.bf16.mxu0 0
    %632 = vmatpush1.bf16.xpose.msra.mxu0 0
    %633 = vmatprep.subr.bf16.mxu0 0
    %634 = vmatpush1.bf16.xpose.msra.mxu0 0
    %635 = vmatprep.subr.bf16.mxu0 0
    %636 = vmatpush1.bf16.xpose.msra.mxu0 0
    %637 = vmatprep.subr.bf16.mxu0 0
    %638 = vmatpush1.bf16.xpose.msra.mxu0 0
    %639 = vmatprep.subr.bf16.mxu0 0
    %640 = vmatpush1.bf16.xpose.msra.mxu0 0
    %641 = vmatprep.subr.bf16.mxu0 0
    %642 = vmatpush1.bf16.xpose.msra.mxu0 0
    %643 = vmatprep.subr.bf16.mxu0 0
    %644 = vmatpush1.bf16.xpose.msra.mxu0 0
    %645 = vmatprep.subr.bf16.mxu0 0
    %646 = vmatpush1.bf16.xpose.msra.mxu0 0
    %647 = vmatprep.subr.bf16.mxu0 0
    %648 = vmatpush1.bf16.xpose.msra.mxu0 0
    %649 = vmatprep.subr.bf16.mxu0 0
    %650 = vmatpush1.bf16.xpose.msra.mxu0 0
    %651 = vmatprep.mubr.bf16.mxu0 0
    %652 = vmatmul.mubr.bf16.gmra.mrb[0].mxu0 %v614
    %v653 = vpop.f32.mrb[0].mxu0
    %v654 = vadd.f32 0.0, %v653
    %v655 = vpop.f32.mrb[0].mxu0
    %v656 = vpop.f32.mrb[0].mxu0
    %v657 = vpop.f32.mrb[0].mxu0
    %658 = vdwg.mxu0
    %v659 = vmul.f32 %v604, 0.25
    %v660 = vmul.f32 %v654, 0.25
    %v661 = vadd.f32 %v659, %v428
    %v662 = vadd.f32 %v660, %v432
    %v663 = vsel %vm437, %v661, -inf
    %664 = vmax.xlane.f32.xlu0 %v663
    %v665 = vpop.xlane.xlu0 %664
    %v666 = vsel %vm437, %v662, -inf
    %667 = vmax.xlane.f32.xlu0 %v666
    %v668 = vpop.xlane.xlu0 %667
    %v669 = vsub.f32 %v661, %v665
    %v670 = vsub.f32 %v662, %v668
    %v671 = vmul.f32 %v669, 1.442695
    %v672 = vpow.pop %v671
    %v673 = vmul.f32 %v670, 1.442695
    %v674 = vpow.pop %v673
    %v675 = vsel %vm437, %v672, 0.0
    %676 = vadd.xlane.f32.xlu0 %v675
    %v677 = vpop.xlane.xlu0 %676
    %v678 = vsel %vm437, %v674, 0.0
    %679 = vadd.xlane.f32.xlu0 %v678
    %v680 = vpop.xlane.xlu0 %679
    %v681 = vrcp.pop %v677
    %v682 = vrcp.pop %v680
    %v683 = vmul.f32 %v672, %v681
    %v684 = vmul.f32 %v674, %v682
    %v685 = vpack.c.bf16 %v683, %v683
    %v686 = vpack.c.bf16 %v684, %v684
    %687 = vrot.lane.b32.xlu0 %v322, 48
    %v688 = vpop.permute.xlu0 %687
    %v690 = vsel %vm437, %v685, 0
    %v693 = vsel %vm467, %v688, 0
    %695 = vmatprep.subr.bf16.mxu0 0
    %696 = vmatpush1.bf16.msra.mxu0 %v693
    %697 = vmatprep.subr.bf16.mxu0 0
    %698 = vmatpush1.bf16.msra.mxu0 0
    %699 = vmatprep.subr.bf16.mxu0 0
    %700 = vmatpush1.bf16.msra.mxu0 0
    %701 = vmatprep.subr.bf16.mxu0 0
    %702 = vmatpush1.bf16.msra.mxu0 0
    %703 = vmatprep.subr.bf16.mxu0 0
    %704 = vmatpush1.bf16.msra.mxu0 0
    %705 = vmatprep.subr.bf16.mxu0 0
    %706 = vmatpush1.bf16.msra.mxu0 0
    %707 = vmatprep.subr.bf16.mxu0 0
    %708 = vmatpush1.bf16.msra.mxu0 0
    %709 = vmatprep.subr.bf16.mxu0 0
    %710 = vmatpush1.bf16.msra.mxu0 0
    %711 = vmatprep.subr.bf16.mxu0 0
    %712 = vmatpush1.bf16.msra.mxu0 0
    %713 = vmatprep.subr.bf16.mxu0 0
    %714 = vmatpush1.bf16.msra.mxu0 0
    %715 = vmatprep.subr.bf16.mxu0 0
    %716 = vmatpush1.bf16.msra.mxu0 0
    %717 = vmatprep.subr.bf16.mxu0 0
    %718 = vmatpush1.bf16.msra.mxu0 0
    %719 = vmatprep.subr.bf16.mxu0 0
    %720 = vmatpush1.bf16.msra.mxu0 0
    %721 = vmatprep.subr.bf16.mxu0 0
    %722 = vmatpush1.bf16.msra.mxu0 0
    %723 = vmatprep.subr.bf16.mxu0 0
    %724 = vmatpush1.bf16.msra.mxu0 0
    %725 = vmatprep.subr.bf16.mxu0 0
    %726 = vmatpush1.bf16.msra.mxu0 0
    %727 = vmatprep.mubr.bf16.mxu0 0
    %728 = vmatmul.mubr.bf16.gmra.mrb[0].mxu0 %v690
    %v729 = vpop.f32.mrb[0].mxu0
    %v730 = vadd.f32 0.0, %v729
    %v731 = vpop.f32.mrb[0].mxu0
    %v732 = vpop.f32.mrb[0].mxu0
    %v733 = vpop.f32.mrb[0].mxu0
    %734 = vdwg.mxu0
    %735 = vrot.lane.b32.xlu0 %v323, 48
    %v736 = vpop.permute.xlu0 %735
    %v738 = vsel %vm437, %v686, 0
    %v741 = vsel %vm467, %v736, 0
    %743 = vmatprep.subr.bf16.mxu0 0
    %744 = vmatpush1.bf16.msra.mxu0 %v741
    %745 = vmatprep.subr.bf16.mxu0 0
    %746 = vmatpush1.bf16.msra.mxu0 0
    %747 = vmatprep.subr.bf16.mxu0 0
    %748 = vmatpush1.bf16.msra.mxu0 0
    %749 = vmatprep.subr.bf16.mxu0 0
    %750 = vmatpush1.bf16.msra.mxu0 0
    %751 = vmatprep.subr.bf16.mxu0 0
    %752 = vmatpush1.bf16.msra.mxu0 0
    %753 = vmatprep.subr.bf16.mxu0 0
    %754 = vmatpush1.bf16.msra.mxu0 0
    %755 = vmatprep.subr.bf16.mxu0 0
    %756 = vmatpush1.bf16.msra.mxu0 0
    %757 = vmatprep.subr.bf16.mxu0 0
    %758 = vmatpush1.bf16.msra.mxu0 0
    %759 = vmatprep.subr.bf16.mxu0 0
    %760 = vmatpush1.bf16.msra.mxu0 0
    %761 = vmatprep.subr.bf16.mxu0 0
    %762 = vmatpush1.bf16.msra.mxu0 0
    %763 = vmatprep.subr.bf16.mxu0 0
    %764 = vmatpush1.bf16.msra.mxu0 0
    %765 = vmatprep.subr.bf16.mxu0 0
    %766 = vmatpush1.bf16.msra.mxu0 0
    %767 = vmatprep.subr.bf16.mxu0 0
    %768 = vmatpush1.bf16.msra.mxu0 0
    %769 = vmatprep.subr.bf16.mxu0 0
    %770 = vmatpush1.bf16.msra.mxu0 0
    %771 = vmatprep.subr.bf16.mxu0 0
    %772 = vmatpush1.bf16.msra.mxu0 0
    %773 = vmatprep.subr.bf16.mxu0 0
    %774 = vmatpush1.bf16.msra.mxu0 0
    %775 = vmatprep.mubr.bf16.mxu0 0
    %776 = vmatmul.mubr.bf16.gmra.mrb[0].mxu0 %v738
    %v777 = vpop.f32.mrb[0].mxu0
    %v778 = vadd.f32 0.0, %v777
    %v779 = vpop.f32.mrb[0].mxu0
    %v780 = vpop.f32.mrb[0].mxu0
    %v781 = vpop.f32.mrb[0].mxu0
    %782 = vdwg.mxu0
    %785 = vrot.lane.b32.xlu0 %v730, 16
    %v786 = vpop.permute.xlu0 %785
    %787 = vrot.lane.b32.xlu0 %v778, 16
    %v788 = vpop.permute.xlu0 %787
    %v791 = vsel %vm326, %v506, %v786
    %v792 = vsel %vm326, %v554, %v788
    %v793 = vld [vmem:[%s6] sm:$0xf]
    %v794 = vld [vmem:[%s6 + $0x4] sm:$0xf]
    %v795 = vld [vmem:[%s6 + $0x8] sm:$0xf]
    %v796 = vld [vmem:[%s6 + $0xc] sm:$0xf]
    %v797 = vpack.c.bf16 %v792, %v791
    %v798 = vld [vmem:[#allocation6] sm:$0x1]
    %v800 = vlaneseq
    %v801 = vshrl.u32 %v800, 7
    %v802 = vsub.s32 0, %v801
    %v803 = vrot.slane %v798, %v802
    %v809 = vunpack.c.l.b16 %v793
    %v810 = vunpack.c.l.b16 %v794
    %v811 = vunpack.c.l.b16 %v795
    %v812 = vunpack.c.l.b16 %v796
    %v813 = vpack.c.b16 %v810, %v809
    %v814 = vpack.c.b16 %v812, %v811
    %v818 = vsel %vm204, %v797, 0
    %820 = vmatprep.subr.bf16.mxu0 0
    %821 = vmatpush1.bf16.msra.mxu0 %v813
    %822 = vmatprep.subr.bf16.mxu0 0
    %823 = vmatpush1.bf16.msra.mxu0 %v814
    %824 = vmatprep.subr.bf16.mxu0 0
    %825 = vmatpush1.bf16.msra.mxu0 0
    %826 = vmatprep.subr.bf16.mxu0 0
    %827 = vmatpush1.bf16.msra.mxu0 0
    %828 = vmatprep.subr.bf16.mxu0 0
    %829 = vmatpush1.bf16.msra.mxu0 0
    %830 = vmatprep.subr.bf16.mxu0 0
    %831 = vmatpush1.bf16.msra.mxu0 0
    %832 = vmatprep.subr.bf16.mxu0 0
    %833 = vmatpush1.bf16.msra.mxu0 0
    %834 = vmatprep.subr.bf16.mxu0 0
    %835 = vmatpush1.bf16.msra.mxu0 0
    %836 = vmatprep.subr.bf16.mxu0 0
    %837 = vmatpush1.bf16.msra.mxu0 0
    %838 = vmatprep.subr.bf16.mxu0 0
    %839 = vmatpush1.bf16.msra.mxu0 0
    %840 = vmatprep.subr.bf16.mxu0 0
    %841 = vmatpush1.bf16.msra.mxu0 0
    %842 = vmatprep.subr.bf16.mxu0 0
    %843 = vmatpush1.bf16.msra.mxu0 0
    %844 = vmatprep.subr.bf16.mxu0 0
    %845 = vmatpush1.bf16.msra.mxu0 0
    %846 = vmatprep.subr.bf16.mxu0 0
    %847 = vmatpush1.bf16.msra.mxu0 0
    %848 = vmatprep.subr.bf16.mxu0 0
    %849 = vmatpush1.bf16.msra.mxu0 0
    %850 = vmatprep.subr.bf16.mxu0 0
    %851 = vmatpush1.bf16.msra.mxu0 0
    %852 = vmatprep.mubr.bf16.mxu0 0
    %853 = vmatmul.mubr.bf16.gmra.mrb[0].mxu0 %v818
    %v854 = vpop.f32.mrb[0].mxu0
    %v855 = vadd.f32 %v803, %v854
    %v856 = vpop.f32.mrb[0].mxu0
    %v857 = vpop.f32.mrb[0].mxu0
    %v858 = vadd.f32 %v803, %v857
    %v859 = vpop.f32.mrb[0].mxu0
    %860 = vdwg.mxu0
    %v861 = vadd.f32 %v855, %v246
    %v862 = vadd.f32 %v858, %v247
    %v863 = vld [vmem:[#allocation7] sm:$0x1]
    %v864 = vld [vmem:[#allocation9] sm:$0x1]
    %v865 = vsel %vm204, %v861, 0.0
    %866 = vadd.xlane.f32.xlu0 %v865
    %v867 = vpop.xlane.xlu0 %866
    %v868 = vsel %vm204, %v862, 0.0
    %869 = vadd.xlane.f32.xlu0 %v868
    %v870 = vpop.xlane.xlu0 %869
    %v871 = vmul.f32 %v867, %v211
    %v872 = vmul.f32 %v870, %v211
    %v873 = vsub.f32 %v861, %v871
    %v874 = vsub.f32 %v862, %v872
    %v875 = vmul.f32 %v873, %v873
    %v876 = vmul.f32 %v874, %v874
    %v877 = vsel %vm204, %v875, 0.0
    %878 = vadd.xlane.f32.xlu0 %v877
    %v879 = vpop.xlane.xlu0 %878
    %v880 = vsel %vm204, %v876, 0.0
    %881 = vadd.xlane.f32.xlu0 %v880
    %v882 = vpop.xlane.xlu0 %881
    %v883 = vmul.f32 %v879, %v211
    %v884 = vmul.f32 %v882, %v211
    %v885 = vadd.f32 %v883, 1e-12
    %v886 = vadd.f32 %v884, 1e-12
    %v887 = vrsqrt.pop %v885
    %v888 = vrsqrt.pop %v886
    %v889 = vmul.f32 %v873, %v887
    %v890 = vmul.f32 %v874, %v888
    %v892 = vlaneseq
    %v893 = vshrl.u32 %v892, 7
    %v894 = vsub.s32 0, %v893
    %v895 = vrot.slane %v863, %v894
    %v897 = vmul.f32 %v889, %v895
    %v898 = vmul.f32 %v890, %v895
    %v900 = vlaneseq
    %v901 = vshrl.u32 %v900, 7
    %v902 = vsub.s32 0, %v901
    %v903 = vrot.slane %v864, %v902
    %v905 = vadd.f32 %v897, %v903
    %v906 = vadd.f32 %v898, %v903
    %v907 = vld [vmem:[%s10] sm:$0xf]
    %v908 = vld [vmem:[%s10 + $0x4] sm:$0xf]
    %v909 = vld [vmem:[%s10 + $0x8] sm:$0xf]
    %v910 = vld [vmem:[%s10 + $0xc] sm:$0xf]
    %v911 = vpack.c.bf16 %v906, %v905
    %v912 = vld [vmem:[#allocation10] sm:$0x1]
    %v914 = vlaneseq
    %v915 = vshrl.u32 %v914, 7
    %v916 = vsub.s32 0, %v915
    %v917 = vrot.slane %v912, %v916
    %v923 = vunpack.c.l.b16 %v907
    %v924 = vunpack.c.l.b16 %v908
    %v925 = vunpack.c.l.b16 %v909
    %v926 = vunpack.c.l.b16 %v910
    %v927 = vpack.c.b16 %v924, %v923
    %v928 = vpack.c.b16 %v926, %v925
    %v932 = vsel %vm204, %v911, 0
    %934 = vmatprep.subr.bf16.mxu0 0
    %935 = vmatpush1.bf16.msra.mxu0 %v927
    %936 = vmatprep.subr.bf16.mxu0 0
    %937 = vmatpush1.bf16.msra.mxu0 %v928
    %938 = vmatprep.subr.bf16.mxu0 0
    %939 = vmatpush1.bf16.msra.mxu0 0
    %940 = vmatprep.subr.bf16.mxu0 0
    %941 = vmatpush1.bf16.msra.mxu0 0
    %942 = vmatprep.subr.bf16.mxu0 0
    %943 = vmatpush1.bf16.msra.mxu0 0
    %944 = vmatprep.subr.bf16.mxu0 0
    %945 = vmatpush1.bf16.msra.mxu0 0
    %946 = vmatprep.subr.bf16.mxu0 0
    %947 = vmatpush1.bf16.msra.mxu0 0
    %948 = vmatprep.subr.bf16.mxu0 0
    %949 = vmatpush1.bf16.msra.mxu0 0
    %950 = vmatprep.subr.bf16.mxu0 0
    %951 = vmatpush1.bf16.msra.mxu0 0
    %952 = vmatprep.subr.bf16.mxu0 0
    %953 = vmatpush1.bf16.msra.mxu0 0
    %954 = vmatprep.subr.bf16.mxu0 0
    %955 = vmatpush1.bf16.msra.mxu0 0
    %956 = vmatprep.subr.bf16.mxu0 0
    %957 = vmatpush1.bf16.msra.mxu0 0
    %958 = vmatprep.subr.bf16.mxu0 0
    %959 = vmatpush1.bf16.msra.mxu0 0
    %960 = vmatprep.subr.bf16.mxu0 0
    %961 = vmatpush1.bf16.msra.mxu0 0
    %962 = vmatprep.subr.bf16.mxu0 0
    %963 = vmatpush1.bf16.msra.mxu0 0
    %964 = vmatprep.subr.bf16.mxu0 0
    %965 = vmatpush1.bf16.msra.mxu0 0
    %966 = vmatprep.mubr.bf16.mxu0 0
    %967 = vmatmul.mubr.bf16.gmra.mrb[0].mxu0 %v932
    %v968 = vpop.f32.mrb[0].mxu0
    %v969 = vadd.f32 %v917, %v968
    %v970 = vpop.f32.mrb[0].mxu0
    %v971 = vpop.f32.mrb[0].mxu0
    %v972 = vadd.f32 %v917, %v971
    %v973 = vpop.f32.mrb[0].mxu0
    %974 = vdwg.mxu0
    %v975 = vmul.f32 %v969, 0.5
    %v976 = vmul.f32 %v972, 0.5
    %v977 = vmul.f32 %v969, 0.044715
    %v978 = vmul.f32 %v972, 0.044715
    %v979 = vmul.f32 %v977, %v969
    %v980 = vmul.f32 %v978, %v972
    %v981 = vmul.f32 %v979, %v969
    %v982 = vmul.f32 %v980, %v972
    %v983 = vadd.f32 %v969, %v981
    %v984 = vadd.f32 %v972, %v982
    %v985 = vmul.f32 %v983, 0.7978846
    %v986 = vmul.f32 %v984, 0.7978846
    %v987 = vtanh.pop %v985
    %v988 = vtanh.pop %v986
    %v989 = vadd.f32 %v987, 1.0
    %v990 = vadd.f32 %v988, 1.0
    %v991 = vmul.f32 %v975, %v989
    %v992 = vmul.f32 %v976, %v990
    %v993 = vld [vmem:[%s12] sm:$0xf]
    %v994 = vld [vmem:[%s12 + $0x4] sm:$0xf]
    %v995 = vld [vmem:[%s12 + $0x8] sm:$0xf]
    %v996 = vld [vmem:[%s12 + $0xc] sm:$0xf]
    %v997 = vld [vmem:[%s12 + $0x10] sm:$0xf]
    %v998 = vld [vmem:[%s12 + $0x14] sm:$0xf]
    %v999 = vld [vmem:[%s12 + $0x18] sm:$0xf]
    %v1000 = vld [vmem:[%s12 + $0x1c] sm:$0xf]
    %v1001 = vpack.c.bf16 %v992, %v991
    %v1002 = vld [vmem:[#allocation12] sm:$0x1]
    %v1004 = vlaneseq
    %v1005 = vshrl.u32 %v1004, 7
    %v1006 = vsub.s32 0, %v1005
    %v1007 = vrot.slane %v1002, %v1006
    %v1017 = vunpack.c.l.b16 %v993
    %v1018 = vunpack.c.l.b16 %v994
    %v1019 = vunpack.c.l.b16 %v995
    %v1020 = vunpack.c.l.b16 %v996
    %v1021 = vunpack.c.l.b16 %v997
    %v1022 = vunpack.c.l.b16 %v998
    %v1023 = vunpack.c.l.b16 %v999
    %v1024 = vunpack.c.l.b16 %v1000
    %v1025 = vpack.c.b16 %v1018, %v1017
    %v1026 = vpack.c.b16 %v1020, %v1019
    %v1027 = vpack.c.b16 %v1022, %v1021
    %v1028 = vpack.c.b16 %v1024, %v1023
    %vm1033 = vcmask 523264
    %v1035 = vsel %vm1033, %v1001, 0
    %1037 = vmatprep.subr.bf16.mxu0 0
    %1038 = vmatpush1.bf16.msra.mxu0 %v1025
    %1039 = vmatprep.subr.bf16.mxu0 0
    %1040 = vmatpush1.bf16.msra.mxu0 %v1026
    %1041 = vmatprep.subr.bf16.mxu0 0
    %1042 = vmatpush1.bf16.msra.mxu0 %v1027
    %1043 = vmatprep.subr.bf16.mxu0 0
    %1044 = vmatpush1.bf16.msra.mxu0 %v1028
    %1045 = vmatprep.subr.bf16.mxu0 0
    %1046 = vmatpush1.bf16.msra.mxu0 0
    %1047 = vmatprep.subr.bf16.mxu0 0
    %1048 = vmatpush1.bf16.msra.mxu0 0
    %1049 = vmatprep.subr.bf16.mxu0 0
    %1050 = vmatpush1.bf16.msra.mxu0 0
    %1051 = vmatprep.subr.bf16.mxu0 0
    %1052 = vmatpush1.bf16.msra.mxu0 0
    %1053 = vmatprep.subr.bf16.mxu0 0
    %1054 = vmatpush1.bf16.msra.mxu0 0
    %1055 = vmatprep.subr.bf16.mxu0 0
    %1056 = vmatpush1.bf16.msra.mxu0 0
    %1057 = vmatprep.subr.bf16.mxu0 0
    %1058 = vmatpush1.bf16.msra.mxu0 0
    %1059 = vmatprep.subr.bf16.mxu0 0
    %1060 = vmatpush1.bf16.msra.mxu0 0
    %1061 = vmatprep.subr.bf16.mxu0 0
    %1062 = vmatpush1.bf16.msra.mxu0 0
    %1063 = vmatprep.subr.bf16.mxu0 0
    %1064 = vmatpush1.bf16.msra.mxu0 0
    %1065 = vmatprep.subr.bf16.mxu0 0
    %1066 = vmatpush1.bf16.msra.mxu0 0
    %1067 = vmatprep.subr.bf16.mxu0 0
    %1068 = vmatpush1.bf16.msra.mxu0 0
    %1069 = vmatprep.mubr.bf16.mxu0 0
    %1070 = vmatmul.mubr.bf16.gmra.mrb[0].mxu0 %v1035
    %v1071 = vpop.f32.mrb[0].mxu0
    %v1072 = vadd.f32 %v1007, %v1071
    %v1073 = vpop.f32.mrb[0].mxu0
    %v1074 = vpop.f32.mrb[0].mxu0
    %v1075 = vadd.f32 %v1007, %v1074
    %v1076 = vpop.f32.mrb[0].mxu0
    %1077 = vdwg.mxu0
    %v1078 = vadd.f32 %v1072, %v905
    %v1079 = vadd.f32 %v1075, %v906
    %v1080 = vld [vmem:[%s14] sm:$0x1]
    %v1081 = vld [vmem:[%s15] sm:$0x1]
    %v1082 = vsel %vm204, %v1078, 0.0
    %1083 = vadd.xlane.f32.xlu0 %v1082
    %v1084 = vpop.xlane.xlu0 %1083
    %v1085 = vsel %vm204, %v1079, 0.0
    %1086 = vadd.xlane.f32.xlu0 %v1085
    %v1087 = vpop.xlane.xlu0 %1086
    %v1088 = vmul.f32 %v1084, %v211
    %v1089 = vmul.f32 %v1087, %v211
    %v1090 = vsub.f32 %v1078, %v1088
    %v1091 = vsub.f32 %v1079, %v1089
    %v1092 = vmul.f32 %v1090, %v1090
    %v1093 = vmul.f32 %v1091, %v1091
    %v1094 = vsel %vm204, %v1092, 0.0
    %1095 = vadd.xlane.f32.xlu0 %v1094
    %v1096 = vpop.xlane.xlu0 %1095
    %v1097 = vsel %vm204, %v1093, 0.0
    %1098 = vadd.xlane.f32.xlu0 %v1097
    %v1099 = vpop.xlane.xlu0 %1098
    %v1100 = vmul.f32 %v1096, %v211
    %v1101 = vmul.f32 %v1099, %v211
    %v1102 = vadd.f32 %v1100, 1e-12
    %v1103 = vadd.f32 %v1101, 1e-12
    %v1104 = vrsqrt.pop %v1102
    %v1105 = vrsqrt.pop %v1103
    %v1106 = vmul.f32 %v1090, %v1104
    %v1107 = vmul.f32 %v1091, %v1105
    %v1109 = vlaneseq
    %v1110 = vshrl.u32 %v1109, 7
    %v1111 = vsub.s32 0, %v1110
    %v1112 = vrot.slane %v1080, %v1111
    %v1114 = vmul.f32 %v1106, %v1112
    %v1115 = vmul.f32 %v1107, %v1112
    %v1117 = vlaneseq
    %v1118 = vshrl.u32 %v1117, 7
    %v1119 = vsub.s32 0, %v1118
    %v1120 = vrot.slane %v1081, %v1119
    %v1122 = vadd.f32 %v1114, %v1120
    %v1123 = vadd.f32 %v1115, %v1120
    %s1124 = scalar_lea.vmem %s4, 16
    %v1125 = vld [vmem:[%s1124] sm:$0xf]
    %v1126 = vld [vmem:[%s1124 + $0x4] sm:$0xf]
    %v1127 = vld [vmem:[%s1124 + $0x8] sm:$0xf]
    %v1128 = vld [vmem:[%s1124 + $0xc] sm:$0xf]
    %v1129 = vpack.c.bf16 %v1123, %v1122
    %s1130 = scalar_lea.vmem %s5, 1
    %v1131 = vld [vmem:[%s1130] sm:$0x1]
    %v1133 = vlaneseq
    %v1134 = vshrl.u32 %v1133, 7
    %v1135 = vsub.s32 0, %v1134
    %v1136 = vrot.slane %v1131, %v1135
    %v1142 = vunpack.c.l.b16 %v1125
    %v1143 = vunpack.c.l.b16 %v1126
    %v1144 = vunpack.c.l.b16 %v1127
    %v1145 = vunpack.c.l.b16 %v1128
    %v1146 = vpack.c.b16 %v1143, %v1142
    %v1147 = vpack.c.b16 %v1145, %v1144
    %v1151 = vsel %vm204, %v1129, 0
    %1153 = vmatprep.subr.bf16.mxu0 0
    %1154 = vmatpush1.bf16.msra.mxu0 %v1146
    %1155 = vmatprep.subr.bf16.mxu0 0
    %1156 = vmatpush1.bf16.msra.mxu0 %v1147
    %1157 = vmatprep.subr.bf16.mxu0 0
    %1158 = vmatpush1.bf16.msra.mxu0 0
    %1159 = vmatprep.subr.bf16.mxu0 0
    %1160 = vmatpush1.bf16.msra.mxu0 0
    %1161 = vmatprep.subr.bf16.mxu0 0
    %1162 = vmatpush1.bf16.msra.mxu0 0
    %1163 = vmatprep.subr.bf16.mxu0 0
    %1164 = vmatpush1.bf16.msra.mxu0 0
    %1165 = vmatprep.subr.bf16.mxu0 0
    %1166 = vmatpush1.bf16.msra.mxu0 0
    %1167 = vmatprep.subr.bf16.mxu0 0
    %1168 = vmatpush1.bf16.msra.mxu0 0
    %1169 = vmatprep.subr.bf16.mxu0 0
    %1170 = vmatpush1.bf16.msra.mxu0 0
    %1171 = vmatprep.subr.bf16.mxu0 0
    %1172 = vmatpush1.bf16.msra.mxu0 0
    %1173 = vmatprep.subr.bf16.mxu0 0
    %1174 = vmatpush1.bf16.msra.mxu0 0
    %1175 = vmatprep.subr.bf16.mxu0 0
    %1176 = vmatpush1.bf16.msra.mxu0 0
    %1177 = vmatprep.subr.bf16.mxu0 0
    %1178 = vmatpush1.bf16.msra.mxu0 0
    %1179 = vmatprep.subr.bf16.mxu0 0
    %1180 = vmatpush1.bf16.msra.mxu0 0
    %1181 = vmatprep.subr.bf16.mxu0 0
    %1182 = vmatpush1.bf16.msra.mxu0 0
    %1183 = vmatprep.subr.bf16.mxu0 0
    %1184 = vmatpush1.bf16.msra.mxu0 0
    %1185 = vmatprep.mubr.bf16.mxu0 0
    %1186 = vmatmul.mubr.bf16.gmra.mrb[0].mxu0 %v1151
    %v1187 = vpop.f32.mrb[0].mxu0
    %v1188 = vadd.f32 %v1136, %v1187
    %v1189 = vpop.f32.mrb[0].mxu0
    %v1190 = vpop.f32.mrb[0].mxu0
    %v1191 = vadd.f32 %v1136, %v1190
    %v1192 = vpop.f32.mrb[0].mxu0
    %1193 = vdwg.mxu0
    %v1194 = vpack.c.bf16 %v1191, %v1188
    %v1196 = vunpack.c.l.b16 %v1194
    %v1197 = vunpack.c.h.b16 %v1194
    %v1198 = vpack.c.b16 %v1196, %v1196
    %v1199 = vpack.c.b16 %v1197, %v1197
    %1200 = vrot.lane.b32.xlu0 %v1198, 96
    %v1201 = vpop.permute.xlu0 %1200
    %v1203 = vsel %vm326, %v1198, 0
    %v1206 = vsel %vm326, %v1201, 0
    %1208 = vmatprep.subr.bf16.mxu0 0
    %1209 = vmatpush1.bf16.xpose.msra.mxu0 %v1206
    %1210 = vmatprep.subr.bf16.mxu0 0
    %1211 = vmatpush1.bf16.xpose.msra.mxu0 0
    %1212 = vmatprep.subr.bf16.mxu0 0
    %1213 = vmatpush1.bf16.xpose.msra.mxu0 0
    %1214 = vmatprep.subr.bf16.mxu0 0
    %1215 = vmatpush1.bf16.xpose.msra.mxu0 0
    %1216 = vmatprep.subr.bf16.mxu0 0
    %1217 = vmatpush1.bf16.xpose.msra.mxu0 0
    %1218 = vmatprep.subr.bf16.mxu0 0
    %1219 = vmatpush1.bf16.xpose.msra.mxu0 0
    %1220 = vmatprep.subr.bf16.mxu0 0
    %1221 = vmatpush1.bf16.xpose.msra.mxu0 0
    %1222 = vmatprep.subr.bf16.mxu0 0
    %1223 = vmatpush1.bf16.xpose.msra.mxu0 0
    %1224 = vmatprep.subr.bf16.mxu0 0
    %1225 = vmatpush1.bf16.xpose.msra.mxu0 0
    %1226 = vmatprep.subr.bf16.mxu0 0
    %1227 = vmatpush1.bf16.xpose.msra.mxu0 0
    %1228 = vmatprep.subr.bf16.mxu0 0
    %1229 = vmatpush1.bf16.xpose.msra.mxu0 0
    %1230 = vmatprep.subr.bf16.mxu0 0
    %1231 = vmatpush1.bf16.xpose.msra.mxu0 0
    %1232 = vmatprep.subr.bf16.mxu0 0
    %1233 = vmatpush1.bf16.xpose.msra.mxu0 0
    %1234 = vmatprep.subr.bf16.mxu0 0
    %1235 = vmatpush1.bf16.xpose.msra.mxu0 0
    %1236 = vmatprep.subr.bf16.mxu0 0
    %1237 = vmatpush1.bf16.xpose.msra.mxu0 0
    %1238 = vmatprep.subr.bf16.mxu0 0
    %1239 = vmatpush1.bf16.xpose.msra.mxu0 0
    %1240 = vmatprep.mubr.bf16.mxu0 0
    %1241 = vmatmul.mubr.bf16.gmra.mrb[0].mxu0 %v1203
    %v1242 = vpop.f32.mrb[0].mxu0
    %v1243 = vadd.f32 0.0, %v1242
    %v1244 = vpop.f32.mrb[0].mxu0
    %v1245 = vpop.f32.mrb[0].mxu0
    %v1246 = vpop.f32.mrb[0].mxu0
    %1247 = vdwg.mxu0
    %1248 = vrot.lane.b32.xlu0 %v1199, 96
    %v1249 = vpop.permute.xlu0 %1248
    %v1251 = vsel %vm326, %v1199, 0
    %v1254 = vsel %vm326, %v1249, 0
    %1256 = vmatprep.subr.bf16.mxu0 0
    %1257 = vmatpush1.bf16.xpose.msra.mxu0 %v1254
    %1258 = vmatprep.subr.bf16.mxu0 0
    %1259 = vmatpush1.bf16.xpose.msra.mxu0 0
    %1260 = vmatprep.subr.bf16.mxu0 0
    %1261 = vmatpush1.bf16.xpose.msra.mxu0 0
    %1262 = vmatprep.subr.bf16.mxu0 0
    %1263 = vmatpush1.bf16.xpose.msra.mxu0 0
    %1264 = vmatprep.subr.bf16.mxu0 0
    %1265 = vmatpush1.bf16.xpose.msra.mxu0 0
    %1266 = vmatprep.subr.bf16.mxu0 0
    %1267 = vmatpush1.bf16.xpose.msra.mxu0 0
    %1268 = vmatprep.subr.bf16.mxu0 0
    %1269 = vmatpush1.bf16.xpose.msra.mxu0 0
    %1270 = vmatprep.subr.bf16.mxu0 0
    %1271 = vmatpush1.bf16.xpose.msra.mxu0 0
    %1272 = vmatprep.subr.bf16.mxu0 0
    %1273 = vmatpush1.bf16.xpose.msra.mxu0 0
    %1274 = vmatprep.subr.bf16.mxu0 0
    %1275 = vmatpush1.bf16.xpose.msra.mxu0 0
    %1276 = vmatprep.subr.bf16.mxu0 0
    %1277 = vmatpush1.bf16.xpose.msra.mxu0 0
    %1278 = vmatprep.subr.bf16.mxu0 0
    %1279 = vmatpush1.bf16.xpose.msra.mxu0 0
    %1280 = vmatprep.subr.bf16.mxu0 0
    %1281 = vmatpush1.bf16.xpose.msra.mxu0 0
    %1282 = vmatprep.subr.bf16.mxu0 0
    %1283 = vmatpush1.bf16.xpose.msra.mxu0 0
    %1284 = vmatprep.subr.bf16.mxu0 0
    %1285 = vmatpush1.bf16.xpose.msra.mxu0 0
    %1286 = vmatprep.subr.bf16.mxu0 0
    %1287 = vmatpush1.bf16.xpose.msra.mxu0 0
    %1288 = vmatprep.mubr.bf16.mxu0 0
    %1289 = vmatmul.mubr.bf16.gmra.mrb[0].mxu0 %v1251
    %v1290 = vpop.f32.mrb[0].mxu0
    %v1291 = vadd.f32 0.0, %v1290
    %v1292 = vpop.f32.mrb[0].mxu0
    %v1293 = vpop.f32.mrb[0].mxu0
    %v1294 = vpop.f32.mrb[0].mxu0
    %1295 = vdwg.mxu0
    %v1296 = vmul.f32 %v1243, 0.25
    %v1297 = vmul.f32 %v1291, 0.25
    %v1298 = vadd.f32 %v1296, %v428
    %v1299 = vadd.f32 %v1297, %v432
    %v1300 = vsel %vm437, %v1298, -inf
    %1301 = vmax.xlane.f32.xlu0 %v1300
    %v1302 = vpop.xlane.xlu0 %1301
    %v1303 = vsel %vm437, %v1299, -inf
    %1304 = vmax.xlane.f32.xlu0 %v1303
    %v1305 = vpop.xlane.xlu0 %1304
    %v1306 = vsub.f32 %v1298, %v1302
    %v1307 = vsub.f32 %v1299, %v1305
    %v1308 = vmul.f32 %v1306, 1.442695
    %v1309 = vpow.pop %v1308
    %v1310 = vmul.f32 %v1307, 1.442695
    %v1311 = vpow.pop %v1310
    %v1312 = vsel %vm437, %v1309, 0.0
    %1313 = vadd.xlane.f32.xlu0 %v1312
    %v1314 = vpop.xlane.xlu0 %1313
    %v1315 = vsel %vm437, %v1311, 0.0
    %1316 = vadd.xlane.f32.xlu0 %v1315
    %v1317 = vpop.xlane.xlu0 %1316
    %v1318 = vrcp.pop %v1314
    %v1319 = vrcp.pop %v1317
    %v1320 = vmul.f32 %v1309, %v1318
    %v1321 = vmul.f32 %v1311, %v1319
    %v1322 = vpack.c.bf16 %v1320, %v1320
    %v1323 = vpack.c.bf16 %v1321, %v1321
    %1324 = vrot.lane.b32.xlu0 %v1198, 64
    %v1325 = vpop.permute.xlu0 %1324
    %v1327 = vsel %vm437, %v1322, 0
    %v1330 = vsel %vm467, %v1325, 0
    %1332 = vmatprep.subr.bf16.mxu0 0
    %1333 = vmatpush1.bf16.msra.mxu0 %v1330
    %1334 = vmatprep.subr.bf16.mxu0 0
    %1335 = vmatpush1.bf16.msra.mxu0 0
    %1336 = vmatprep.subr.bf16.mxu0 0
    %1337 = vmatpush1.bf16.msra.mxu0 0
    %1338 = vmatprep.subr.bf16.mxu0 0
    %1339 = vmatpush1.bf16.msra.mxu0 0
    %1340 = vmatprep.subr.bf16.mxu0 0
    %1341 = vmatpush1.bf16.msra.mxu0 0
    %1342 = vmatprep.subr.bf16.mxu0 0
    %1343 = vmatpush1.bf16.msra.mxu0 0
    %1344 = vmatprep.subr.bf16.mxu0 0
    %1345 = vmatpush1.bf16.msra.mxu0 0
    %1346 = vmatprep.subr.bf16.mxu0 0
    %1347 = vmatpush1.bf16.msra.mxu0 0
    %1348 = vmatprep.subr.bf16.mxu0 0
    %1349 = vmatpush1.bf16.msra.mxu0 0
    %1350 = vmatprep.subr.bf16.mxu0 0
    %1351 = vmatpush1.bf16.msra.mxu0 0
    %1352 = vmatprep.subr.bf16.mxu0 0
    %1353 = vmatpush1.bf16.msra.mxu0 0
    %1354 = vmatprep.subr.bf16.mxu0 0
    %1355 = vmatpush1.bf16.msra.mxu0 0
    %1356 = vmatprep.subr.bf16.mxu0 0
    %1357 = vmatpush1.bf16.msra.mxu0 0
    %1358 = vmatprep.subr.bf16.mxu0 0
    %1359 = vmatpush1.bf16.msra.mxu0 0
    %1360 = vmatprep.subr.bf16.mxu0 0
    %1361 = vmatpush1.bf16.msra.mxu0 0
    %1362 = vmatprep.subr.bf16.mxu0 0
    %1363 = vmatpush1.bf16.msra.mxu0 0
    %1364 = vmatprep.mubr.bf16.mxu0 0
    %1365 = vmatmul.mubr.bf16.gmra.mrb[0].mxu0 %v1327
    %v1366 = vpop.f32.mrb[0].mxu0
    %v1367 = vadd.f32 0.0, %v1366
    %v1368 = vpop.f32.mrb[0].mxu0
    %v1369 = vpop.f32.mrb[0].mxu0
    %v1370 = vpop.f32.mrb[0].mxu0
    %1371 = vdwg.mxu0
    %1372 = vrot.lane.b32.xlu0 %v1199, 64
    %v1373 = vpop.permute.xlu0 %1372
    %v1375 = vsel %vm437, %v1323, 0
    %v1378 = vsel %vm467, %v1373, 0
    %1380 = vmatprep.subr.bf16.mxu0 0
    %1381 = vmatpush1.bf16.msra.mxu0 %v1378
    %1382 = vmatprep.subr.bf16.mxu0 0
    %1383 = vmatpush1.bf16.msra.mxu0 0
    %1384 = vmatprep.subr.bf16.mxu0 0
    %1385 = vmatpush1.bf16.msra.mxu0 0
    %1386 = vmatprep.subr.bf16.mxu0 0
    %1387 = vmatpush1.bf16.msra.mxu0 0
    %1388 = vmatprep.subr.bf16.mxu0 0
    %1389 = vmatpush1.bf16.msra.mxu0 0
    %1390 = vmatprep.subr.bf16.mxu0 0
    %1391 = vmatpush1.bf16.msra.mxu0 0
    %1392 = vmatprep.subr.bf16.mxu0 0
    %1393 = vmatpush1.bf16.msra.mxu0 0
    %1394 = vmatprep.subr.bf16.mxu0 0
    %1395 = vmatpush1.bf16.msra.mxu0 0
    %1396 = vmatprep.subr.bf16.mxu0 0
    %1397 = vmatpush1.bf16.msra.mxu0 0
    %1398 = vmatprep.subr.bf16.mxu0 0
    %1399 = vmatpush1.bf16.msra.mxu0 0
    %1400 = vmatprep.subr.bf16.mxu0 0
    %1401 = vmatpush1.bf16.msra.mxu0 0
    %1402 = vmatprep.subr.bf16.mxu0 0
    %1403 = vmatpush1.bf16.msra.mxu0 0
    %1404 = vmatprep.subr.bf16.mxu0 0
    %1405 = vmatpush1.bf16.msra.mxu0 0
    %1406 = vmatprep.subr.bf16.mxu0 0
    %1407 = vmatpush1.bf16.msra.mxu0 0
    %1408 = vmatprep.subr.bf16.mxu0 0
    %1409 = vmatpush1.bf16.msra.mxu0 0
    %1410 = vmatprep.subr.bf16.mxu0 0
    %1411 = vmatpush1.bf16.msra.mxu0 0
    %1412 = vmatprep.mubr.bf16.mxu0 0
    %1413 = vmatmul.mubr.bf16.gmra.mrb[0].mxu0 %v1375
    %v1414 = vpop.f32.mrb[0].mxu0
    %v1415 = vadd.f32 0.0, %v1414
    %v1416 = vpop.f32.mrb[0].mxu0
    %v1417 = vpop.f32.mrb[0].mxu0
    %v1418 = vpop.f32.mrb[0].mxu0
    %1419 = vdwg.mxu0
    %1420 = vrot.lane.b32.xlu0 %v1198, 112
    %v1421 = vpop.permute.xlu0 %1420
    %1422 = vrot.lane.b32.xlu0 %v1198, 80
    %v1423 = vpop.permute.xlu0 %1422
    %v1425 = vsel %vm326, %v1421, 0
    %v1428 = vsel %vm326, %v1423, 0
    %1430 = vmatprep.subr.bf16.mxu0 0
    %1431 = vmatpush1.bf16.xpose.msra.mxu0 %v1428
    %1432 = vmatprep.subr.bf16.mxu0 0
    %1433 = vmatpush1.bf16.xpose.msra.mxu0 0
    %1434 = vmatprep.subr.bf16.mxu0 0
    %1435 = vmatpush1.bf16.xpose.msra.mxu0 0
    %1436 = vmatprep.subr.bf16.mxu0 0
    %1437 = vmatpush1.bf16.xpose.msra.mxu0 0
    %1438 = vmatprep.subr.bf16.mxu0 0
    %1439 = vmatpush1.bf16.xpose.msra.mxu0 0
    %1440 = vmatprep.subr.bf16.mxu0 0
    %1441 = vmatpush1.bf16.xpose.msra.mxu0 0
    %1442 = vmatprep.subr.bf16.mxu0 0
    %1443 = vmatpush1.bf16.xpose.msra.mxu0 0
    %1444 = vmatprep.subr.bf16.mxu0 0
    %1445 = vmatpush1.bf16.xpose.msra.mxu0 0
    %1446 = vmatprep.subr.bf16.mxu0 0
    %1447 = vmatpush1.bf16.xpose.msra.mxu0 0
    %1448 = vmatprep.subr.bf16.mxu0 0
    %1449 = vmatpush1.bf16.xpose.msra.mxu0 0
    %1450 = vmatprep.subr.bf16.mxu0 0
    %1451 = vmatpush1.bf16.xpose.msra.mxu0 0
    %1452 = vmatprep.subr.bf16.mxu0 0
    %1453 = vmatpush1.bf16.xpose.msra.mxu0 0
    %1454 = vmatprep.subr.bf16.mxu0 0
    %1455 = vmatpush1.bf16.xpose.msra.mxu0 0
    %1456 = vmatprep.subr.bf16.mxu0 0
    %1457 = vmatpush1.bf16.xpose.msra.mxu0 0
    %1458 = vmatprep.subr.bf16.mxu0 0
    %1459 = vmatpush1.bf16.xpose.msra.mxu0 0
    %1460 = vmatprep.subr.bf16.mxu0 0
    %1461 = vmatpush1.bf16.xpose.msra.mxu0 0
    %1462 = vmatprep.mubr.bf16.mxu0 0
    %1463 = vmatmul.mubr.bf16.gmra.mrb[0].mxu0 %v1425
    %v1464 = vpop.f32.mrb[0].mxu0
    %v1465 = vadd.f32 0.0, %v1464
    %v1466 = vpop.f32.mrb[0].mxu0
    %v1467 = vpop.f32.mrb[0].mxu0
    %v1468 = vpop.f32.mrb[0].mxu0
    %1469 = vdwg.mxu0
    %1470 = vrot.lane.b32.xlu0 %v1199, 112
    %v1471 = vpop.permute.xlu0 %1470
    %1472 = vrot.lane.b32.xlu0 %v1199, 80
    %v1473 = vpop.permute.xlu0 %1472
    %v1475 = vsel %vm326, %v1471, 0
    %v1478 = vsel %vm326, %v1473, 0
    %1480 = vmatprep.subr.bf16.mxu0 0
    %1481 = vmatpush1.bf16.xpose.msra.mxu0 %v1478
    %1482 = vmatprep.subr.bf16.mxu0 0
    %1483 = vmatpush1.bf16.xpose.msra.mxu0 0
    %1484 = vmatprep.subr.bf16.mxu0 0
    %1485 = vmatpush1.bf16.xpose.msra.mxu0 0
    %1486 = vmatprep.subr.bf16.mxu0 0
    %1487 = vmatpush1.bf16.xpose.msra.mxu0 0
    %1488 = vmatprep.subr.bf16.mxu0 0
    %1489 = vmatpush1.bf16.xpose.msra.mxu0 0
    %1490 = vmatprep.subr.bf16.mxu0 0
    %1491 = vmatpush1.bf16.xpose.msra.mxu0 0
    %1492 = vmatprep.subr.bf16.mxu0 0
    %1493 = vmatpush1.bf16.xpose.msra.mxu0 0
    %1494 = vmatprep.subr.bf16.mxu0 0
    %1495 = vmatpush1.bf16.xpose.msra.mxu0 0
    %1496 = vmatprep.subr.bf16.mxu0 0
    %1497 = vmatpush1.bf16.xpose.msra.mxu0 0
    %1498 = vmatprep.subr.bf16.mxu0 0
    %1499 = vmatpush1.bf16.xpose.msra.mxu0 0
    %1500 = vmatprep.subr.bf16.mxu0 0
    %1501 = vmatpush1.bf16.xpose.msra.mxu0 0
    %1502 = vmatprep.subr.bf16.mxu0 0
    %1503 = vmatpush1.bf16.xpose.msra.mxu0 0
    %1504 = vmatprep.subr.bf16.mxu0 0
    %1505 = vmatpush1.bf16.xpose.msra.mxu0 0
    %1506 = vmatprep.subr.bf16.mxu0 0
    %1507 = vmatpush1.bf16.xpose.msra.mxu0 0
    %1508 = vmatprep.subr.bf16.mxu0 0
    %1509 = vmatpush1.bf16.xpose.msra.mxu0 0
    %1510 = vmatprep.subr.bf16.mxu0 0
    %1511 = vmatpush1.bf16.xpose.msra.mxu0 0
    %1512 = vmatprep.mubr.bf16.mxu0 0
    %1513 = vmatmul.mubr.bf16.gmra.mrb[0].mxu0 %v1475
    %v1514 = vpop.f32.mrb[0].mxu0
    %v1515 = vadd.f32 0.0, %v1514
    %v1516 = vpop.f32.mrb[0].mxu0
    %v1517 = vpop.f32.mrb[0].mxu0
    %v1518 = vpop.f32.mrb[0].mxu0
    %1519 = vdwg.mxu0
    %v1520 = vmul.f32 %v1465, 0.25
    %v1521 = vmul.f32 %v1515, 0.25
    %v1522 = vadd.f32 %v1520, %v428
    %v1523 = vadd.f32 %v1521, %v432
    %v1524 = vsel %vm437, %v1522, -inf
    %1525 = vmax.xlane.f32.xlu0 %v1524
    %v1526 = vpop.xlane.xlu0 %1525
    %v1527 = vsel %vm437, %v1523, -inf
    %1528 = vmax.xlane.f32.xlu0 %v1527
    %v1529 = vpop.xlane.xlu0 %1528
    %v1530 = vsub.f32 %v1522, %v1526
    %v1531 = vsub.f32 %v1523, %v1529
    %v1532 = vmul.f32 %v1530, 1.442695
    %v1533 = vpow.pop %v1532
    %v1534 = vmul.f32 %v1531, 1.442695
    %v1535 = vpow.pop %v1534
    %v1536 = vsel %vm437, %v1533, 0.0
    %1537 = vadd.xlane.f32.xlu0 %v1536
    %v1538 = vpop.xlane.xlu0 %1537
    %v1539 = vsel %vm437, %v1535, 0.0
    %1540 = vadd.xlane.f32.xlu0 %v1539
    %v1541 = vpop.xlane.xlu0 %1540
    %v1542 = vrcp.pop %v1538
    %v1543 = vrcp.pop %v1541
    %v1544 = vmul.f32 %v1533, %v1542
    %v1545 = vmul.f32 %v1535, %v1543
    %v1546 = vpack.c.bf16 %v1544, %v1544
    %v1547 = vpack.c.bf16 %v1545, %v1545
    %1548 = vrot.lane.b32.xlu0 %v1198, 48
    %v1549 = vpop.permute.xlu0 %1548
    %v1551 = vsel %vm437, %v1546, 0
    %v1554 = vsel %vm467, %v1549, 0
    %1556 = vmatprep.subr.bf16.mxu0 0
    %1557 = vmatpush1.bf16.msra.mxu0 %v1554
    %1558 = vmatprep.subr.bf16.mxu0 0
    %1559 = vmatpush1.bf16.msra.mxu0 0
    %1560 = vmatprep.subr.bf16.mxu0 0
    %1561 = vmatpush1.bf16.msra.mxu0 0
    %1562 = vmatprep.subr.bf16.mxu0 0
    %1563 = vmatpush1.bf16.msra.mxu0 0
    %1564 = vmatprep.subr.bf16.mxu0 0
    %1565 = vmatpush1.bf16.msra.mxu0 0
    %1566 = vmatprep.subr.bf16.mxu0 0
    %1567 = vmatpush1.bf16.msra.mxu0 0
    %1568 = vmatprep.subr.bf16.mxu0 0
    %1569 = vmatpush1.bf16.msra.mxu0 0
    %1570 = vmatprep.subr.bf16.mxu0 0
    %1571 = vmatpush1.bf16.msra.mxu0 0
    %1572 = vmatprep.subr.bf16.mxu0 0
    %1573 = vmatpush1.bf16.msra.mxu0 0
    %1574 = vmatprep.subr.bf16.mxu0 0
    %1575 = vmatpush1.bf16.msra.mxu0 0
    %1576 = vmatprep.subr.bf16.mxu0 0
    %1577 = vmatpush1.bf16.msra.mxu0 0
    %1578 = vmatprep.subr.bf16.mxu0 0
    %1579 = vmatpush1.bf16.msra.mxu0 0
    %1580 = vmatprep.subr.bf16.mxu0 0
    %1581 = vmatpush1.bf16.msra.mxu0 0
    %1582 = vmatprep.subr.bf16.mxu0 0
    %1583 = vmatpush1.bf16.msra.mxu0 0
    %1584 = vmatprep.subr.bf16.mxu0 0
    %1585 = vmatpush1.bf16.msra.mxu0 0
    %1586 = vmatprep.subr.bf16.mxu0 0
    %1587 = vmatpush1.bf16.msra.mxu0 0
    %1588 = vmatprep.mubr.bf16.mxu0 0
    %1589 = vmatmul.mubr.bf16.gmra.mrb[0].mxu0 %v1551
    %v1590 = vpop.f32.mrb[0].mxu0
    %v1591 = vadd.f32 0.0, %v1590
    %v1592 = vpop.f32.mrb[0].mxu0
    %v1593 = vpop.f32.mrb[0].mxu0
    %v1594 = vpop.f32.mrb[0].mxu0
    %1595 = vdwg.mxu0
    %1596 = vrot.lane.b32.xlu0 %v1199, 48
    %v1597 = vpop.permute.xlu0 %1596
    %v1599 = vsel %vm437, %v1547, 0
    %v1602 = vsel %vm467, %v1597, 0
    %1604 = vmatprep.subr.bf16.mxu0 0
    %1605 = vmatpush1.bf16.msra.mxu0 %v1602
    %1606 = vmatprep.subr.bf16.mxu0 0
    %1607 = vmatpush1.bf16.msra.mxu0 0
    %1608 = vmatprep.subr.bf16.mxu0 0
    %1609 = vmatpush1.bf16.msra.mxu0 0
    %1610 = vmatprep.subr.bf16.mxu0 0
    %1611 = vmatpush1.bf16.msra.mxu0 0
    %1612 = vmatprep.subr.bf16.mxu0 0
    %1613 = vmatpush1.bf16.msra.mxu0 0
    %1614 = vmatprep.subr.bf16.mxu0 0
    %1615 = vmatpush1.bf16.msra.mxu0 0
    %1616 = vmatprep.subr.bf16.mxu0 0
    %1617 = vmatpush1.bf16.msra.mxu0 0
    %1618 = vmatprep.subr.bf16.mxu0 0
    %1619 = vmatpush1.bf16.msra.mxu0 0
    %1620 = vmatprep.subr.bf16.mxu0 0
    %1621 = vmatpush1.bf16.msra.mxu0 0
    %1622 = vmatprep.subr.bf16.mxu0 0
    %1623 = vmatpush1.bf16.msra.mxu0 0
    %1624 = vmatprep.subr.bf16.mxu0 0
    %1625 = vmatpush1.bf16.msra.mxu0 0
    %1626 = vmatprep.subr.bf16.mxu0 0
    %1627 = vmatpush1.bf16.msra.mxu0 0
    %1628 = vmatprep.subr.bf16.mxu0 0
    %1629 = vmatpush1.bf16.msra.mxu0 0
    %1630 = vmatprep.subr.bf16.mxu0 0
    %1631 = vmatpush1.bf16.msra.mxu0 0
    %1632 = vmatprep.subr.bf16.mxu0 0
    %1633 = vmatpush1.bf16.msra.mxu0 0
    %1634 = vmatprep.subr.bf16.mxu0 0
    %1635 = vmatpush1.bf16.msra.mxu0 0
    %1636 = vmatprep.mubr.bf16.mxu0 0
    %1637 = vmatmul.mubr.bf16.gmra.mrb[0].mxu0 %v1599
    %v1638 = vpop.f32.mrb[0].mxu0
    %v1639 = vadd.f32 0.0, %v1638
    %v1640 = vpop.f32.mrb[0].mxu0
    %v1641 = vpop.f32.mrb[0].mxu0
    %v1642 = vpop.f32.mrb[0].mxu0
    %1643 = vdwg.mxu0
    %1646 = vrot.lane.b32.xlu0 %v1591, 16
    %v1647 = vpop.permute.xlu0 %1646
    %1648 = vrot.lane.b32.xlu0 %v1639, 16
    %v1649 = vpop.permute.xlu0 %1648
    %v1652 = vsel %vm326, %v1367, %v1647
    %v1653 = vsel %vm326, %v1415, %v1649
    %s1654 = scalar_lea.vmem %s6, 16
    %v1655 = vld [vmem:[%s1654] sm:$0xf]
    %v1656 = vld [vmem:[%s1654 + $0x4] sm:$0xf]
    %v1657 = vld [vmem:[%s1654 + $0x8] sm:$0xf]
    %v1658 = vld [vmem:[%s1654 + $0xc] sm:$0xf]
    %v1659 = vpack.c.bf16 %v1653, %v1652
    %s1660 = scalar_lea.vmem [#allocation6], 1
    %v1661 = vld [vmem:[%s1660] sm:$0x1]
    %v1663 = vlaneseq
    %v1664 = vshrl.u32 %v1663, 7
    %v1665 = vsub.s32 0, %v1664
    %v1666 = vrot.slane %v1661, %v1665
    %v1672 = vunpack.c.l.b16 %v1655
    %v1673 = vunpack.c.l.b16 %v1656
    %v1674 = vunpack.c.l.b16 %v1657
    %v1675 = vunpack.c.l.b16 %v1658
    %v1676 = vpack.c.b16 %v1673, %v1672
    %v1677 = vpack.c.b16 %v1675, %v1674
    %v1681 = vsel %vm204, %v1659, 0
    %1683 = vmatprep.subr.bf16.mxu0 0
    %1684 = vmatpush1.bf16.msra.mxu0 %v1676
    %1685 = vmatprep.subr.bf16.mxu0 0
    %1686 = vmatpush1.bf16.msra.mxu0 %v1677
    %1687 = vmatprep.subr.bf16.mxu0 0
    %1688 = vmatpush1.bf16.msra.mxu0 0
    %1689 = vmatprep.subr.bf16.mxu0 0
    %1690 = vmatpush1.bf16.msra.mxu0 0
    %1691 = vmatprep.subr.bf16.mxu0 0
    %1692 = vmatpush1.bf16.msra.mxu0 0
    %1693 = vmatprep.subr.bf16.mxu0 0
    %1694 = vmatpush1.bf16.msra.mxu0 0
    %1695 = vmatprep.subr.bf16.mxu0 0
    %1696 = vmatpush1.bf16.msra.mxu0 0
    %1697 = vmatprep.subr.bf16.mxu0 0
    %1698 = vmatpush1.bf16.msra.mxu0 0
    %1699 = vmatprep.subr.bf16.mxu0 0
    %1700 = vmatpush1.bf16.msra.mxu0 0
    %1701 = vmatprep.subr.bf16.mxu0 0
    %1702 = vmatpush1.bf16.msra.mxu0 0
    %1703 = vmatprep.subr.bf16.mxu0 0
    %1704 = vmatpush1.bf16.msra.mxu0 0
    %1705 = vmatprep.subr.bf16.mxu0 0
    %1706 = vmatpush1.bf16.msra.mxu0 0
    %1707 = vmatprep.subr.bf16.mxu0 0
    %1708 = vmatpush1.bf16.msra.mxu0 0
    %1709 = vmatprep.subr.bf16.mxu0 0
    %1710 = vmatpush1.bf16.msra.mxu0 0
    %1711 = vmatprep.subr.bf16.mxu0 0
    %1712 = vmatpush1.bf16.msra.mxu0 0
    %1713 = vmatprep.subr.bf16.mxu0 0
    %1714 = vmatpush1.bf16.msra.mxu0 0
    %1715 = vmatprep.mubr.bf16.mxu0 0
    %1716 = vmatmul.mubr.bf16.gmra.mrb[0].mxu0 %v1681
    %v1717 = vpop.f32.mrb[0].mxu0
    %v1718 = vadd.f32 %v1666, %v1717
    %v1719 = vpop.f32.mrb[0].mxu0
    %v1720 = vpop.f32.mrb[0].mxu0
    %v1721 = vadd.f32 %v1666, %v1720
    %v1722 = vpop.f32.mrb[0].mxu0
    %1723 = vdwg.mxu0
    %v1724 = vadd.f32 %v1718, %v1122
    %v1725 = vadd.f32 %v1721, %v1123
    %s1726 = scalar_lea.vmem [#allocation7], 1
    %v1727 = vld [vmem:[%s1726] sm:$0x1]
    %s1728 = scalar_lea.vmem [#allocation9], 1
    %v1729 = vld [vmem:[%s1728] sm:$0x1]
    %v1730 = vsel %vm204, %v1724, 0.0
    %1731 = vadd.xlane.f32.xlu0 %v1730
    %v1732 = vpop.xlane.xlu0 %1731
    %v1733 = vsel %vm204, %v1725, 0.0
    %1734 = vadd.xlane.f32.xlu0 %v1733
    %v1735 = vpop.xlane.xlu0 %1734
    %v1736 = vmul.f32 %v1732, %v211
    %v1737 = vmul.f32 %v1735, %v211
    %v1738 = vsub.f32 %v1724, %v1736
    %v1739 = vsub.f32 %v1725, %v1737
    %v1740 = vmul.f32 %v1738, %v1738
    %v1741 = vmul.f32 %v1739, %v1739
    %v1742 = vsel %vm204, %v1740, 0.0
    %1743 = vadd.xlane.f32.xlu0 %v1742
    %v1744 = vpop.xlane.xlu0 %1743
    %v1745 = vsel %vm204, %v1741, 0.0
    %1746 = vadd.xlane.f32.xlu0 %v1745
    %v1747 = vpop.xlane.xlu0 %1746
    %v1748 = vmul.f32 %v1744, %v211
    %v1749 = vmul.f32 %v1747, %v211
    %v1750 = vadd.f32 %v1748, 1e-12
    %v1751 = vadd.f32 %v1749, 1e-12
    %v1752 = vrsqrt.pop %v1750
    %v1753 = vrsqrt.pop %v1751
    %v1754 = vmul.f32 %v1738, %v1752
    %v1755 = vmul.f32 %v1739, %v1753
    %v1757 = vlaneseq
    %v1758 = vshrl.u32 %v1757, 7
    %v1759 = vsub.s32 0, %v1758
    %v1760 = vrot.slane %v1727, %v1759
    %v1762 = vmul.f32 %v1754, %v1760
    %v1763 = vmul.f32 %v1755, %v1760
    %v1765 = vlaneseq
    %v1766 = vshrl.u32 %v1765, 7
    %v1767 = vsub.s32 0, %v1766
    %v1768 = vrot.slane %v1729, %v1767
    %v1770 = vadd.f32 %v1762, %v1768
    %v1771 = vadd.f32 %v1763, %v1768
    %s1772 = scalar_lea.vmem %s10, 16
    %v1773 = vld [vmem:[%s1772] sm:$0xf]
    %v1774 = vld [vmem:[%s1772 + $0x4] sm:$0xf]
    %v1775 = vld [vmem:[%s1772 + $0x8] sm:$0xf]
    %v1776 = vld [vmem:[%s1772 + $0xc] sm:$0xf]
    %v1777 = vpack.c.bf16 %v1771, %v1770
    %s1778 = scalar_lea.vmem [#allocation10], 1
    %v1779 = vld [vmem:[%s1778] sm:$0x1]
    %v1781 = vlaneseq
    %v1782 = vshrl.u32 %v1781, 7
    %v1783 = vsub.s32 0, %v1782
    %v1784 = vrot.slane %v1779, %v1783
    %v1790 = vunpack.c.l.b16 %v1773
    %v1791 = vunpack.c.l.b16 %v1774
    %v1792 = vunpack.c.l.b16 %v1775
    %v1793 = vunpack.c.l.b16 %v1776
    %v1794 = vpack.c.b16 %v1791, %v1790
    %v1795 = vpack.c.b16 %v1793, %v1792
    %v1799 = vsel %vm204, %v1777, 0
    %1801 = vmatprep.subr.bf16.mxu0 0
    %1802 = vmatpush1.bf16.msra.mxu0 %v1794
    %1803 = vmatprep.subr.bf16.mxu0 0
    %1804 = vmatpush1.bf16.msra.mxu0 %v1795
    %1805 = vmatprep.subr.bf16.mxu0 0
    %1806 = vmatpush1.bf16.msra.mxu0 0
    %1807 = vmatprep.subr.bf16.mxu0 0
    %1808 = vmatpush1.bf16.msra.mxu0 0
    %1809 = vmatprep.subr.bf16.mxu0 0
    %1810 = vmatpush1.bf16.msra.mxu0 0
    %1811 = vmatprep.subr.bf16.mxu0 0
    %1812 = vmatpush1.bf16.msra.mxu0 0
    %1813 = vmatprep.subr.bf16.mxu0 0
    %1814 = vmatpush1.bf16.msra.mxu0 0
    %1815 = vmatprep.subr.bf16.mxu0 0
    %1816 = vmatpush1.bf16.msra.mxu0 0
    %1817 = vmatprep.subr.bf16.mxu0 0
    %1818 = vmatpush1.bf16.msra.mxu0 0
    %1819 = vmatprep.subr.bf16.mxu0 0
    %1820 = vmatpush1.bf16.msra.mxu0 0
    %1821 = vmatprep.subr.bf16.mxu0 0
    %1822 = vmatpush1.bf16.msra.mxu0 0
    %1823 = vmatprep.subr.bf16.mxu0 0
    %1824 = vmatpush1.bf16.msra.mxu0 0
    %1825 = vmatprep.subr.bf16.mxu0 0
    %1826 = vmatpush1.bf16.msra.mxu0 0
    %1827 = vmatprep.subr.bf16.mxu0 0
    %1828 = vmatpush1.bf16.msra.mxu0 0
    %1829 = vmatprep.subr.bf16.mxu0 0
    %1830 = vmatpush1.bf16.msra.mxu0 0
    %1831 = vmatprep.subr.bf16.mxu0 0
    %1832 = vmatpush1.bf16.msra.mxu0 0
    %1833 = vmatprep.mubr.bf16.mxu0 0
    %1834 = vmatmul.mubr.bf16.gmra.mrb[0].mxu0 %v1799
    %v1835 = vpop.f32.mrb[0].mxu0
    %v1836 = vadd.f32 %v1784, %v1835
    %v1837 = vpop.f32.mrb[0].mxu0
    %v1838 = vpop.f32.mrb[0].mxu0
    %v1839 = vadd.f32 %v1784, %v1838
    %v1840 = vpop.f32.mrb[0].mxu0
    %1841 = vdwg.mxu0
    %v1842 = vmul.f32 %v1836, 0.5
    %v1843 = vmul.f32 %v1839, 0.5
    %v1844 = vmul.f32 %v1836, 0.044715
    %v1845 = vmul.f32 %v1839, 0.044715
    %v1846 = vmul.f32 %v1844, %v1836
    %v1847 = vmul.f32 %v1845, %v1839
    %v1848 = vmul.f32 %v1846, %v1836
    %v1849 = vmul.f32 %v1847, %v1839
    %v1850 = vadd.f32 %v1836, %v1848
    %v1851 = vadd.f32 %v1839, %v1849
    %v1852 = vmul.f32 %v1850, 0.7978846
    %v1853 = vmul.f32 %v1851, 0.7978846
    %v1854 = vtanh.pop %v1852
    %v1855 = vtanh.pop %v1853
    %v1856 = vadd.f32 %v1854, 1.0
    %v1857 = vadd.f32 %v1855, 1.0
    %v1858 = vmul.f32 %v1842, %v1856
    %v1859 = vmul.f32 %v1843, %v1857
    %s1860 = scalar_lea.vmem %s12, 32
    %v1861 = vld [vmem:[%s1860] sm:$0xf]
    %v1862 = vld [vmem:[%s1860 + $0x4] sm:$0xf]
    %v1863 = vld [vmem:[%s1860 + $0x8] sm:$0xf]
    %v1864 = vld [vmem:[%s1860 + $0xc] sm:$0xf]
    %v1865 = vld [vmem:[%s1860 + $0x10] sm:$0xf]
    %v1866 = vld [vmem:[%s1860 + $0x14] sm:$0xf]
    %v1867 = vld [vmem:[%s1860 + $0x18] sm:$0xf]
    %v1868 = vld [vmem:[%s1860 + $0x1c] sm:$0xf]
    %v1869 = vpack.c.bf16 %v1859, %v1858
    %s1870 = scalar_lea.vmem [#allocation12], 1
    %v1871 = vld [vmem:[%s1870] sm:$0x1]
    %v1873 = vlaneseq
    %v1874 = vshrl.u32 %v1873, 7
    %v1875 = vsub.s32 0, %v1874
    %v1876 = vrot.slane %v1871, %v1875
    %v1886 = vunpack.c.l.b16 %v1861
    %v1887 = vunpack.c.l.b16 %v1862
    %v1888 = vunpack.c.l.b16 %v1863
    %v1889 = vunpack.c.l.b16 %v1864
    %v1890 = vunpack.c.l.b16 %v1865
    %v1891 = vunpack.c.l.b16 %v1866
    %v1892 = vunpack.c.l.b16 %v1867
    %v1893 = vunpack.c.l.b16 %v1868
    %v1894 = vpack.c.b16 %v1887, %v1886
    %v1895 = vpack.c.b16 %v1889, %v1888
    %v1896 = vpack.c.b16 %v1891, %v1890
    %v1897 = vpack.c.b16 %v1893, %v1892
    %v1903 = vsel %vm1033, %v1869, 0
    %1905 = vmatprep.subr.bf16.mxu0 0
    %1906 = vmatpush1.bf16.msra.mxu0 %v1894
    %1907 = vmatprep.subr.bf16.mxu0 0
    %1908 = vmatpush1.bf16.msra.mxu0 %v1895
    %1909 = vmatprep.subr.bf16.mxu0 0
    %1910 = vmatpush1.bf16.msra.mxu0 %v1896
    %1911 = vmatprep.subr.bf16.mxu0 0
    %1912 = vmatpush1.bf16.msra.mxu0 %v1897
    %1913 = vmatprep.subr.bf16.mxu0 0
    %1914 = vmatpush1.bf16.msra.mxu0 0
    %1915 = vmatprep.subr.bf16.mxu0 0
    %1916 = vmatpush1.bf16.msra.mxu0 0
    %1917 = vmatprep.subr.bf16.mxu0 0
    %1918 = vmatpush1.bf16.msra.mxu0 0
    %1919 = vmatprep.subr.bf16.mxu0 0
    %1920 = vmatpush1.bf16.msra.mxu0 0
    %1921 = vmatprep.subr.bf16.mxu0 0
    %1922 = vmatpush1.bf16.msra.mxu0 0
    %1923 = vmatprep.subr.bf16.mxu0 0
    %1924 = vmatpush1.bf16.msra.mxu0 0
    %1925 = vmatprep.subr.bf16.mxu0 0
    %1926 = vmatpush1.bf16.msra.mxu0 0
    %1927 = vmatprep.subr.bf16.mxu0 0
    %1928 = vmatpush1.bf16.msra.mxu0 0
    %1929 = vmatprep.subr.bf16.mxu0 0
    %1930 = vmatpush1.bf16.msra.mxu0 0
    %1931 = vmatprep.subr.bf16.mxu0 0
    %1932 = vmatpush1.bf16.msra.mxu0 0
    %1933 = vmatprep.subr.bf16.mxu0 0
    %1934 = vmatpush1.bf16.msra.mxu0 0
    %1935 = vmatprep.subr.bf16.mxu0 0
    %1936 = vmatpush1.bf16.msra.mxu0 0
    %1937 = vmatprep.mubr.bf16.mxu0 0
    %1938 = vmatmul.mubr.bf16.gmra.mrb[0].mxu0 %v1903
    %v1939 = vpop.f32.mrb[0].mxu0
    %v1940 = vadd.f32 %v1876, %v1939
    %v1941 = vpop.f32.mrb[0].mxu0
    %v1942 = vpop.f32.mrb[0].mxu0
    %v1943 = vadd.f32 %v1876, %v1942
    %v1944 = vpop.f32.mrb[0].mxu0
    %1945 = vdwg.mxu0
    %v1946 = vadd.f32 %v1940, %v1770
    %v1947 = vadd.f32 %v1943, %v1771
    %s1948 = scalar_lea.vmem %s14, 1
    %v1949 = vld [vmem:[%s1948] sm:$0x1]
    %s1950 = scalar_lea.vmem %s15, 1
    %v1951 = vld [vmem:[%s1950] sm:$0x1]
    %v1952 = vsel %vm204, %v1946, 0.0
    %1953 = vadd.xlane.f32.xlu0 %v1952
    %v1954 = vpop.xlane.xlu0 %1953
    %v1955 = vsel %vm204, %v1947, 0.0
    %1956 = vadd.xlane.f32.xlu0 %v1955
    %v1957 = vpop.xlane.xlu0 %1956
    %v1958 = vmul.f32 %v1954, %v211
    %v1959 = vmul.f32 %v1957, %v211
    %v1960 = vsub.f32 %v1946, %v1958
    %v1961 = vsub.f32 %v1947, %v1959
    %v1962 = vmul.f32 %v1960, %v1960
    %v1963 = vmul.f32 %v1961, %v1961
    %v1964 = vsel %vm204, %v1962, 0.0
    %1965 = vadd.xlane.f32.xlu0 %v1964
    %v1966 = vpop.xlane.xlu0 %1965
    %v1967 = vsel %vm204, %v1963, 0.0
    %1968 = vadd.xlane.f32.xlu0 %v1967
    %v1969 = vpop.xlane.xlu0 %1968
    %v1970 = vmul.f32 %v1966, %v211
    %v1971 = vmul.f32 %v1969, %v211
    %v1972 = vadd.f32 %v1970, 1e-12
    %v1973 = vadd.f32 %v1971, 1e-12
    %v1974 = vrsqrt.pop %v1972
    %v1975 = vrsqrt.pop %v1973
    %v1976 = vmul.f32 %v1960, %v1974
    %v1977 = vmul.f32 %v1961, %v1975
    %v1979 = vlaneseq
    %v1980 = vshrl.u32 %v1979, 7
    %v1981 = vsub.s32 0, %v1980
    %v1982 = vrot.slane %v1949, %v1981
    %v1984 = vmul.f32 %v1976, %v1982
    %v1985 = vmul.f32 %v1977, %v1982
    %v1987 = vlaneseq
    %v1988 = vshrl.u32 %v1987, 7
    %v1989 = vsub.s32 0, %v1988
    %v1990 = vrot.slane %v1951, %v1989
    %v1992 = vadd.f32 %v1984, %v1990
    %v1993 = vadd.f32 %v1985, %v1990
    %v1995 = vrot.slane %v1993, 7
    %vm1997 = vcmask 1040384
    %v1998 = vsel %vm1997, %v1992, %v1995
    %vm1999 = vcmask 1041408
    %v2000 = vsel %vm1999, %v1998, 0.0
    %v2001 = vld [vmem:[%s16] sm:$0xff]
    %v2002 = vld [vmem:[%s16 + $0x8] sm:$0xff]
    %v2003 = vld [vmem:[%s16 + $0x10] sm:$0xff]
    %v2004 = vld [vmem:[%s16 + $0x18] sm:$0xff]
    %v2005 = vld [vmem:[%s16 + $0x20] sm:$0xff]
    %v2006 = vld [vmem:[%s16 + $0x28] sm:$0xff]
    %v2007 = vld [vmem:[%s16 + $0x30] sm:$0xff]
    %v2008 = vld [vmem:[%s16 + $0x38] sm:$0xff]
    %v2009 = vpack.c.bf16 %v2000, %v2000
    %v2010 = vld [vmem:[%s17] sm:$0xf]
    %v2012 = vlaneseq
    %v2013 = vshrl.u32 %v2012, 7
    %v2014 = vsub.s32 0, %v2013
    %v2015 = vrot.slane %v2010, %v2014
    %v2016 = vlaneseq
    %v2017 = vshrl.u32 %v2016, 7
    %v2018 = vsub.s32 1, %v2017
    %v2019 = vrot.slane %v2010, %v2018
    %v2020 = vlaneseq
    %v2021 = vshrl.u32 %v2020, 7
    %v2022 = vsub.s32 2, %v2021
    %v2023 = vrot.slane %v2010, %v2022
    %v2024 = vlaneseq
    %v2025 = vshrl.u32 %v2024, 7
    %v2026 = vsub.s32 3, %v2025
    %v2027 = vrot.slane %v2010, %v2026
    %v2040 = vunpack.c.l.b16 %v2001
    %v2041 = vunpack.c.h.b16 %v2001
    %v2042 = vunpack.c.l.b16 %v2002
    %v2043 = vunpack.c.h.b16 %v2002
    %v2044 = vunpack.c.l.b16 %v2003
    %v2045 = vunpack.c.h.b16 %v2003
    %v2046 = vunpack.c.l.b16 %v2004
    %v2047 = vunpack.c.h.b16 %v2004
    %v2048 = vunpack.c.l.b16 %v2005
    %v2049 = vunpack.c.h.b16 %v2005
    %v2050 = vunpack.c.l.b16 %v2006
    %v2051 = vunpack.c.h.b16 %v2006
    %v2052 = vunpack.c.l.b16 %v2007
    %v2053 = vunpack.c.h.b16 %v2007
    %v2054 = vunpack.c.l.b16 %v2008
    %v2055 = vunpack.c.h.b16 %v2008
    %v2056 = vpack.c.b16 %v2044, %v2040
    %v2057 = vpack.c.b16 %v2045, %v2041
    %v2058 = vpack.c.b16 %v2046, %v2042
    %v2059 = vpack.c.b16 %v2047, %v2043
    %v2060 = vpack.c.b16 %v2052, %v2048
    %v2061 = vpack.c.b16 %v2053, %v2049
    %v2062 = vpack.c.b16 %v2054, %v2050
    %v2063 = vpack.c.b16 %v2055, %v2051
    %v2073 = vsel %vm204, %v2009, 0
    %2075 = vmatprep.subr.bf16.mxu0 %v2057
    %2076 = vmatpush1.bf16.msra.mxu0 %v2056
    %2077 = vmatprep.subr.bf16.mxu0 %v2061
    %2078 = vmatpush1.bf16.msra.mxu0 %v2060
    %2079 = vmatprep.subr.bf16.mxu0 0
    %2080 = vmatpush1.bf16.msra.mxu0 0
    %2081 = vmatprep.subr.bf16.mxu0 0
    %2082 = vmatpush1.bf16.msra.mxu0 0
    %2083 = vmatprep.subr.bf16.mxu0 0
    %2084 = vmatpush1.bf16.msra.mxu0 0
    %2085 = vmatprep.subr.bf16.mxu0 0
    %2086 = vmatpush1.bf16.msra.mxu0 0
    %2087 = vmatprep.subr.bf16.mxu0 0
    %2088 = vmatpush1.bf16.msra.mxu0 0
    %2089 = vmatprep.subr.bf16.mxu0 0
    %2090 = vmatpush1.bf16.msra.mxu0 0
    %2091 = vmatprep.subr.bf16.mxu0 0
    %2092 = vmatpush1.bf16.msra.mxu0 0
    %2093 = vmatprep.subr.bf16.mxu0 0
    %2094 = vmatpush1.bf16.msra.mxu0 0
    %2095 = vmatprep.subr.bf16.mxu0 0
    %2096 = vmatpush1.bf16.msra.mxu0 0
    %2097 = vmatprep.subr.bf16.mxu0 0
    %2098 = vmatpush1.bf16.msra.mxu0 0
    %2099 = vmatprep.subr.bf16.mxu0 0
    %2100 = vmatpush1.bf16.msra.mxu0 0
    %2101 = vmatprep.subr.bf16.mxu0 0
    %2102 = vmatpush1.bf16.msra.mxu0 0
    %2103 = vmatprep.subr.bf16.mxu0 0
    %2104 = vmatpush1.bf16.msra.mxu0 0
    %2105 = vmatprep.subr.bf16.mxu0 0
    %2106 = vmatpush1.bf16.msra.mxu0 0
    %2107 = vmatprep.mubr.bf16.mxu0 0
    %2108 = vmatmul.mubr.bf16.gmra.mrb[0].mxu0 %v2073
    %v2109 = vpop.f32.mrb[0].mxu0
    %v2110 = vadd.f32 %v2015, %v2109
    %v2111 = vpop.f32.mrb[0].mxu0
    %v2112 = vadd.f32 %v2019, %v2111
    %v2113 = vpop.f32.mrb[0].mxu0
    %v2114 = vpop.f32.mrb[0].mxu0
    %2115 = vdwg.mxu0
    %2116 = vmatprep.subr.bf16.mxu0 %v2059
    %2117 = vmatpush1.bf16.msra.mxu0 %v2058
    %2118 = vmatprep.subr.bf16.mxu0 %v2063
    %2119 = vmatpush1.bf16.msra.mxu0 %v2062
    %2120 = vmatprep.subr.bf16.mxu0 0
    %2121 = vmatpush1.bf16.msra.mxu0 0
    %2122 = vmatprep.subr.bf16.mxu0 0
    %2123 = vmatpush1.bf16.msra.mxu0 0
    %2124 = vmatprep.subr.bf16.mxu0 0
    %2125 = vmatpush1.bf16.msra.mxu0 0
    %2126 = vmatprep.subr.bf16.mxu0 0
    %2127 = vmatpush1.bf16.msra.mxu0 0
    %2128 = vmatprep.subr.bf16.mxu0 0
    %2129 = vmatpush1.bf16.msra.mxu0 0
    %2130 = vmatprep.subr.bf16.mxu0 0
    %2131 = vmatpush1.bf16.msra.mxu0 0
    %2132 = vmatprep.subr.bf16.mxu0 0
    %2133 = vmatpush1.bf16.msra.mxu0 0
    %2134 = vmatprep.subr.bf16.mxu0 0
    %2135 = vmatpush1.bf16.msra.mxu0 0
    %2136 = vmatprep.subr.bf16.mxu0 0
    %2137 = vmatpush1.bf16.msra.mxu0 0
    %2138 = vmatprep.subr.bf16.mxu0 0
    %2139 = vmatpush1.bf16.msra.mxu0 0
    %2140 = vmatprep.subr.bf16.mxu0 0
    %2141 = vmatpush1.bf16.msra.mxu0 0
    %2142 = vmatprep.subr.bf16.mxu0 0
    %2143 = vmatpush1.bf16.msra.mxu0 0
    %2144 = vmatprep.subr.bf16.mxu0 0
    %2145 = vmatpush1.bf16.msra.mxu0 0
    %2146 = vmatprep.subr.bf16.mxu0 0
    %2147 = vmatpush1.bf16.msra.mxu0 0
    %2148 = vmatprep.mubr.bf16.mxu0 0
    %2149 = vmatmul.mubr.bf16.gmra.mrb[0].mxu0 %v2073
    %v2150 = vpop.f32.mrb[0].mxu0
    %v2151 = vadd.f32 %v2023, %v2150
    %v2152 = vpop.f32.mrb[0].mxu0
    %v2153 = vadd.f32 %v2027, %v2152
    %v2154 = vpop.f32.mrb[0].mxu0
    %v2155 = vpop.f32.mrb[0].mxu0
    %2156 = vdwg.mxu0
    %v2157 = vmul.f32 %v2110, 0.5
    %v2158 = vmul.f32 %v2112, 0.5
    %v2159 = vmul.f32 %v2151, 0.5
    %v2160 = vmul.f32 %v2153, 0.5
    %v2161 = vmul.f32 %v2110, 0.044715
    %v2162 = vmul.f32 %v2112, 0.044715
    %v2163 = vmul.f32 %v2151, 0.044715
    %v2164 = vmul.f32 %v2153, 0.044715
    %v2165 = vmul.f32 %v2161, %v2110
    %v2166 = vmul.f32 %v2162, %v2112
    %v2167 = vmul.f32 %v2163, %v2151
    %v2168 = vmul.f32 %v2164, %v2153
    %v2169 = vmul.f32 %v2165, %v2110
    %v2170 = vmul.f32 %v2166, %v2112
    %v2171 = vmul.f32 %v2167, %v2151
    %v2172 = vmul.f32 %v2168, %v2153
    %v2173 = vadd.f32 %v2110, %v2169
    %v2174 = vadd.f32 %v2112, %v2170
    %v2175 = vadd.f32 %v2151, %v2171
    %v2176 = vadd.f32 %v2153, %v2172
    %v2177 = vmul.f32 %v2173, 0.7978846
    %v2178 = vmul.f32 %v2174, 0.7978846
    %v2179 = vmul.f32 %v2175, 0.7978846
    %v2180 = vmul.f32 %v2176, 0.7978846
    %v2181 = vtanh.pop %v2177
    %v2182 = vtanh.pop %v2178
    %v2183 = vtanh.pop %v2179
    %v2184 = vtanh.pop %v2180
    %v2185 = vadd.f32 %v2181, 1.0
    %v2186 = vadd.f32 %v2182, 1.0
    %v2187 = vadd.f32 %v2183, 1.0
    %v2188 = vadd.f32 %v2184, 1.0
    %v2189 = vmul.f32 %v2157, %v2185
    %v2190 = vmul.f32 %v2158, %v2186
    %v2191 = vmul.f32 %v2159, %v2187
    %v2192 = vmul.f32 %v2160, %v2188
    %v2193 = vld [vmem:[%s18] sm:$0xf]
    %v2194 = vld [vmem:[%s19] sm:$0xf]
    %v2195 = vadd.f32 %v2189, %v2190
    %v2196 = vadd.f32 %v2195, %v2191
    %v2197 = vadd.f32 %v2196, %v2192
    %2198 = vadd.xlane.f32.xlu0 %v2197
    %v2199 = vpop.xlane.xlu0 %2198
    %v2200 = vrcp.pop 512.0
    %v2201 = vmul.f32 %v2199, %v2200
    %v2202 = vsub.f32 %v2189, %v2201
    %v2203 = vsub.f32 %v2190, %v2201
    %v2204 = vsub.f32 %v2191, %v2201
    %v2205 = vsub.f32 %v2192, %v2201
    %v2206 = vmul.f32 %v2202, %v2202
    %v2207 = vmul.f32 %v2203, %v2203
    %v2208 = vmul.f32 %v2204, %v2204
    %v2209 = vmul.f32 %v2205, %v2205
    %v2210 = vadd.f32 %v2206, %v2207
    %v2211 = vadd.f32 %v2210, %v2208
    %v2212 = vadd.f32 %v2211, %v2209
    %2213 = vadd.xlane.f32.xlu0 %v2212
    %v2214 = vpop.xlane.xlu0 %2213
    %v2215 = vmul.f32 %v2214, %v2200
    %v2216 = vadd.f32 %v2215, 1e-05
    %v2217 = vrsqrt.pop %v2216
    %v2218 = vmul.f32 %v2202, %v2217
    %v2219 = vmul.f32 %v2203, %v2217
    %v2220 = vmul.f32 %v2204, %v2217
    %v2221 = vmul.f32 %v2205, %v2217
    %v2223 = vlaneseq
    %v2224 = vshrl.u32 %v2223, 7
    %v2225 = vsub.s32 0, %v2224
    %v2226 = vrot.slane %v2193, %v2225
    %v2227 = vlaneseq
    %v2228 = vshrl.u32 %v2227, 7
    %v2229 = vsub.s32 1, %v2228
    %v2230 = vrot.slane %v2193, %v2229
    %v2231 = vlaneseq
    %v2232 = vshrl.u32 %v2231, 7
    %v2233 = vsub.s32 2, %v2232
    %v2234 = vrot.slane %v2193, %v2233
    %v2235 = vlaneseq
    %v2236 = vshrl.u32 %v2235, 7
    %v2237 = vsub.s32 3, %v2236
    %v2238 = vrot.slane %v2193, %v2237
    %v2243 = vmul.f32 %v2218, %v2226
    %v2244 = vmul.f32 %v2219, %v2230
    %v2245 = vmul.f32 %v2220, %v2234
    %v2246 = vmul.f32 %v2221, %v2238
    %v2248 = vlaneseq
    %v2249 = vshrl.u32 %v2248, 7
    %v2250 = vsub.s32 0, %v2249
    %v2251 = vrot.slane %v2194, %v2250
    %v2252 = vlaneseq
    %v2253 = vshrl.u32 %v2252, 7
    %v2254 = vsub.s32 1, %v2253
    %v2255 = vrot.slane %v2194, %v2254
    %v2256 = vlaneseq
    %v2257 = vshrl.u32 %v2256, 7
    %v2258 = vsub.s32 2, %v2257
    %v2259 = vrot.slane %v2194, %v2258
    %v2260 = vlaneseq
    %v2261 = vshrl.u32 %v2260, 7
    %v2262 = vsub.s32 3, %v2261
    %v2263 = vrot.slane %v2194, %v2262
    %v2268 = vadd.f32 %v2243, %v2251
    %v2269 = vadd.f32 %v2244, %v2255
    %v2270 = vadd.f32 %v2245, %v2259
    %v2271 = vadd.f32 %v2246, %v2263
    %v2272 = vld [vmem:[#allocation13] sm:$0xff]
    %v2273 = vld [vmem:[#allocation13 + $0x8] sm:$0xff]
    %v2274 = vld [vmem:[#allocation13 + $0x10] sm:$0xff]
    %v2275 = vld [vmem:[#allocation13 + $0x18] sm:$0xff]
    %v2276 = vld [vmem:[#allocation13 + $0x20] sm:$0xff]
    %v2277 = vld [vmem:[#allocation13 + $0x28] sm:$0xff]
    %v2278 = vld [vmem:[#allocation13 + $0x30] sm:$0xff]
    %v2279 = vld [vmem:[#allocation13 + $0x38] sm:$0xff]
    %v2280 = vld [vmem:[#allocation13 + $0x40] sm:$0xff]
    %v2281 = vld [vmem:[#allocation13 + $0x48] sm:$0xff]
    %v2282 = vld [vmem:[#allocation13 + $0x50] sm:$0xff]
    %v2283 = vld [vmem:[#allocation13 + $0x58] sm:$0xff]
    %v2284 = vld [vmem:[#allocation13 + $0x60] sm:$0xff]
    %v2285 = vld [vmem:[#allocation13 + $0x68] sm:$0xff]
    %v2286 = vld [vmem:[#allocation13 + $0x70] sm:$0xff]
    %v2287 = vld [vmem:[#allocation13 + $0x78] sm:$0xff]
    %v2288 = vld [vmem:[#allocation13 + $0x80] sm:$0xff]
    %v2289 = vld [vmem:[#allocation13 + $0x88] sm:$0xff]
    %v2290 = vld [vmem:[#allocation13 + $0x90] sm:$0xff]
    %v2291 = vld [vmem:[#allocation13 + $0x98] sm:$0xff]
    %v2292 = vld [vmem:[#allocation13 + $0xa0] sm:$0xff]
    %v2293 = vld [vmem:[#allocation13 + $0xa8] sm:$0xff]
    %v2294 = vld [vmem:[#allocation13 + $0xb0] sm:$0xff]
    %v2295 = vld [vmem:[#allocation13 + $0xb8] sm:$0xff]
    %v2296 = vld [vmem:[#allocation13 + $0xc0] sm:$0xff]
    %v2297 = vld [vmem:[#allocation13 + $0xc8] sm:$0xff]
    %v2298 = vld [vmem:[#allocation13 + $0xd0] sm:$0xff]
    %v2299 = vld [vmem:[#allocation13 + $0xd8] sm:$0xff]
    %v2300 = vld [vmem:[#allocation13 + $0xe0] sm:$0xff]
    %v2301 = vld [vmem:[#allocation13 + $0xe8] sm:$0xff]
    %v2302 = vld [vmem:[#allocation13 + $0xf0] sm:$0xff]
    %v2303 = vld [vmem:[#allocation13 + $0xf8] sm:$0xff]
    %v2304 = vld [vmem:[#allocation13 + $0x100] sm:$0xff]
    %v2305 = vld [vmem:[#allocation13 + $0x108] sm:$0xff]
    %v2306 = vld [vmem:[#allocation13 + $0x110] sm:$0xff]
    %v2307 = vld [vmem:[#allocation13 + $0x118] sm:$0xff]
    %v2308 = vld [vmem:[#allocation13 + $0x120] sm:$0xff]
    %v2309 = vld [vmem:[#allocation13 + $0x128] sm:$0xff]
    %v2310 = vld [vmem:[#allocation13 + $0x130] sm:$0xff]
    %v2311 = vld [vmem:[#allocation13 + $0x138] sm:$0xff]
    %v2312 = vld [vmem:[#allocation13 + $0x140] sm:$0xff]
    %v2313 = vld [vmem:[#allocation13 + $0x148] sm:$0xff]
    %v2314 = vld [vmem:[#allocation13 + $0x150] sm:$0xff]
    %v2315 = vld [vmem:[#allocation13 + $0x158] sm:$0xff]
    %v2316 = vld [vmem:[#allocation13 + $0x160] sm:$0xff]
    %v2317 = vld [vmem:[#allocation13 + $0x168] sm:$0xff]
    %v2318 = vld [vmem:[#allocation13 + $0x170] sm:$0xff]
    %v2319 = vld [vmem:[#allocation13 + $0x178] sm:$0xff]
    %v2320 = vld [vmem:[#allocation13 + $0x180] sm:$0xff]
    %v2321 = vld [vmem:[#allocation13 + $0x188] sm:$0xff]
    %v2322 = vld [vmem:[#allocation13 + $0x190] sm:$0xff]
    %v2323 = vld [vmem:[#allocation13 + $0x198] sm:$0xff]
    %v2324 = vld [vmem:[#allocation13 + $0x1a0] sm:$0xff]
    %v2325 = vld [vmem:[#allocation13 + $0x1a8] sm:$0xff]
    %v2326 = vld [vmem:[#allocation13 + $0x1b0] sm:$0xff]
    %v2327 = vld [vmem:[#allocation13 + $0x1b8] sm:$0xff]
    %v2328 = vld [vmem:[#allocation13 + $0x1c0] sm:$0xff]
    %v2329 = vld [vmem:[#allocation13 + $0x1c8] sm:$0xff]
    %v2330 = vld [vmem:[#allocation13 + $0x1d0] sm:$0xff]
    %v2331 = vld [vmem:[#allocation13 + $0x1d8] sm:$0xff]
    %v2332 = vld [vmem:[#allocation13 + $0x1e0] sm:$0xff]
    %v2333 = vld [vmem:[#allocation13 + $0x1e8] sm:$0xff]
    %v2334 = vld [vmem:[#allocation13 + $0x1f0] sm:$0xff]
    %v2335 = vld [vmem:[#allocation13 + $0x1f8] sm:$0xff]
    %v2336 = vpack.c.bf16 %v2268, %v2268
    %v2337 = vpack.c.bf16 %v2269, %v2269
    %v2338 = vpack.c.bf16 %v2270, %v2270
    %v2339 = vpack.c.bf16 %v2271, %v2271
    %v2340 = vld [vmem:[%s21] sm:$0x3]
    %v2342 = vlaneseq
    %v2343 = vshrl.u32 %v2342, 7
    %v2344 = vsub.s32 0, %v2343
    %v2345 = vrot.slane %v2340, %v2344
    %v2346 = vlaneseq
    %v2347 = vshrl.u32 %v2346, 7
    %v2348 = vsub.s32 1, %v2347
    %v2349 = vrot.slane %v2340, %v2348
    %v2416 = vunpack.c.l.b16 %v2272
    %v2417 = vunpack.c.h.b16 %v2272
    %v2418 = vunpack.c.l.b16 %v2273
    %v2419 = vunpack.c.h.b16 %v2273
    %v2420 = vunpack.c.l.b16 %v2274
    %v2421 = vunpack.c.h.b16 %v2274
    %v2422 = vunpack.c.l.b16 %v2275
    %v2423 = vunpack.c.h.b16 %v2275
    %v2424 = vunpack.c.l.b16 %v2276
    %v2425 = vunpack.c.h.b16 %v2276
    %v2426 = vunpack.c.l.b16 %v2277
    %v2427 = vunpack.c.h.b16 %v2277
    %v2428 = vunpack.c.l.b16 %v2278
    %v2429 = vunpack.c.h.b16 %v2278
    %v2430 = vunpack.c.l.b16 %v2279
    %v2431 = vunpack.c.h.b16 %v2279
    %v2432 = vunpack.c.l.b16 %v2280
    %v2433 = vunpack.c.h.b16 %v2280
    %v2434 = vunpack.c.l.b16 %v2281
    %v2435 = vunpack.c.h.b16 %v2281
    %v2436 = vunpack.c.l.b16 %v2282
    %v2437 = vunpack.c.h.b16 %v2282
    %v2438 = vunpack.c.l.b16 %v2283
    %v2439 = vunpack.c.h.b16 %v2283
    %v2440 = vunpack.c.l.b16 %v2284
    %v2441 = vunpack.c.h.b16 %v2284
    %v2442 = vunpack.c.l.b16 %v2285
    %v2443 = vunpack.c.h.b16 %v2285
    %v2444 = vunpack.c.l.b16 %v2286
    %v2445 = vunpack.c.h.b16 %v2286
    %v2446 = vunpack.c.l.b16 %v2287
    %v2447 = vunpack.c.h.b16 %v2287
    %v2448 = vunpack.c.l.b16 %v2288
    %v2449 = vunpack.c.h.b16 %v2288
    %v2450 = vunpack.c.l.b16 %v2289
    %v2451 = vunpack.c.h.b16 %v2289
    %v2452 = vunpack.c.l.b16 %v2290
    %v2453 = vunpack.c.h.b16 %v2290
    %v2454 = vunpack.c.l.b16 %v2291
    %v2455 = vunpack.c.h.b16 %v2291
    %v2456 = vunpack.c.l.b16 %v2292
    %v2457 = vunpack.c.h.b16 %v2292
    %v2458 = vunpack.c.l.b16 %v2293
    %v2459 = vunpack.c.h.b16 %v2293
    %v2460 = vunpack.c.l.b16 %v2294
    %v2461 = vunpack.c.h.b16 %v2294
    %v2462 = vunpack.c.l.b16 %v2295
    %v2463 = vunpack.c.h.b16 %v2295
    %v2464 = vunpack.c.l.b16 %v2296
    %v2465 = vunpack.c.h.b16 %v2296
    %v2466 = vunpack.c.l.b16 %v2297
    %v2467 = vunpack.c.h.b16 %v2297
    %v2468 = vunpack.c.l.b16 %v2298
    %v2469 = vunpack.c.h.b16 %v2298
    %v2470 = vunpack.c.l.b16 %v2299
    %v2471 = vunpack.c.h.b16 %v2299
    %v2472 = vunpack.c.l.b16 %v2300
    %v2473 = vunpack.c.h.b16 %v2300
    %v2474 = vunpack.c.l.b16 %v2301
    %v2475 = vunpack.c.h.b16 %v2301
    %v2476 = vunpack.c.l.b16 %v2302
    %v2477 = vunpack.c.h.b16 %v2302
    %v2478 = vunpack.c.l.b16 %v2303
    %v2479 = vunpack.c.h.b16 %v2303
    %v2480 = vunpack.c.l.b16 %v2304
    %v2481 = vunpack.c.h.b16 %v2304
    %v2482 = vunpack.c.l.b16 %v2305
    %v2483 = vunpack.c.h.b16 %v2305
    %v2484 = vunpack.c.l.b16 %v2306
    %v2485 = vunpack.c.h.b16 %v2306
    %v2486 = vunpack.c.l.b16 %v2307
    %v2487 = vunpack.c.h.b16 %v2307
    %v2488 = vunpack.c.l.b16 %v2308
    %v2489 = vunpack.c.h.b16 %v2308
    %v2490 = vunpack.c.l.b16 %v2309
    %v2491 = vunpack.c.h.b16 %v2309
    %v2492 = vunpack.c.l.b16 %v2310
    %v2493 = vunpack.c.h.b16 %v2310
    %v2494 = vunpack.c.l.b16 %v2311
    %v2495 = vunpack.c.h.b16 %v2311
    %v2496 = vunpack.c.l.b16 %v2312
    %v2497 = vunpack.c.h.b16 %v2312
    %v2498 = vunpack.c.l.b16 %v2313
    %v2499 = vunpack.c.h.b16 %v2313
    %v2500 = vunpack.c.l.b16 %v2314
    %v2501 = vunpack.c.h.b16 %v2314
    %v2502 = vunpack.c.l.b16 %v2315
    %v2503 = vunpack.c.h.b16 %v2315
    %v2504 = vunpack.c.l.b16 %v2316
    %v2505 = vunpack.c.h.b16 %v2316
    %v2506 = vunpack.c.l.b16 %v2317
    %v2507 = vunpack.c.h.b16 %v2317
    %v2508 = vunpack.c.l.b16 %v2318
    %v2509 = vunpack.c.h.b16 %v2318
    %v2510 = vunpack.c.l.b16 %v2319
    %v2511 = vunpack.c.h.b16 %v2319
    %v2512 = vunpack.c.l.b16 %v2320
    %v2513 = vunpack.c.h.b16 %v2320
    %v2514 = vunpack.c.l.b16 %v2321
    %v2515 = vunpack.c.h.b16 %v2321
    %v2516 = vunpack.c.l.b16 %v2322
    %v2517 = vunpack.c.h.b16 %v2322
    %v2518 = vunpack.c.l.b16 %v2323
    %v2519 = vunpack.c.h.b16 %v2323
    %v2520 = vunpack.c.l.b16 %v2324
    %v2521 = vunpack.c.h.b16 %v2324
    %v2522 = vunpack.c.l.b16 %v2325
    %v2523 = vunpack.c.h.b16 %v2325
    %v2524 = vunpack.c.l.b16 %v2326
    %v2525 = vunpack.c.h.b16 %v2326
    %v2526 = vunpack.c.l.b16 %v2327
    %v2527 = vunpack.c.h.b16 %v2327
    %v2528 = vunpack.c.l.b16 %v2328
    %v2529 = vunpack.c.h.b16 %v2328
    %v2530 = vunpack.c.l.b16 %v2329
    %v2531 = vunpack.c.h.b16 %v2329
    %v2532 = vunpack.c.l.b16 %v2330
    %v2533 = vunpack.c.h.b16 %v2330
    %v2534 = vunpack.c.l.b16 %v2331
    %v2535 = vunpack.c.h.b16 %v2331
    %v2536 = vunpack.c.l.b16 %v2332
    %v2537 = vunpack.c.h.b16 %v2332
    %v2538 = vunpack.c.l.b16 %v2333
    %v2539 = vunpack.c.h.b16 %v2333
    %v2540 = vunpack.c.l.b16 %v2334
    %v2541 = vunpack.c.h.b16 %v2334
    %v2542 = vunpack.c.l.b16 %v2335
    %v2543 = vunpack.c.h.b16 %v2335
    %v2544 = vpack.c.b16 %v2418, %v2416
    %v2545 = vpack.c.b16 %v2419, %v2417
    %v2546 = vpack.c.b16 %v2422, %v2420
    %v2547 = vpack.c.b16 %v2423, %v2421
    %v2548 = vpack.c.b16 %v2426, %v2424
    %v2549 = vpack.c.b16 %v2427, %v2425
    %v2550 = vpack.c.b16 %v2430, %v2428
    %v2551 = vpack.c.b16 %v2431, %v2429
    %v2552 = vpack.c.b16 %v2434, %v2432
    %v2553 = vpack.c.b16 %v2435, %v2433
    %v2554 = vpack.c.b16 %v2438, %v2436
    %v2555 = vpack.c.b16 %v2439, %v2437
    %v2556 = vpack.c.b16 %v2442, %v2440
    %v2557 = vpack.c.b16 %v2443, %v2441
    %v2558 = vpack.c.b16 %v2446, %v2444
    %v2559 = vpack.c.b16 %v2447, %v2445
    %v2560 = vpack.c.b16 %v2450, %v2448
    %v2561 = vpack.c.b16 %v2451, %v2449
    %v2562 = vpack.c.b16 %v2454, %v2452
    %v2563 = vpack.c.b16 %v2455, %v2453
    %v2564 = vpack.c.b16 %v2458, %v2456
    %v2565 = vpack.c.b16 %v2459, %v2457
    %v2566 = vpack.c.b16 %v2462, %v2460
    %v2567 = vpack.c.b16 %v2463, %v2461
    %v2568 = vpack.c.b16 %v2466, %v2464
    %v2569 = vpack.c.b16 %v2467, %v2465
    %v2570 = vpack.c.b16 %v2470, %v2468
    %v2571 = vpack.c.b16 %v2471, %v2469
    %v2572 = vpack.c.b16 %v2474, %v2472
    %v2573 = vpack.c.b16 %v2475, %v2473
    %v2574 = vpack.c.b16 %v2478, %v2476
    %v2575 = vpack.c.b16 %v2479, %v2477
    %v2576 = vpack.c.b16 %v2482, %v2480
    %v2577 = vpack.c.b16 %v2483, %v2481
    %v2578 = vpack.c.b16 %v2486, %v2484
    %v2579 = vpack.c.b16 %v2487, %v2485
    %v2580 = vpack.c.b16 %v2490, %v2488
    %v2581 = vpack.c.b16 %v2491, %v2489
    %v2582 = vpack.c.b16 %v2494, %v2492
    %v2583 = vpack.c.b16 %v2495, %v2493
    %v2584 = vpack.c.b16 %v2498, %v2496
    %v2585 = vpack.c.b16 %v2499, %v2497
    %v2586 = vpack.c.b16 %v2502, %v2500
    %v2587 = vpack.c.b16 %v2503, %v2501
    %v2588 = vpack.c.b16 %v2506, %v2504
    %v2589 = vpack.c.b16 %v2507, %v2505
    %v2590 = vpack.c.b16 %v2510, %v2508
    %v2591 = vpack.c.b16 %v2511, %v2509
    %v2592 = vpack.c.b16 %v2514, %v2512
    %v2593 = vpack.c.b16 %v2515, %v2513
    %v2594 = vpack.c.b16 %v2518, %v2516
    %v2595 = vpack.c.b16 %v2519, %v2517
    %v2596 = vpack.c.b16 %v2522, %v2520
    %v2597 = vpack.c.b16 %v2523, %v2521
    %v2598 = vpack.c.b16 %v2526, %v2524
    %v2599 = vpack.c.b16 %v2527, %v2525
    %v2600 = vpack.c.b16 %v2530, %v2528
    %v2601 = vpack.c.b16 %v2531, %v2529
    %v2602 = vpack.c.b16 %v2534, %v2532
    %v2603 = vpack.c.b16 %v2535, %v2533
    %v2604 = vpack.c.b16 %v2538, %v2536
    %v2605 = vpack.c.b16 %v2539, %v2537
    %v2606 = vpack.c.b16 %v2542, %v2540
    %v2607 = vpack.c.b16 %v2543, %v2541
    %2672 = vmatprep.subr.bf16.mxu0 %v2545
    %2673 = vmatpush1.bf16.msra.mxu0 %v2544
    %2674 = vmatprep.subr.bf16.mxu0 %v2547
    %2675 = vmatpush1.bf16.msra.mxu0 %v2546
    %2676 = vmatprep.subr.bf16.mxu0 %v2549
    %2677 = vmatpush1.bf16.msra.mxu0 %v2548
    %2678 = vmatprep.subr.bf16.mxu0 %v2551
    %2679 = vmatpush1.bf16.msra.mxu0 %v2550
    %2680 = vmatprep.subr.bf16.mxu0 %v2553
    %2681 = vmatpush1.bf16.msra.mxu0 %v2552
    %2682 = vmatprep.subr.bf16.mxu0 %v2555
    %2683 = vmatpush1.bf16.msra.mxu0 %v2554
    %2684 = vmatprep.subr.bf16.mxu0 %v2557
    %2685 = vmatpush1.bf16.msra.mxu0 %v2556
    %2686 = vmatprep.subr.bf16.mxu0 %v2559
    %2687 = vmatpush1.bf16.msra.mxu0 %v2558
    %2688 = vmatprep.subr.bf16.mxu0 %v2561
    %2689 = vmatpush1.bf16.msra.mxu0 %v2560
    %2690 = vmatprep.subr.bf16.mxu0 %v2563
    %2691 = vmatpush1.bf16.msra.mxu0 %v2562
    %2692 = vmatprep.subr.bf16.mxu0 %v2565
    %2693 = vmatpush1.bf16.msra.mxu0 %v2564
    %2694 = vmatprep.subr.bf16.mxu0 %v2567
    %2695 = vmatpush1.bf16.msra.mxu0 %v2566
    %2696 = vmatprep.subr.bf16.mxu0 %v2569
    %2697 = vmatpush1.bf16.msra.mxu0 %v2568
    %2698 = vmatprep.subr.bf16.mxu0 %v2571
    %2699 = vmatpush1.bf16.msra.mxu0 %v2570
    %2700 = vmatprep.subr.bf16.mxu0 %v2573
    %2701 = vmatpush1.bf16.msra.mxu0 %v2572
    %2702 = vmatprep.subr.bf16.mxu0 %v2575
    %2703 = vmatpush1.bf16.msra.mxu0 %v2574
    %2704 = vmatprep.mubr.bf16.mxu0 %v2337
    %2705 = vmatmul.mubr.bf16.gmra.mrb[0].mxu0 %v2336
    %v2706 = vpop.f32.mrb[0].mxu0
    %v2707 = vadd.f32 %v2345, %v2706
    %v2708 = vpop.f32.mrb[0].mxu0
    %v2709 = vadd.f32 %v2349, %v2708
    %v2710 = vpop.f32.mrb[0].mxu0
    %v2711 = vpop.f32.mrb[0].mxu0
    %2712 = vdwg.mxu0
    %2713 = vmatprep.subr.bf16.mxu0 %v2577
    %2714 = vmatpush1.bf16.msra.mxu0 %v2576
    %2715 = vmatprep.subr.bf16.mxu0 %v2579
    %2716 = vmatpush1.bf16.msra.mxu0 %v2578
    %2717 = vmatprep.subr.bf16.mxu0 %v2581
    %2718 = vmatpush1.bf16.msra.mxu0 %v2580
    %2719 = vmatprep.subr.bf16.mxu0 %v2583
    %2720 = vmatpush1.bf16.msra.mxu0 %v2582
    %2721 = vmatprep.subr.bf16.mxu0 %v2585
    %2722 = vmatpush1.bf16.msra.mxu0 %v2584
    %2723 = vmatprep.subr.bf16.mxu0 %v2587
    %2724 = vmatpush1.bf16.msra.mxu0 %v2586
    %2725 = vmatprep.subr.bf16.mxu0 %v2589
    %2726 = vmatpush1.bf16.msra.mxu0 %v2588
    %2727 = vmatprep.subr.bf16.mxu0 %v2591
    %2728 = vmatpush1.bf16.msra.mxu0 %v2590
    %2729 = vmatprep.subr.bf16.mxu0 %v2593
    %2730 = vmatpush1.bf16.msra.mxu0 %v2592
    %2731 = vmatprep.subr.bf16.mxu0 %v2595
    %2732 = vmatpush1.bf16.msra.mxu0 %v2594
    %2733 = vmatprep.subr.bf16.mxu0 %v2597
    %2734 = vmatpush1.bf16.msra.mxu0 %v2596
    %2735 = vmatprep.subr.bf16.mxu0 %v2599
    %2736 = vmatpush1.bf16.msra.mxu0 %v2598
    %2737 = vmatprep.subr.bf16.mxu0 %v2601
    %2738 = vmatpush1.bf16.msra.mxu0 %v2600
    %2739 = vmatprep.subr.bf16.mxu0 %v2603
    %2740 = vmatpush1.bf16.msra.mxu0 %v2602
    %2741 = vmatprep.subr.bf16.mxu0 %v2605
    %2742 = vmatpush1.bf16.msra.mxu0 %v2604
    %2743 = vmatprep.subr.bf16.mxu0 %v2607
    %2744 = vmatpush1.bf16.msra.mxu0 %v2606
    %2745 = vmatprep.mubr.bf16.mxu0 %v2339
    %2746 = vmatmul.mubr.bf16.gmra.mrb[0].mxu0 %v2338
    %v2747 = vpop.f32.mrb[0].mxu0
    %v2748 = vadd.f32 %v2707, %v2747
    %v2749 = vpop.f32.mrb[0].mxu0
    %v2750 = vadd.f32 %v2709, %v2749
    %v2751 = vpop.f32.mrb[0].mxu0
    %v2752 = vpop.f32.mrb[0].mxu0
    %2753 = vdwg.mxu0
    %v2754 = vmul.f32 %v2748, 0.5
    %v2755 = vmul.f32 %v2750, 0.5
    %v2756 = vmul.f32 %v2748, 0.044715
    %v2757 = vmul.f32 %v2750, 0.044715
    %v2758 = vmul.f32 %v2756, %v2748
    %v2759 = vmul.f32 %v2757, %v2750
    %v2760 = vmul.f32 %v2758, %v2748
    %v2761 = vmul.f32 %v2759, %v2750
    %v2762 = vadd.f32 %v2748, %v2760
    %v2763 = vadd.f32 %v2750, %v2761
    %v2764 = vmul.f32 %v2762, 0.7978846
    %v2765 = vmul.f32 %v2763, 0.7978846
    %v2766 = vtanh.pop %v2764
    %v2767 = vtanh.pop %v2765
    %v2768 = vadd.f32 %v2766, 1.0
    %v2769 = vadd.f32 %v2767, 1.0
    %v2770 = vmul.f32 %v2754, %v2768
    %v2771 = vmul.f32 %v2755, %v2769
    %v2772 = vld [vmem:[%s22] sm:$0x3]
    %v2773 = vld [vmem:[%s23] sm:$0x3]
    %v2774 = vadd.f32 %v2770, %v2771
    %2775 = vadd.xlane.f32.xlu0 %v2774
    %v2776 = vpop.xlane.xlu0 %2775
    %v2777 = vrcp.pop 256.0
    %v2778 = vmul.f32 %v2776, %v2777
    %v2779 = vsub.f32 %v2770, %v2778
    %v2780 = vsub.f32 %v2771, %v2778
    %v2781 = vmul.f32 %v2779, %v2779
    %v2782 = vmul.f32 %v2780, %v2780
    %v2783 = vadd.f32 %v2781, %v2782
    %2784 = vadd.xlane.f32.xlu0 %v2783
    %v2785 = vpop.xlane.xlu0 %2784
    %v2786 = vmul.f32 %v2785, %v2777
    %v2787 = vadd.f32 %v2786, 1e-05
    %v2788 = vrsqrt.pop %v2787
    %v2789 = vmul.f32 %v2779, %v2788
    %v2790 = vmul.f32 %v2780, %v2788
    %v2792 = vlaneseq
    %v2793 = vshrl.u32 %v2792, 7
    %v2794 = vsub.s32 0, %v2793
    %v2795 = vrot.slane %v2772, %v2794
    %v2796 = vlaneseq
    %v2797 = vshrl.u32 %v2796, 7
    %v2798 = vsub.s32 1, %v2797
    %v2799 = vrot.slane %v2772, %v2798
    %v2802 = vmul.f32 %v2789, %v2795
    %v2803 = vmul.f32 %v2790, %v2799
    %v2805 = vlaneseq
    %v2806 = vshrl.u32 %v2805, 7
    %v2807 = vsub.s32 0, %v2806
    %v2808 = vrot.slane %v2773, %v2807
    %v2809 = vlaneseq
    %v2810 = vshrl.u32 %v2809, 7
    %v2811 = vsub.s32 1, %v2810
    %v2812 = vrot.slane %v2773, %v2811
    %v2815 = vadd.f32 %v2802, %v2808
    %v2816 = vadd.f32 %v2803, %v2812
    %v2817 = vld [vmem:[%s24] sm:$0xf]
    %v2818 = vld [vmem:[%s24 + $0x4] sm:$0xf]
    %v2819 = vld [vmem:[%s24 + $0x8] sm:$0xf]
    %v2820 = vld [vmem:[%s24 + $0xc] sm:$0xf]
    %v2821 = vld [vmem:[%s24 + $0x10] sm:$0xf]
    %v2822 = vld [vmem:[%s24 + $0x14] sm:$0xf]
    %v2823 = vld [vmem:[%s24 + $0x18] sm:$0xf]
    %v2824 = vld [vmem:[%s24 + $0x1c] sm:$0xf]
    %v2825 = vld [vmem:[%s24 + $0x20] sm:$0xf]
    %v2826 = vld [vmem:[%s24 + $0x24] sm:$0xf]
    %v2827 = vld [vmem:[%s24 + $0x28] sm:$0xf]
    %v2828 = vld [vmem:[%s24 + $0x2c] sm:$0xf]
    %v2829 = vld [vmem:[%s24 + $0x30] sm:$0xf]
    %v2830 = vld [vmem:[%s24 + $0x34] sm:$0xf]
    %v2831 = vld [vmem:[%s24 + $0x38] sm:$0xf]
    %v2832 = vld [vmem:[%s24 + $0x3c] sm:$0xf]
    %v2833 = vld [vmem:[%s24 + $0x40] sm:$0xf]
    %v2834 = vld [vmem:[%s24 + $0x44] sm:$0xf]
    %v2835 = vld [vmem:[%s24 + $0x48] sm:$0xf]
    %v2836 = vld [vmem:[%s24 + $0x4c] sm:$0xf]
    %v2837 = vld [vmem:[%s24 + $0x50] sm:$0xf]
    %v2838 = vld [vmem:[%s24 + $0x54] sm:$0xf]
    %v2839 = vld [vmem:[%s24 + $0x58] sm:$0xf]
    %v2840 = vld [vmem:[%s24 + $0x5c] sm:$0xf]
    %v2841 = vld [vmem:[%s24 + $0x60] sm:$0xf]
    %v2842 = vld [vmem:[%s24 + $0x64] sm:$0xf]
    %v2843 = vld [vmem:[%s24 + $0x68] sm:$0xf]
    %v2844 = vld [vmem:[%s24 + $0x6c] sm:$0xf]
    %v2845 = vld [vmem:[%s24 + $0x70] sm:$0xf]
    %v2846 = vld [vmem:[%s24 + $0x74] sm:$0xf]
    %v2847 = vld [vmem:[%s24 + $0x78] sm:$0xf]
    %v2848 = vld [vmem:[%s24 + $0x7c] sm:$0xf]
    %v2849 = vpack.c.bf16 %v2815, %v2815
    %v2850 = vpack.c.bf16 %v2816, %v2816
    %v2851 = vld [vmem:[#allocation15] sm:$0x1]
    %v2853 = vlaneseq
    %v2854 = vshrl.u32 %v2853, 7
    %v2855 = vsub.s32 0, %v2854
    %v2856 = vrot.slane %v2851, %v2855
    %v2890 = vunpack.c.l.b16 %v2817
    %v2891 = vunpack.c.l.b16 %v2818
    %v2892 = vunpack.c.l.b16 %v2819
    %v2893 = vunpack.c.l.b16 %v2820
    %v2894 = vunpack.c.l.b16 %v2821
    %v2895 = vunpack.c.l.b16 %v2822
    %v2896 = vunpack.c.l.b16 %v2823
    %v2897 = vunpack.c.l.b16 %v2824
    %v2898 = vunpack.c.l.b16 %v2825
    %v2899 = vunpack.c.l.b16 %v2826
    %v2900 = vunpack.c.l.b16 %v2827
    %v2901 = vunpack.c.l.b16 %v2828
    %v2902 = vunpack.c.l.b16 %v2829
    %v2903 = vunpack.c.l.b16 %v2830
    %v2904 = vunpack.c.l.b16 %v2831
    %v2905 = vunpack.c.l.b16 %v2832
    %v2906 = vunpack.c.l.b16 %v2833
    %v2907 = vunpack.c.l.b16 %v2834
    %v2908 = vunpack.c.l.b16 %v2835
    %v2909 = vunpack.c.l.b16 %v2836
    %v2910 = vunpack.c.l.b16 %v2837
    %v2911 = vunpack.c.l.b16 %v2838
    %v2912 = vunpack.c.l.b16 %v2839
    %v2913 = vunpack.c.l.b16 %v2840
    %v2914 = vunpack.c.l.b16 %v2841
    %v2915 = vunpack.c.l.b16 %v2842
    %v2916 = vunpack.c.l.b16 %v2843
    %v2917 = vunpack.c.l.b16 %v2844
    %v2918 = vunpack.c.l.b16 %v2845
    %v2919 = vunpack.c.l.b16 %v2846
    %v2920 = vunpack.c.l.b16 %v2847
    %v2921 = vunpack.c.l.b16 %v2848
    %v2922 = vpack.c.b16 %v2891, %v2890
    %v2923 = vpack.c.b16 %v2893, %v2892
    %v2924 = vpack.c.b16 %v2895, %v2894
    %v2925 = vpack.c.b16 %v2897, %v2896
    %v2926 = vpack.c.b16 %v2899, %v2898
    %v2927 = vpack.c.b16 %v2901, %v2900
    %v2928 = vpack.c.b16 %v2903, %v2902
    %v2929 = vpack.c.b16 %v2905, %v2904
    %v2930 = vpack.c.b16 %v2907, %v2906
    %v2931 = vpack.c.b16 %v2909, %v2908
    %v2932 = vpack.c.b16 %v2911, %v2910
    %v2933 = vpack.c.b16 %v2913, %v2912
    %v2934 = vpack.c.b16 %v2915, %v2914
    %v2935 = vpack.c.b16 %v2917, %v2916
    %v2936 = vpack.c.b16 %v2919, %v2918
    %v2937 = vpack.c.b16 %v2921, %v2920
    %2954 = vmatprep.subr.bf16.mxu0 0
    %2955 = vmatpush1.bf16.msra.mxu0 %v2922
    %2956 = vmatprep.subr.bf16.mxu0 0
    %2957 = vmatpush1.bf16.msra.mxu0 %v2923
    %2958 = vmatprep.subr.bf16.mxu0 0
    %2959 = vmatpush1.bf16.msra.mxu0 %v2924
    %2960 = vmatprep.subr.bf16.mxu0 0
    %2961 = vmatpush1.bf16.msra.mxu0 %v2925
    %2962 = vmatprep.subr.bf16.mxu0 0
    %2963 = vmatpush1.bf16.msra.mxu0 %v2926
    %2964 = vmatprep.subr.bf16.mxu0 0
    %2965 = vmatpush1.bf16.msra.mxu0 %v2927
    %2966 = vmatprep.subr.bf16.mxu0 0
    %2967 = vmatpush1.bf16.msra.mxu0 %v2928
    %2968 = vmatprep.subr.bf16.mxu0 0
    %2969 = vmatpush1.bf16.msra.mxu0 %v2929
    %2970 = vmatprep.subr.bf16.mxu0 0
    %2971 = vmatpush1.bf16.msra.mxu0 %v2930
    %2972 = vmatprep.subr.bf16.mxu0 0
    %2973 = vmatpush1.bf16.msra.mxu0 %v2931
    %2974 = vmatprep.subr.bf16.mxu0 0
    %2975 = vmatpush1.bf16.msra.mxu0 %v2932
    %2976 = vmatprep.subr.bf16.mxu0 0
    %2977 = vmatpush1.bf16.msra.mxu0 %v2933
    %2978 = vmatprep.subr.bf16.mxu0 0
    %2979 = vmatpush1.bf16.msra.mxu0 %v2934
    %2980 = vmatprep.subr.bf16.mxu0 0
    %2981 = vmatpush1.bf16.msra.mxu0 %v2935
    %2982 = vmatprep.subr.bf16.mxu0 0
    %2983 = vmatpush1.bf16.msra.mxu0 %v2936
    %2984 = vmatprep.subr.bf16.mxu0 0
    %2985 = vmatpush1.bf16.msra.mxu0 %v2937
    %2986 = vmatprep.mubr.bf16.mxu0 %v2850
    %2987 = vmatmul.mubr.bf16.gmra.mrb[0].mxu0 %v2849
    %v2988 = vpop.f32.mrb[0].mxu0
    %v2989 = vadd.f32 %v2856, %v2988
    %v2990 = vpop.f32.mrb[0].mxu0
    %v2991 = vpop.f32.mrb[0].mxu0
    %v2992 = vpop.f32.mrb[0].mxu0
    %2993 = vdwg.mxu0
    %2994 = vst [vmem:[%s26] sm:$0xff] %v2989
    // Predicated region
    $region142: #{dnabert_promoter_classifier_forward.1} parent=1 // pred_check
      _
    $region143: #{dnabert_promoter_classifier_forward.1} parent=1 // pred_check_branch
      %2996 = sbr.rel (0) target = $region145
    $region144: #{dnabert_promoter_classifier_forward.1} parent=1 // pred_region
      _
    $region145: #{dnabert_promoter_classifier_forward.1} parent=1 // pred_fallthru
      _
    // Predicated region
    $region146: #{dnabert_promoter_classifier_forward.1} parent=1 // pred_check
      _
    $region147: #{dnabert_promoter_classifier_forward.1} parent=1 // pred_check_branch
      %2998 = sbr.rel (0) target = $region149
    $region148: #{dnabert_promoter_classifier_forward.1} parent=1 // pred_region
      _
    $region149: #{dnabert_promoter_classifier_forward.1} parent=1 // pred_fallthru
      _
    %2999 = vsyncpa [#allocation3], 1
    %3000 = vsyncpa [#allocation5], 1
    %3001 = vsyncpa [#allocation8], 1
    %3002 = vsyncpa [#allocation11], 1
    %3003 = vsyncpa [#allocation14], 1

</llo_original>
